<compile_context>
chip_gen: v5e
topology: v5e:2x2
jax: 0.10.0
libtpu: 0.0.40
codegen_flags: <defaults>
</compile_context>

<pallas_src>
import jax
import jax.numpy as jnp
from jax import lax
from jax.experimental import pallas as pl
from jax.experimental.pallas import tpu as pltpu
import numpy as np

# ---------------------------------------------------------------- config ----
BATCH = 2
SEQ = 8
EMB_DIM = 768          # BERT hidden size (LSTM input_size=768)
HIDDEN_DIM = 32        # nn.LSTM hidden_size
NUM_LAYERS = 2
OUTPUT_DIM = 4
VOCAB = 100
DROP = 0.1             # inter-layer dropout prob (identity in eval mode)

H = HIDDEN_DIM
VMEM_SPEC = pl.BlockSpec(memory_space=pltpu.MemorySpace.VMEM)


# ---------------------------------------------------------- fused kernel ----
def _bilstm_fused_kernel(x_ref,                      # (T*B, 768)  bf16, time-major
                         w0_ref, b0_ref, whh0_ref,   # (768,8H) bf16, (1,8H) f32, (4H,8H) bf16
                         w1f_ref, w1b_ref,           # (4H,8H) bf16 each (zero-padded halves)
                         b1_ref, whh1_ref,           # (1,8H) f32, (4H,8H) bf16
                         fcw_ref, fcb_ref,           # (4H,O) f32, (1,O) f32
                         out_ref):                   # (B, O) f32
    B = out_ref.shape[0]
    TB = x_ref.shape[0]
    T = TB // B
    H = HIDDEN_DIM

    # ---- lane-index masks (hoisted, built once per kernel) ------------------
    lane8 = lax.broadcasted_iota(jnp.int32, (B, 8 * H), 1)
    fw_col_mask = (lane8 % (2 * H)) < H                 # forward-direction gate columns
    g_col_mask = (lane8 >= 4 * H) & (lane8 < 6 * H)     # tanh-activated (g) columns
    lane4 = lax.broadcasted_iota(jnp.int32, (B, 4 * H), 1)
    lo_half_mask = lane4 < 2 * H                        # lanes [0,2H): gate g, else carry c

    def make_addends(xg):
        # xg: (T*B, 8H) f32; row block t = input projection for timestep t (both dirs).
        # Fused step s: forward columns read timestep s, backward columns timestep T-1-s.
        # Off the recurrence critical path (depends only on xg).
        adds = []
        for s in range(T):
            fw = xg[s * B:(s + 1) * B, :]
            bw = xg[(T - 1 - s) * B:(T - s) * B, :]
            adds.append(jnp.where(fw_col_mask, fw, bw))
        return adds

    def run_layer(addends, whh_pad):
        # Fused fw+bw recurrence.  State, both (B, 4H) = one 128-lane block:
        #   cc = [c | c]            cell state (fw|bw) replicated in both halves
        #   oc = [g*tanh(c) | h]    h = [h_fw | h_bw] lives in lanes 2H:4H
        # whh_pad's top 2H rows are zero, so oc feeds the MXU directly and h is
        # never lane-extracted.  Only vreg-aligned slices + 1 roll per step.
        cc = jnp.zeros((B, 4 * H), jnp.float32)
        oc = jnp.zeros((B, 4 * H), jnp.float32)
        ocs = []
        for s in range(T):
            hh = jnp.dot(oc.astype(jnp.bfloat16), whh_pad,
                         preferred_element_type=jnp.float32)          # (B, 8H)
            gates = addends[s] + hh
            act = jnp.where(g_col_mask, jnp.tanh(gates), jax.nn.sigmoid(gates))
            blk_if = act[:, :4 * H]                   # [i_fw i_bw f_fw f_bw]
            blk_go = act[:, 4 * H:]                   # [g_fw g_bw o_fw o_bw]
            prod = blk_if * jnp.where(lo_half_mask, blk_go, cc)       # [i*g | f*c]
            cc = prod + pltpu.roll(prod, shift=2 * H, axis=1)         # [c' | c']
            oc = blk_go * jnp.tanh(cc)                                # [g*tanh(c') | h']
            ocs.append(oc)
        return ocs

    # ---- layer 0: hoisted input projection, both directions, one matmul -----
    xg0 = jnp.dot(x_ref[...], w0_ref[...],
                  preferred_element_type=jnp.float32) + b0_ref[...]
    ocs0 = run_layer(make_addends(xg0), whh0_ref[...])
    # TODO(synk): nn.LSTM inter-layer dropout (p=DROP) is identity at eval time.

    # ---- layer 1: per-step outputs stay in registers; zero-padded weights so
    #      no lane extraction of h is needed. Row block t of y_fw holds h_fw(t);
    #      row block t of y_bw (reversed list) holds h_bw(t). -------------------
    y_fw = jnp.concatenate(ocs0, axis=0).astype(jnp.bfloat16)         # (T*B, 4H)
    y_bw = jnp.concatenate(ocs0[::-1], axis=0).astype(jnp.bfloat16)   # (T*B, 4H)
    xg1 = (jnp.dot(y_fw, w1f_ref[...], preferred_element_type=jnp.float32)
           + jnp.dot(y_bw, w1b_ref[...], preferred_element_type=jnp.float32)
           + b1_ref[...])
    ocs1 = run_layer(make_addends(xg1), whh1_ref[...])

    # ---- classifier: oc_last lanes 2H:3H = h_n[-2] (fw), 3H:4H = h_n[-1] (bw);
    #      fcw is zero-padded so the concat is implicit. -----------------------
    oc_last = ocs1[-1]
    out_ref[...] = (jnp.dot(oc_last, fcw_ref[...],
                            preferred_element_type=jnp.float32)
                    + fcb_ref[...]).astype(out_ref.dtype)


# ------------------------------------------------------- weight packing -----
def _interleave_gate_cols(wf, wb):
    """(d,4H) fw + (d,4H) bw (PyTorch gate order i,f,g,o along columns) ->
    (d,8H) with columns [i_fw i_bw f_fw f_bw g_fw g_bw o_fw o_bw]."""
    blocks = []
    for g in range(4):
        blocks.append(wf[:, g * H:(g + 1) * H])
        blocks.append(wb[:, g * H:(g + 1) * H])
    return jnp.concatenate(blocks, axis=1)


def _prep_layer(p):
    """Input projection (d_in,8H), fused bias (1,8H), zero-padded block-diagonal
    recurrent weight (4H,8H) for one bidirectional layer."""
    w_in = _interleave_gate_cols(jnp.transpose(p["w_ih_fw"]),
                                 jnp.transpose(p["w_ih_bw"]))
    b_fw = (p["b_ih_fw"] + p["b_hh_fw"]).reshape(1, 4 * H)
    b_bw = (p["b_ih_bw"] + p["b_hh_bw"]).reshape(1, 4 * H)
    b = _interleave_gate_cols(b_fw, b_bw)

    whh_f = jnp.transpose(p["w_hh_fw"])                       # (H, 4H)
    whh_b = jnp.transpose(p["w_hh_bw"])                       # (H, 4H)
    zeros_h = jnp.zeros((H, 4 * H), jnp.float32)
    whh_fused = _interleave_gate_cols(
        jnp.concatenate([whh_f, zeros_h], axis=0),            # rows 0:H  -> h_fw
        jnp.concatenate([zeros_h, whh_b], axis=0))            # rows H:2H -> h_bw
    whh_pad = jnp.concatenate(
        [jnp.zeros((2 * H, 8 * H), jnp.float32), whh_fused], axis=0)   # (4H, 8H)
    return w_in, b, whh_pad


def _prep_params(params):
    p0, p1 = params["lstm"]
    w0, b0, whh0 = _prep_layer(p0)
    w1_full, b1, whh1 = _prep_layer(p1)                       # w1_full: (2H, 8H)

    zeros_h8 = jnp.zeros((H, 8 * H), jnp.float32)
    pad2h = jnp.zeros((2 * H, 8 * H), jnp.float32)
    # oc lanes: [0:2H garbage | 2H:3H h_fw | 3H:4H h_bw]  ->  pad accordingly.
    w1f = jnp.concatenate([pad2h, w1_full[:H], zeros_h8], axis=0)      # (4H, 8H)
    w1b = jnp.concatenate([pad2h, zeros_h8, w1_full[H:]], axis=0)      # (4H, 8H)

    fcw = jnp.transpose(params["fc_w"])                       # (2H, O)
    fcw_pad = jnp.concatenate(
        [jnp.zeros((2 * H, OUTPUT_DIM), jnp.float32), fcw], axis=0)    # (4H, O)
    fcb = params["fc_b"].reshape(1, OUTPUT_DIM)

    bf16 = jnp.bfloat16
    return (w0.astype(bf16), b0, whh0.astype(bf16),
            w1f.astype(bf16), w1b.astype(bf16), b1, whh1.astype(bf16),
            fcw_pad, fcb)


# --------------------------------------------------------------- wrapper ----
def bilstm_classifier_forward(params, input_ids, attention_mask, token_type_ids):
    # TODO(synk): frozen `BertModel.from_pretrained('bert-base-chinese')` has no
    # Pallas equivalent here; replaced by a deterministic embedding lookup that
    # plays the role of `last_hidden_state`. attention_mask / token_type_ids are
    # accepted for signature parity but unused by the stand-in.
    del attention_mask, token_type_ids
    B, T = input_ids.shape

    embedded = params["embed_table"][input_ids]                 # (B, T, 768)
    # time-major, flattened so timestep t is the static row block [t*B:(t+1)*B];
    # bf16 halves w0/x HBM traffic and gives single-pass MXU matmuls (f32 acc).
    x = jnp.transpose(embedded, (1, 0, 2)).reshape(T * B, EMB_DIM).astype(jnp.bfloat16)

    (w0, b0, whh0, w1f, w1b, b1, whh1, fcw_pad, fcb) = _prep_params(params)

    # NOTE: single TensorCore on purpose — after fw/bw fusion each layer is only
    # T=8 dependent steps; cross-core sync (v7x) would cost more than it saves.
    cost = pl.CostEstimate(flops=11_000_000, transcendentals=45_000,
                           bytes_accessed=700_000)
    return pl.pallas_call(
        _bilstm_fused_kernel,
        out_shape=jax.ShapeDtypeStruct((B, OUTPUT_DIM), jnp.float32),
        in_specs=[VMEM_SPEC] * 10,
        out_specs=VMEM_SPEC,
        compiler_params=pltpu.CompilerParams(vmem_limit_bytes=16 * 1024 * 1024),
        cost_estimate=cost,
    )(x, w0, b0, whh0, w1f, w1b, b1, whh1, fcw_pad, fcb)


# --------------------------------------------------------- pure-JAX ref -----
def _ref_lstm_dir(x_tbd, w_ih, w_hh, b_ih, b_hh):
    T, B, _ = x_tbd.shape
    Hd = w_hh.shape[1]

    def step(carry, x_t):
        h, c = carry
        gates = x_t @ w_ih.T + h @ w_hh.T + b_ih + b_hh
        i, f, g, o = jnp.split(gates, 4, axis=1)
        i, f, o = jax.nn.sigmoid(i), jax.nn.sigmoid(f), jax.nn.sigmoid(o)
        g = jnp.tanh(g)
        c = f * c + i * g
        h = o * jnp.tanh(c)
        return (h, c), h

    (h, _), ys = lax.scan(step, (jnp.zeros((B, Hd)), jnp.zeros((B, Hd))), x_tbd)
    return ys, h


def _ref_forward(params, input_ids):
    x = jnp.transpose(params["embed_table"][input_ids], (1, 0, 2))
    h_fw = h_bw = None
    for layer in range(NUM_LAYERS):
        p = params["lstm"][layer]
        y_fw, h_fw = _ref_lstm_dir(x, p["w_ih_fw"], p["w_hh_fw"], p["b_ih_fw"], p["b_hh_fw"])
        y_bw_rev, h_bw = _ref_lstm_dir(jnp.flip(x, 0), p["w_ih_bw"], p["w_hh_bw"],
                                       p["b_ih_bw"], p["b_hh_bw"])
        x = jnp.concatenate([y_fw, jnp.flip(y_bw_rev, 0)], axis=-1)
    feat = jnp.concatenate([h_fw, h_bw], axis=1)
    return feat @ params["fc_w"].T + params["fc_b"]


# ------------------------------------------------------------------ params --
def init_params(key):
    def uniform(key, shape, scale):
        return jax.random.uniform(key, shape, jnp.float32, -scale, scale)

    keys = jax.random.split(key, 64)
    k = iter(keys)
    s = 1.0 / np.sqrt(H)
    lstm_params = []
    for layer in range(NUM_LAYERS):
        d_in = EMB_DIM if layer == 0 else 2 * H
        lstm_params.append({
            "w_ih_fw": uniform(next(k), (4 * H, d_in), s),
            "w_hh_fw": uniform(next(k), (4 * H, H), s),
            "b_ih_fw": uniform(next(k), (4 * H,), s),
            "b_hh_fw": uniform(next(k), (4 * H,), s),
            "w_ih_bw": uniform(next(k), (4 * H, d_in), s),
            "w_hh_bw": uniform(next(k), (4 * H, H), s),
            "b_ih_bw": uniform(next(k), (4 * H,), s),
            "b_hh_bw": uniform(next(k), (4 * H,), s),
        })
    s_fc = 1.0 / np.sqrt(2 * H)
    return {
        "embed_table": jax.random.normal(next(k), (VOCAB, EMB_DIM), jnp.float32) * 0.02,
        "lstm": lstm_params,
        "fc_w": uniform(next(k), (OUTPUT_DIM, 2 * H), s_fc),
        "fc_b": uniform(next(k), (OUTPUT_DIM,), s_fc),
    }


# -------------------------------------------------------------------- main --
if __name__ == "__main__":
    root = jax.random.PRNGKey(0)
    k_params, k_ids = jax.random.split(root)
    params = init_params(k_params)

    input_ids = jax.random.randint(k_ids, (BATCH, SEQ), 0, VOCAB, dtype=jnp.int32)
    attention_mask = jnp.ones((BATCH, SEQ), dtype=jnp.int32)
    token_type_ids = jnp.zeros((BATCH, SEQ), dtype=jnp.int32)

    out = bilstm_classifier_forward(params, input_ids, attention_mask, token_type_ids)
    out = jax.block_until_ready(out)

    ref = jax.block_until_ready(_ref_forward(params, input_ids))
    assert out.shape == (BATCH, OUTPUT_DIM), out.shape
    # bf16 inputs/weights (f32 accumulation + f32 cell state) -> loosened tolerance.
    np.testing.assert_allclose(np.asarray(out), np.asarray(ref), rtol=2e-2, atol=2e-2)

    print("KERNEL_OK")
</pallas_src>

<mosaic_0001>
module attributes {stable_mosaic.version = 11 : i64} {
  func.func @_bilstm_fused_kernel(%arg0: memref<16x768xbf16, #tpu.memory_space<vmem>>, %arg1: memref<768x256xbf16, #tpu.memory_space<vmem>>, %arg2: memref<1x256xf32, #tpu.memory_space<vmem>>, %arg3: memref<128x256xbf16, #tpu.memory_space<vmem>>, %arg4: memref<128x256xbf16, #tpu.memory_space<vmem>>, %arg5: memref<128x256xbf16, #tpu.memory_space<vmem>>, %arg6: memref<1x256xf32, #tpu.memory_space<vmem>>, %arg7: memref<128x256xbf16, #tpu.memory_space<vmem>>, %arg8: memref<128x4xf32, #tpu.memory_space<vmem>>, %arg9: memref<1x4xf32, #tpu.memory_space<vmem>>, %arg10: memref<2x4xf32, #tpu.memory_space<vmem>>) attributes {dimension_semantics = [], scalar_prefetch = 0 : i64, scratch_operands = 0 : i64, tpu.core_type = #tpu.core_type<tc>} {
    %0 = tpu.iota {dimensions = array<i32: 1>} : vector<2x256xi32>
    %c64_i32 = arith.constant 64 : i32
    %c0_i32 = arith.constant 0 : i32
    %1 = arith.cmpi eq, %c64_i32, %c0_i32 : i32
    %c1_i32 = arith.constant 1 : i32
    %2 = arith.select %1, %c1_i32, %c64_i32 : i32
    %3 = vector.broadcast %2 : i32 to vector<2x256xi32>
    %4 = arith.remsi %0, %3 : vector<2x256xi32>
    %c0_i32_0 = arith.constant 0 : i32
    %5 = vector.broadcast %c0_i32_0 : i32 to vector<2x256xi32>
    %6 = arith.cmpi ne, %4, %5 : vector<2x256xi32>
    %c0_i32_1 = arith.constant 0 : i32
    %7 = vector.broadcast %c0_i32_1 : i32 to vector<2x256xi32>
    %8 = arith.cmpi slt, %4, %7 : vector<2x256xi32>
    %c0_i32_2 = arith.constant 0 : i32
    %9 = arith.cmpi slt, %2, %c0_i32_2 : i32
    %10 = vector.broadcast %9 : i1 to vector<2x256xi1>
    %11 = vector.broadcast %10 : vector<2x256xi1> to vector<2x256xi1>
    %12 = arith.xori %8, %11 : vector<2x256xi1>
    %13 = arith.andi %12, %6 : vector<2x256xi1>
    %14 = vector.broadcast %2 : i32 to vector<2x256xi32>
    %15 = arith.addi %4, %14 : vector<2x256xi32>
    %16 = arith.select %13, %15, %4 : vector<2x256xi1>, vector<2x256xi32>
    %c32_i32 = arith.constant 32 : i32
    %17 = vector.broadcast %c32_i32 : i32 to vector<2x256xi32>
    %18 = arith.cmpi slt, %16, %17 : vector<2x256xi32>
    %c128_i32 = arith.constant 128 : i32
    %19 = vector.broadcast %c128_i32 : i32 to vector<2x256xi32>
    %20 = arith.cmpi sge, %0, %19 : vector<2x256xi32>
    %c192_i32 = arith.constant 192 : i32
    %21 = vector.broadcast %c192_i32 : i32 to vector<2x256xi32>
    %22 = arith.cmpi slt, %0, %21 : vector<2x256xi32>
    %23 = arith.andi %20, %22 : vector<2x256xi1>
    %24 = tpu.iota {dimensions = array<i32: 1>} : vector<2x128xi32>
    %c64_i32_3 = arith.constant 64 : i32
    %25 = vector.broadcast %c64_i32_3 : i32 to vector<2x128xi32>
    %26 = arith.cmpi slt, %24, %25 : vector<2x128xi32>
    %c0 = arith.constant 0 : index
    %c0_4 = arith.constant 0 : index
    %27 = vector.load %arg0[%c0, %c0_4] : memref<16x768xbf16, #tpu.memory_space<vmem>>, vector<16x768xbf16>
    %c0_5 = arith.constant 0 : index
    %c0_6 = arith.constant 0 : index
    %28 = vector.load %arg1[%c0_5, %c0_6] : memref<768x256xbf16, #tpu.memory_space<vmem>>, vector<768x256xbf16>
    %cst = arith.constant dense<0.000000e+00> : vector<16x256xf32>
    %29 = tpu.matmul %27, %28, %cst {dimension_numbers = #tpu.dot_dimension_numbers<[1], [0], [0], [1], [0, 0, 1, 1], [], []>} : vector<16x768xbf16>, vector<768x256xbf16>, vector<16x256xf32> -> vector<16x256xf32>
    %c0_7 = arith.constant 0 : index
    %c0_8 = arith.constant 0 : index
    %30 = vector.load %arg2[%c0_7, %c0_8] : memref<1x256xf32, #tpu.memory_space<vmem>>, vector<1x256xf32>
    %31 = vector.broadcast %30 : vector<1x256xf32> to vector<16x256xf32>
    %32 = arith.addf %29, %31 : vector<16x256xf32>
    %33 = vector.extract_strided_slice %32 {offsets = [0, 0], sizes = [2, 256], strides = [1, 1]} : vector<16x256xf32> to vector<2x256xf32>
    %34 = vector.extract_strided_slice %32 {offsets = [14, 0], sizes = [2, 256], strides = [1, 1]} : vector<16x256xf32> to vector<2x256xf32>
    %35 = arith.select %18, %33, %34 : vector<2x256xi1>, vector<2x256xf32>
    %36 = vector.extract_strided_slice %32 {offsets = [2, 0], sizes = [2, 256], strides = [1, 1]} : vector<16x256xf32> to vector<2x256xf32>
    %37 = vector.extract_strided_slice %32 {offsets = [12, 0], sizes = [2, 256], strides = [1, 1]} : vector<16x256xf32> to vector<2x256xf32>
    %38 = arith.select %18, %36, %37 : vector<2x256xi1>, vector<2x256xf32>
    %39 = vector.extract_strided_slice %32 {offsets = [4, 0], sizes = [2, 256], strides = [1, 1]} : vector<16x256xf32> to vector<2x256xf32>
    %40 = vector.extract_strided_slice %32 {offsets = [10, 0], sizes = [2, 256], strides = [1, 1]} : vector<16x256xf32> to vector<2x256xf32>
    %41 = arith.select %18, %39, %40 : vector<2x256xi1>, vector<2x256xf32>
    %42 = vector.extract_strided_slice %32 {offsets = [6, 0], sizes = [2, 256], strides = [1, 1]} : vector<16x256xf32> to vector<2x256xf32>
    %43 = vector.extract_strided_slice %32 {offsets = [8, 0], sizes = [2, 256], strides = [1, 1]} : vector<16x256xf32> to vector<2x256xf32>
    %44 = arith.select %18, %42, %43 : vector<2x256xi1>, vector<2x256xf32>
    %45 = vector.extract_strided_slice %32 {offsets = [8, 0], sizes = [2, 256], strides = [1, 1]} : vector<16x256xf32> to vector<2x256xf32>
    %46 = vector.extract_strided_slice %32 {offsets = [6, 0], sizes = [2, 256], strides = [1, 1]} : vector<16x256xf32> to vector<2x256xf32>
    %47 = arith.select %18, %45, %46 : vector<2x256xi1>, vector<2x256xf32>
    %48 = vector.extract_strided_slice %32 {offsets = [10, 0], sizes = [2, 256], strides = [1, 1]} : vector<16x256xf32> to vector<2x256xf32>
    %49 = vector.extract_strided_slice %32 {offsets = [4, 0], sizes = [2, 256], strides = [1, 1]} : vector<16x256xf32> to vector<2x256xf32>
    %50 = arith.select %18, %48, %49 : vector<2x256xi1>, vector<2x256xf32>
    %51 = vector.extract_strided_slice %32 {offsets = [12, 0], sizes = [2, 256], strides = [1, 1]} : vector<16x256xf32> to vector<2x256xf32>
    %52 = vector.extract_strided_slice %32 {offsets = [2, 0], sizes = [2, 256], strides = [1, 1]} : vector<16x256xf32> to vector<2x256xf32>
    %53 = arith.select %18, %51, %52 : vector<2x256xi1>, vector<2x256xf32>
    %54 = vector.extract_strided_slice %32 {offsets = [14, 0], sizes = [2, 256], strides = [1, 1]} : vector<16x256xf32> to vector<2x256xf32>
    %55 = vector.extract_strided_slice %32 {offsets = [0, 0], sizes = [2, 256], strides = [1, 1]} : vector<16x256xf32> to vector<2x256xf32>
    %56 = arith.select %18, %54, %55 : vector<2x256xi1>, vector<2x256xf32>
    %c0_9 = arith.constant 0 : index
    %c0_10 = arith.constant 0 : index
    %57 = vector.load %arg3[%c0_9, %c0_10] : memref<128x256xbf16, #tpu.memory_space<vmem>>, vector<128x256xbf16>
    %cst_11 = arith.constant 0.000000e+00 : f32
    %58 = vector.broadcast %cst_11 : f32 to vector<2x128xf32>
    %cst_12 = arith.constant 0.000000e+00 : f32
    %59 = vector.broadcast %cst_12 : f32 to vector<2x128xf32>
    %60 = arith.truncf %59 : vector<2x128xf32> to vector<2x128xbf16>
    %cst_13 = arith.constant dense<0.000000e+00> : vector<2x256xf32>
    %61 = tpu.matmul %60, %57, %cst_13 {dimension_numbers = #tpu.dot_dimension_numbers<[1], [0], [0], [1], [0, 0, 1, 1], [], []>} : vector<2x128xbf16>, vector<128x256xbf16>, vector<2x256xf32> -> vector<2x256xf32>
    %62 = arith.addf %35, %61 : vector<2x256xf32>
    %63 = math.tanh %62 : vector<2x256xf32>
    %64 = arith.negf %62 : vector<2x256xf32>
    %65 = math.exp %64 : vector<2x256xf32>
    %cst_14 = arith.constant 1.000000e+00 : f32
    %66 = vector.broadcast %cst_14 : f32 to vector<2x256xf32>
    %67 = arith.addf %66, %65 : vector<2x256xf32>
    %68 = arith.divf %66, %67 : vector<2x256xf32>
    %69 = arith.select %23, %63, %68 : vector<2x256xi1>, vector<2x256xf32>
    %70 = vector.extract_strided_slice %69 {offsets = [0, 0], sizes = [2, 128], strides = [1, 1]} : vector<2x256xf32> to vector<2x128xf32>
    %71 = vector.extract_strided_slice %69 {offsets = [0, 128], sizes = [2, 128], strides = [1, 1]} : vector<2x256xf32> to vector<2x128xf32>
    %72 = arith.select %26, %71, %58 : vector<2x128xi1>, vector<2x128xf32>
    %73 = arith.mulf %70, %72 : vector<2x128xf32>
    %c64_i32_15 = arith.constant 64 : i32
    %74 = tpu.dynamic_rotate %73 by %c64_i32_15 dim 1 : vector<2x128xf32>, i32 -> vector<2x128xf32>
    %75 = arith.addf %73, %74 : vector<2x128xf32>
    %76 = math.tanh %75 : vector<2x128xf32>
    %77 = arith.mulf %71, %76 : vector<2x128xf32>
    %78 = arith.truncf %77 : vector<2x128xf32> to vector<2x128xbf16>
    %cst_16 = arith.constant dense<0.000000e+00> : vector<2x256xf32>
    %79 = tpu.matmul %78, %57, %cst_16 {dimension_numbers = #tpu.dot_dimension_numbers<[1], [0], [0], [1], [0, 0, 1, 1], [], []>} : vector<2x128xbf16>, vector<128x256xbf16>, vector<2x256xf32> -> vector<2x256xf32>
    %80 = arith.addf %38, %79 : vector<2x256xf32>
    %81 = math.tanh %80 : vector<2x256xf32>
    %82 = arith.negf %80 : vector<2x256xf32>
    %83 = math.exp %82 : vector<2x256xf32>
    %cst_17 = arith.constant 1.000000e+00 : f32
    %84 = vector.broadcast %cst_17 : f32 to vector<2x256xf32>
    %85 = arith.addf %84, %83 : vector<2x256xf32>
    %86 = arith.divf %84, %85 : vector<2x256xf32>
    %87 = arith.select %23, %81, %86 : vector<2x256xi1>, vector<2x256xf32>
    %88 = vector.extract_strided_slice %87 {offsets = [0, 0], sizes = [2, 128], strides = [1, 1]} : vector<2x256xf32> to vector<2x128xf32>
    %89 = vector.extract_strided_slice %87 {offsets = [0, 128], sizes = [2, 128], strides = [1, 1]} : vector<2x256xf32> to vector<2x128xf32>
    %90 = arith.select %26, %89, %75 : vector<2x128xi1>, vector<2x128xf32>
    %91 = arith.mulf %88, %90 : vector<2x128xf32>
    %c64_i32_18 = arith.constant 64 : i32
    %92 = tpu.dynamic_rotate %91 by %c64_i32_18 dim 1 : vector<2x128xf32>, i32 -> vector<2x128xf32>
    %93 = arith.addf %91, %92 : vector<2x128xf32>
    %94 = math.tanh %93 : vector<2x128xf32>
    %95 = arith.mulf %89, %94 : vector<2x128xf32>
    %96 = arith.truncf %95 : vector<2x128xf32> to vector<2x128xbf16>
    %cst_19 = arith.constant dense<0.000000e+00> : vector<2x256xf32>
    %97 = tpu.matmul %96, %57, %cst_19 {dimension_numbers = #tpu.dot_dimension_numbers<[1], [0], [0], [1], [0, 0, 1, 1], [], []>} : vector<2x128xbf16>, vector<128x256xbf16>, vector<2x256xf32> -> vector<2x256xf32>
    %98 = arith.addf %41, %97 : vector<2x256xf32>
    %99 = math.tanh %98 : vector<2x256xf32>
    %100 = arith.negf %98 : vector<2x256xf32>
    %101 = math.exp %100 : vector<2x256xf32>
    %cst_20 = arith.constant 1.000000e+00 : f32
    %102 = vector.broadcast %cst_20 : f32 to vector<2x256xf32>
    %103 = arith.addf %102, %101 : vector<2x256xf32>
    %104 = arith.divf %102, %103 : vector<2x256xf32>
    %105 = arith.select %23, %99, %104 : vector<2x256xi1>, vector<2x256xf32>
    %106 = vector.extract_strided_slice %105 {offsets = [0, 0], sizes = [2, 128], strides = [1, 1]} : vector<2x256xf32> to vector<2x128xf32>
    %107 = vector.extract_strided_slice %105 {offsets = [0, 128], sizes = [2, 128], strides = [1, 1]} : vector<2x256xf32> to vector<2x128xf32>
    %108 = arith.select %26, %107, %93 : vector<2x128xi1>, vector<2x128xf32>
    %109 = arith.mulf %106, %108 : vector<2x128xf32>
    %c64_i32_21 = arith.constant 64 : i32
    %110 = tpu.dynamic_rotate %109 by %c64_i32_21 dim 1 : vector<2x128xf32>, i32 -> vector<2x128xf32>
    %111 = arith.addf %109, %110 : vector<2x128xf32>
    %112 = math.tanh %111 : vector<2x128xf32>
    %113 = arith.mulf %107, %112 : vector<2x128xf32>
    %114 = arith.truncf %113 : vector<2x128xf32> to vector<2x128xbf16>
    %cst_22 = arith.constant dense<0.000000e+00> : vector<2x256xf32>
    %115 = tpu.matmul %114, %57, %cst_22 {dimension_numbers = #tpu.dot_dimension_numbers<[1], [0], [0], [1], [0, 0, 1, 1], [], []>} : vector<2x128xbf16>, vector<128x256xbf16>, vector<2x256xf32> -> vector<2x256xf32>
    %116 = arith.addf %44, %115 : vector<2x256xf32>
    %117 = math.tanh %116 : vector<2x256xf32>
    %118 = arith.negf %116 : vector<2x256xf32>
    %119 = math.exp %118 : vector<2x256xf32>
    %cst_23 = arith.constant 1.000000e+00 : f32
    %120 = vector.broadcast %cst_23 : f32 to vector<2x256xf32>
    %121 = arith.addf %120, %119 : vector<2x256xf32>
    %122 = arith.divf %120, %121 : vector<2x256xf32>
    %123 = arith.select %23, %117, %122 : vector<2x256xi1>, vector<2x256xf32>
    %124 = vector.extract_strided_slice %123 {offsets = [0, 0], sizes = [2, 128], strides = [1, 1]} : vector<2x256xf32> to vector<2x128xf32>
    %125 = vector.extract_strided_slice %123 {offsets = [0, 128], sizes = [2, 128], strides = [1, 1]} : vector<2x256xf32> to vector<2x128xf32>
    %126 = arith.select %26, %125, %111 : vector<2x128xi1>, vector<2x128xf32>
    %127 = arith.mulf %124, %126 : vector<2x128xf32>
    %c64_i32_24 = arith.constant 64 : i32
    %128 = tpu.dynamic_rotate %127 by %c64_i32_24 dim 1 : vector<2x128xf32>, i32 -> vector<2x128xf32>
    %129 = arith.addf %127, %128 : vector<2x128xf32>
    %130 = math.tanh %129 : vector<2x128xf32>
    %131 = arith.mulf %125, %130 : vector<2x128xf32>
    %132 = arith.truncf %131 : vector<2x128xf32> to vector<2x128xbf16>
    %cst_25 = arith.constant dense<0.000000e+00> : vector<2x256xf32>
    %133 = tpu.matmul %132, %57, %cst_25 {dimension_numbers = #tpu.dot_dimension_numbers<[1], [0], [0], [1], [0, 0, 1, 1], [], []>} : vector<2x128xbf16>, vector<128x256xbf16>, vector<2x256xf32> -> vector<2x256xf32>
    %134 = arith.addf %47, %133 : vector<2x256xf32>
    %135 = math.tanh %134 : vector<2x256xf32>
    %136 = arith.negf %134 : vector<2x256xf32>
    %137 = math.exp %136 : vector<2x256xf32>
    %cst_26 = arith.constant 1.000000e+00 : f32
    %138 = vector.broadcast %cst_26 : f32 to vector<2x256xf32>
    %139 = arith.addf %138, %137 : vector<2x256xf32>
    %140 = arith.divf %138, %139 : vector<2x256xf32>
    %141 = arith.select %23, %135, %140 : vector<2x256xi1>, vector<2x256xf32>
    %142 = vector.extract_strided_slice %141 {offsets = [0, 0], sizes = [2, 128], strides = [1, 1]} : vector<2x256xf32> to vector<2x128xf32>
    %143 = vector.extract_strided_slice %141 {offsets = [0, 128], sizes = [2, 128], strides = [1, 1]} : vector<2x256xf32> to vector<2x128xf32>
    %144 = arith.select %26, %143, %129 : vector<2x128xi1>, vector<2x128xf32>
    %145 = arith.mulf %142, %144 : vector<2x128xf32>
    %c64_i32_27 = arith.constant 64 : i32
    %146 = tpu.dynamic_rotate %145 by %c64_i32_27 dim 1 : vector<2x128xf32>, i32 -> vector<2x128xf32>
    %147 = arith.addf %145, %146 : vector<2x128xf32>
    %148 = math.tanh %147 : vector<2x128xf32>
    %149 = arith.mulf %143, %148 : vector<2x128xf32>
    %150 = arith.truncf %149 : vector<2x128xf32> to vector<2x128xbf16>
    %cst_28 = arith.constant dense<0.000000e+00> : vector<2x256xf32>
    %151 = tpu.matmul %150, %57, %cst_28 {dimension_numbers = #tpu.dot_dimension_numbers<[1], [0], [0], [1], [0, 0, 1, 1], [], []>} : vector<2x128xbf16>, vector<128x256xbf16>, vector<2x256xf32> -> vector<2x256xf32>
    %152 = arith.addf %50, %151 : vector<2x256xf32>
    %153 = math.tanh %152 : vector<2x256xf32>
    %154 = arith.negf %152 : vector<2x256xf32>
    %155 = math.exp %154 : vector<2x256xf32>
    %cst_29 = arith.constant 1.000000e+00 : f32
    %156 = vector.broadcast %cst_29 : f32 to vector<2x256xf32>
    %157 = arith.addf %156, %155 : vector<2x256xf32>
    %158 = arith.divf %156, %157 : vector<2x256xf32>
    %159 = arith.select %23, %153, %158 : vector<2x256xi1>, vector<2x256xf32>
    %160 = vector.extract_strided_slice %159 {offsets = [0, 0], sizes = [2, 128], strides = [1, 1]} : vector<2x256xf32> to vector<2x128xf32>
    %161 = vector.extract_strided_slice %159 {offsets = [0, 128], sizes = [2, 128], strides = [1, 1]} : vector<2x256xf32> to vector<2x128xf32>
    %162 = arith.select %26, %161, %147 : vector<2x128xi1>, vector<2x128xf32>
    %163 = arith.mulf %160, %162 : vector<2x128xf32>
    %c64_i32_30 = arith.constant 64 : i32
    %164 = tpu.dynamic_rotate %163 by %c64_i32_30 dim 1 : vector<2x128xf32>, i32 -> vector<2x128xf32>
    %165 = arith.addf %163, %164 : vector<2x128xf32>
    %166 = math.tanh %165 : vector<2x128xf32>
    %167 = arith.mulf %161, %166 : vector<2x128xf32>
    %168 = arith.truncf %167 : vector<2x128xf32> to vector<2x128xbf16>
    %cst_31 = arith.constant dense<0.000000e+00> : vector<2x256xf32>
    %169 = tpu.matmul %168, %57, %cst_31 {dimension_numbers = #tpu.dot_dimension_numbers<[1], [0], [0], [1], [0, 0, 1, 1], [], []>} : vector<2x128xbf16>, vector<128x256xbf16>, vector<2x256xf32> -> vector<2x256xf32>
    %170 = arith.addf %53, %169 : vector<2x256xf32>
    %171 = math.tanh %170 : vector<2x256xf32>
    %172 = arith.negf %170 : vector<2x256xf32>
    %173 = math.exp %172 : vector<2x256xf32>
    %cst_32 = arith.constant 1.000000e+00 : f32
    %174 = vector.broadcast %cst_32 : f32 to vector<2x256xf32>
    %175 = arith.addf %174, %173 : vector<2x256xf32>
    %176 = arith.divf %174, %175 : vector<2x256xf32>
    %177 = arith.select %23, %171, %176 : vector<2x256xi1>, vector<2x256xf32>
    %178 = vector.extract_strided_slice %177 {offsets = [0, 0], sizes = [2, 128], strides = [1, 1]} : vector<2x256xf32> to vector<2x128xf32>
    %179 = vector.extract_strided_slice %177 {offsets = [0, 128], sizes = [2, 128], strides = [1, 1]} : vector<2x256xf32> to vector<2x128xf32>
    %180 = arith.select %26, %179, %165 : vector<2x128xi1>, vector<2x128xf32>
    %181 = arith.mulf %178, %180 : vector<2x128xf32>
    %c64_i32_33 = arith.constant 64 : i32
    %182 = tpu.dynamic_rotate %181 by %c64_i32_33 dim 1 : vector<2x128xf32>, i32 -> vector<2x128xf32>
    %183 = arith.addf %181, %182 : vector<2x128xf32>
    %184 = math.tanh %183 : vector<2x128xf32>
    %185 = arith.mulf %179, %184 : vector<2x128xf32>
    %186 = arith.truncf %185 : vector<2x128xf32> to vector<2x128xbf16>
    %cst_34 = arith.constant dense<0.000000e+00> : vector<2x256xf32>
    %187 = tpu.matmul %186, %57, %cst_34 {dimension_numbers = #tpu.dot_dimension_numbers<[1], [0], [0], [1], [0, 0, 1, 1], [], []>} : vector<2x128xbf16>, vector<128x256xbf16>, vector<2x256xf32> -> vector<2x256xf32>
    %188 = arith.addf %56, %187 : vector<2x256xf32>
    %189 = math.tanh %188 : vector<2x256xf32>
    %190 = arith.negf %188 : vector<2x256xf32>
    %191 = math.exp %190 : vector<2x256xf32>
    %cst_35 = arith.constant 1.000000e+00 : f32
    %192 = vector.broadcast %cst_35 : f32 to vector<2x256xf32>
    %193 = arith.addf %192, %191 : vector<2x256xf32>
    %194 = arith.divf %192, %193 : vector<2x256xf32>
    %195 = arith.select %23, %189, %194 : vector<2x256xi1>, vector<2x256xf32>
    %196 = vector.extract_strided_slice %195 {offsets = [0, 0], sizes = [2, 128], strides = [1, 1]} : vector<2x256xf32> to vector<2x128xf32>
    %197 = vector.extract_strided_slice %195 {offsets = [0, 128], sizes = [2, 128], strides = [1, 1]} : vector<2x256xf32> to vector<2x128xf32>
    %198 = arith.select %26, %197, %183 : vector<2x128xi1>, vector<2x128xf32>
    %199 = arith.mulf %196, %198 : vector<2x128xf32>
    %c64_i32_36 = arith.constant 64 : i32
    %200 = tpu.dynamic_rotate %199 by %c64_i32_36 dim 1 : vector<2x128xf32>, i32 -> vector<2x128xf32>
    %201 = arith.addf %199, %200 : vector<2x128xf32>
    %202 = math.tanh %201 : vector<2x128xf32>
    %203 = arith.mulf %197, %202 : vector<2x128xf32>
    %204 = tpu.concatenate %77, %95, %113, %131, %149, %167, %185, %203 in 0 : vector<2x128xf32>, vector<2x128xf32>, vector<2x128xf32>, vector<2x128xf32>, vector<2x128xf32>, vector<2x128xf32>, vector<2x128xf32>, vector<2x128xf32> -> vector<16x128xf32>
    %205 = arith.truncf %204 : vector<16x128xf32> to vector<16x128xbf16>
    %206 = tpu.concatenate %203, %185, %167, %149, %131, %113, %95, %77 in 0 : vector<2x128xf32>, vector<2x128xf32>, vector<2x128xf32>, vector<2x128xf32>, vector<2x128xf32>, vector<2x128xf32>, vector<2x128xf32>, vector<2x128xf32> -> vector<16x128xf32>
    %207 = arith.truncf %206 : vector<16x128xf32> to vector<16x128xbf16>
    %c0_37 = arith.constant 0 : index
    %c0_38 = arith.constant 0 : index
    %208 = vector.load %arg4[%c0_37, %c0_38] : memref<128x256xbf16, #tpu.memory_space<vmem>>, vector<128x256xbf16>
    %cst_39 = arith.constant dense<0.000000e+00> : vector<16x256xf32>
    %209 = tpu.matmul %205, %208, %cst_39 {dimension_numbers = #tpu.dot_dimension_numbers<[1], [0], [0], [1], [0, 0, 1, 1], [], []>} : vector<16x128xbf16>, vector<128x256xbf16>, vector<16x256xf32> -> vector<16x256xf32>
    %c0_40 = arith.constant 0 : index
    %c0_41 = arith.constant 0 : index
    %210 = vector.load %arg5[%c0_40, %c0_41] : memref<128x256xbf16, #tpu.memory_space<vmem>>, vector<128x256xbf16>
    %cst_42 = arith.constant dense<0.000000e+00> : vector<16x256xf32>
    %211 = tpu.matmul %207, %210, %cst_42 {dimension_numbers = #tpu.dot_dimension_numbers<[1], [0], [0], [1], [0, 0, 1, 1], [], []>} : vector<16x128xbf16>, vector<128x256xbf16>, vector<16x256xf32> -> vector<16x256xf32>
    %212 = arith.addf %209, %211 : vector<16x256xf32>
    %c0_43 = arith.constant 0 : index
    %c0_44 = arith.constant 0 : index
    %213 = vector.load %arg6[%c0_43, %c0_44] : memref<1x256xf32, #tpu.memory_space<vmem>>, vector<1x256xf32>
    %214 = vector.broadcast %213 : vector<1x256xf32> to vector<16x256xf32>
    %215 = arith.addf %212, %214 : vector<16x256xf32>
    %216 = vector.extract_strided_slice %215 {offsets = [0, 0], sizes = [2, 256], strides = [1, 1]} : vector<16x256xf32> to vector<2x256xf32>
    %217 = vector.extract_strided_slice %215 {offsets = [14, 0], sizes = [2, 256], strides = [1, 1]} : vector<16x256xf32> to vector<2x256xf32>
    %218 = arith.select %18, %216, %217 : vector<2x256xi1>, vector<2x256xf32>
    %219 = vector.extract_strided_slice %215 {offsets = [2, 0], sizes = [2, 256], strides = [1, 1]} : vector<16x256xf32> to vector<2x256xf32>
    %220 = vector.extract_strided_slice %215 {offsets = [12, 0], sizes = [2, 256], strides = [1, 1]} : vector<16x256xf32> to vector<2x256xf32>
    %221 = arith.select %18, %219, %220 : vector<2x256xi1>, vector<2x256xf32>
    %222 = vector.extract_strided_slice %215 {offsets = [4, 0], sizes = [2, 256], strides = [1, 1]} : vector<16x256xf32> to vector<2x256xf32>
    %223 = vector.extract_strided_slice %215 {offsets = [10, 0], sizes = [2, 256], strides = [1, 1]} : vector<16x256xf32> to vector<2x256xf32>
    %224 = arith.select %18, %222, %223 : vector<2x256xi1>, vector<2x256xf32>
    %225 = vector.extract_strided_slice %215 {offsets = [6, 0], sizes = [2, 256], strides = [1, 1]} : vector<16x256xf32> to vector<2x256xf32>
    %226 = vector.extract_strided_slice %215 {offsets = [8, 0], sizes = [2, 256], strides = [1, 1]} : vector<16x256xf32> to vector<2x256xf32>
    %227 = arith.select %18, %225, %226 : vector<2x256xi1>, vector<2x256xf32>
    %228 = vector.extract_strided_slice %215 {offsets = [8, 0], sizes = [2, 256], strides = [1, 1]} : vector<16x256xf32> to vector<2x256xf32>
    %229 = vector.extract_strided_slice %215 {offsets = [6, 0], sizes = [2, 256], strides = [1, 1]} : vector<16x256xf32> to vector<2x256xf32>
    %230 = arith.select %18, %228, %229 : vector<2x256xi1>, vector<2x256xf32>
    %231 = vector.extract_strided_slice %215 {offsets = [10, 0], sizes = [2, 256], strides = [1, 1]} : vector<16x256xf32> to vector<2x256xf32>
    %232 = vector.extract_strided_slice %215 {offsets = [4, 0], sizes = [2, 256], strides = [1, 1]} : vector<16x256xf32> to vector<2x256xf32>
    %233 = arith.select %18, %231, %232 : vector<2x256xi1>, vector<2x256xf32>
    %234 = vector.extract_strided_slice %215 {offsets = [12, 0], sizes = [2, 256], strides = [1, 1]} : vector<16x256xf32> to vector<2x256xf32>
    %235 = vector.extract_strided_slice %215 {offsets = [2, 0], sizes = [2, 256], strides = [1, 1]} : vector<16x256xf32> to vector<2x256xf32>
    %236 = arith.select %18, %234, %235 : vector<2x256xi1>, vector<2x256xf32>
    %237 = vector.extract_strided_slice %215 {offsets = [14, 0], sizes = [2, 256], strides = [1, 1]} : vector<16x256xf32> to vector<2x256xf32>
    %238 = vector.extract_strided_slice %215 {offsets = [0, 0], sizes = [2, 256], strides = [1, 1]} : vector<16x256xf32> to vector<2x256xf32>
    %239 = arith.select %18, %237, %238 : vector<2x256xi1>, vector<2x256xf32>
    %c0_45 = arith.constant 0 : index
    %c0_46 = arith.constant 0 : index
    %240 = vector.load %arg7[%c0_45, %c0_46] : memref<128x256xbf16, #tpu.memory_space<vmem>>, vector<128x256xbf16>
    %cst_47 = arith.constant 0.000000e+00 : f32
    %241 = vector.broadcast %cst_47 : f32 to vector<2x128xf32>
    %cst_48 = arith.constant 0.000000e+00 : f32
    %242 = vector.broadcast %cst_48 : f32 to vector<2x128xf32>
    %243 = arith.truncf %242 : vector<2x128xf32> to vector<2x128xbf16>
    %cst_49 = arith.constant dense<0.000000e+00> : vector<2x256xf32>
    %244 = tpu.matmul %243, %240, %cst_49 {dimension_numbers = #tpu.dot_dimension_numbers<[1], [0], [0], [1], [0, 0, 1, 1], [], []>} : vector<2x128xbf16>, vector<128x256xbf16>, vector<2x256xf32> -> vector<2x256xf32>
    %245 = arith.addf %218, %244 : vector<2x256xf32>
    %246 = math.tanh %245 : vector<2x256xf32>
    %247 = arith.negf %245 : vector<2x256xf32>
    %248 = math.exp %247 : vector<2x256xf32>
    %cst_50 = arith.constant 1.000000e+00 : f32
    %249 = vector.broadcast %cst_50 : f32 to vector<2x256xf32>
    %250 = arith.addf %249, %248 : vector<2x256xf32>
    %251 = arith.divf %249, %250 : vector<2x256xf32>
    %252 = arith.select %23, %246, %251 : vector<2x256xi1>, vector<2x256xf32>
    %253 = vector.extract_strided_slice %252 {offsets = [0, 0], sizes = [2, 128], strides = [1, 1]} : vector<2x256xf32> to vector<2x128xf32>
    %254 = vector.extract_strided_slice %252 {offsets = [0, 128], sizes = [2, 128], strides = [1, 1]} : vector<2x256xf32> to vector<2x128xf32>
    %255 = arith.select %26, %254, %241 : vector<2x128xi1>, vector<2x128xf32>
    %256 = arith.mulf %253, %255 : vector<2x128xf32>
    %c64_i32_51 = arith.constant 64 : i32
    %257 = tpu.dynamic_rotate %256 by %c64_i32_51 dim 1 : vector<2x128xf32>, i32 -> vector<2x128xf32>
    %258 = arith.addf %256, %257 : vector<2x128xf32>
    %259 = math.tanh %258 : vector<2x128xf32>
    %260 = arith.mulf %254, %259 : vector<2x128xf32>
    %261 = arith.truncf %260 : vector<2x128xf32> to vector<2x128xbf16>
    %cst_52 = arith.constant dense<0.000000e+00> : vector<2x256xf32>
    %262 = tpu.matmul %261, %240, %cst_52 {dimension_numbers = #tpu.dot_dimension_numbers<[1], [0], [0], [1], [0, 0, 1, 1], [], []>} : vector<2x128xbf16>, vector<128x256xbf16>, vector<2x256xf32> -> vector<2x256xf32>
    %263 = arith.addf %221, %262 : vector<2x256xf32>
    %264 = math.tanh %263 : vector<2x256xf32>
    %265 = arith.negf %263 : vector<2x256xf32>
    %266 = math.exp %265 : vector<2x256xf32>
    %cst_53 = arith.constant 1.000000e+00 : f32
    %267 = vector.broadcast %cst_53 : f32 to vector<2x256xf32>
    %268 = arith.addf %267, %266 : vector<2x256xf32>
    %269 = arith.divf %267, %268 : vector<2x256xf32>
    %270 = arith.select %23, %264, %269 : vector<2x256xi1>, vector<2x256xf32>
    %271 = vector.extract_strided_slice %270 {offsets = [0, 0], sizes = [2, 128], strides = [1, 1]} : vector<2x256xf32> to vector<2x128xf32>
    %272 = vector.extract_strided_slice %270 {offsets = [0, 128], sizes = [2, 128], strides = [1, 1]} : vector<2x256xf32> to vector<2x128xf32>
    %273 = arith.select %26, %272, %258 : vector<2x128xi1>, vector<2x128xf32>
    %274 = arith.mulf %271, %273 : vector<2x128xf32>
    %c64_i32_54 = arith.constant 64 : i32
    %275 = tpu.dynamic_rotate %274 by %c64_i32_54 dim 1 : vector<2x128xf32>, i32 -> vector<2x128xf32>
    %276 = arith.addf %274, %275 : vector<2x128xf32>
    %277 = math.tanh %276 : vector<2x128xf32>
    %278 = arith.mulf %272, %277 : vector<2x128xf32>
    %279 = arith.truncf %278 : vector<2x128xf32> to vector<2x128xbf16>
    %cst_55 = arith.constant dense<0.000000e+00> : vector<2x256xf32>
    %280 = tpu.matmul %279, %240, %cst_55 {dimension_numbers = #tpu.dot_dimension_numbers<[1], [0], [0], [1], [0, 0, 1, 1], [], []>} : vector<2x128xbf16>, vector<128x256xbf16>, vector<2x256xf32> -> vector<2x256xf32>
    %281 = arith.addf %224, %280 : vector<2x256xf32>
    %282 = math.tanh %281 : vector<2x256xf32>
    %283 = arith.negf %281 : vector<2x256xf32>
    %284 = math.exp %283 : vector<2x256xf32>
    %cst_56 = arith.constant 1.000000e+00 : f32
    %285 = vector.broadcast %cst_56 : f32 to vector<2x256xf32>
    %286 = arith.addf %285, %284 : vector<2x256xf32>
    %287 = arith.divf %285, %286 : vector<2x256xf32>
    %288 = arith.select %23, %282, %287 : vector<2x256xi1>, vector<2x256xf32>
    %289 = vector.extract_strided_slice %288 {offsets = [0, 0], sizes = [2, 128], strides = [1, 1]} : vector<2x256xf32> to vector<2x128xf32>
    %290 = vector.extract_strided_slice %288 {offsets = [0, 128], sizes = [2, 128], strides = [1, 1]} : vector<2x256xf32> to vector<2x128xf32>
    %291 = arith.select %26, %290, %276 : vector<2x128xi1>, vector<2x128xf32>
    %292 = arith.mulf %289, %291 : vector<2x128xf32>
    %c64_i32_57 = arith.constant 64 : i32
    %293 = tpu.dynamic_rotate %292 by %c64_i32_57 dim 1 : vector<2x128xf32>, i32 -> vector<2x128xf32>
    %294 = arith.addf %292, %293 : vector<2x128xf32>
    %295 = math.tanh %294 : vector<2x128xf32>
    %296 = arith.mulf %290, %295 : vector<2x128xf32>
    %297 = arith.truncf %296 : vector<2x128xf32> to vector<2x128xbf16>
    %cst_58 = arith.constant dense<0.000000e+00> : vector<2x256xf32>
    %298 = tpu.matmul %297, %240, %cst_58 {dimension_numbers = #tpu.dot_dimension_numbers<[1], [0], [0], [1], [0, 0, 1, 1], [], []>} : vector<2x128xbf16>, vector<128x256xbf16>, vector<2x256xf32> -> vector<2x256xf32>
    %299 = arith.addf %227, %298 : vector<2x256xf32>
    %300 = math.tanh %299 : vector<2x256xf32>
    %301 = arith.negf %299 : vector<2x256xf32>
    %302 = math.exp %301 : vector<2x256xf32>
    %cst_59 = arith.constant 1.000000e+00 : f32
    %303 = vector.broadcast %cst_59 : f32 to vector<2x256xf32>
    %304 = arith.addf %303, %302 : vector<2x256xf32>
    %305 = arith.divf %303, %304 : vector<2x256xf32>
    %306 = arith.select %23, %300, %305 : vector<2x256xi1>, vector<2x256xf32>
    %307 = vector.extract_strided_slice %306 {offsets = [0, 0], sizes = [2, 128], strides = [1, 1]} : vector<2x256xf32> to vector<2x128xf32>
    %308 = vector.extract_strided_slice %306 {offsets = [0, 128], sizes = [2, 128], strides = [1, 1]} : vector<2x256xf32> to vector<2x128xf32>
    %309 = arith.select %26, %308, %294 : vector<2x128xi1>, vector<2x128xf32>
    %310 = arith.mulf %307, %309 : vector<2x128xf32>
    %c64_i32_60 = arith.constant 64 : i32
    %311 = tpu.dynamic_rotate %310 by %c64_i32_60 dim 1 : vector<2x128xf32>, i32 -> vector<2x128xf32>
    %312 = arith.addf %310, %311 : vector<2x128xf32>
    %313 = math.tanh %312 : vector<2x128xf32>
    %314 = arith.mulf %308, %313 : vector<2x128xf32>
    %315 = arith.truncf %314 : vector<2x128xf32> to vector<2x128xbf16>
    %cst_61 = arith.constant dense<0.000000e+00> : vector<2x256xf32>
    %316 = tpu.matmul %315, %240, %cst_61 {dimension_numbers = #tpu.dot_dimension_numbers<[1], [0], [0], [1], [0, 0, 1, 1], [], []>} : vector<2x128xbf16>, vector<128x256xbf16>, vector<2x256xf32> -> vector<2x256xf32>
    %317 = arith.addf %230, %316 : vector<2x256xf32>
    %318 = math.tanh %317 : vector<2x256xf32>
    %319 = arith.negf %317 : vector<2x256xf32>
    %320 = math.exp %319 : vector<2x256xf32>
    %cst_62 = arith.constant 1.000000e+00 : f32
    %321 = vector.broadcast %cst_62 : f32 to vector<2x256xf32>
    %322 = arith.addf %321, %320 : vector<2x256xf32>
    %323 = arith.divf %321, %322 : vector<2x256xf32>
    %324 = arith.select %23, %318, %323 : vector<2x256xi1>, vector<2x256xf32>
    %325 = vector.extract_strided_slice %324 {offsets = [0, 0], sizes = [2, 128], strides = [1, 1]} : vector<2x256xf32> to vector<2x128xf32>
    %326 = vector.extract_strided_slice %324 {offsets = [0, 128], sizes = [2, 128], strides = [1, 1]} : vector<2x256xf32> to vector<2x128xf32>
    %327 = arith.select %26, %326, %312 : vector<2x128xi1>, vector<2x128xf32>
    %328 = arith.mulf %325, %327 : vector<2x128xf32>
    %c64_i32_63 = arith.constant 64 : i32
    %329 = tpu.dynamic_rotate %328 by %c64_i32_63 dim 1 : vector<2x128xf32>, i32 -> vector<2x128xf32>
    %330 = arith.addf %328, %329 : vector<2x128xf32>
    %331 = math.tanh %330 : vector<2x128xf32>
    %332 = arith.mulf %326, %331 : vector<2x128xf32>
    %333 = arith.truncf %332 : vector<2x128xf32> to vector<2x128xbf16>
    %cst_64 = arith.constant dense<0.000000e+00> : vector<2x256xf32>
    %334 = tpu.matmul %333, %240, %cst_64 {dimension_numbers = #tpu.dot_dimension_numbers<[1], [0], [0], [1], [0, 0, 1, 1], [], []>} : vector<2x128xbf16>, vector<128x256xbf16>, vector<2x256xf32> -> vector<2x256xf32>
    %335 = arith.addf %233, %334 : vector<2x256xf32>
    %336 = math.tanh %335 : vector<2x256xf32>
    %337 = arith.negf %335 : vector<2x256xf32>
    %338 = math.exp %337 : vector<2x256xf32>
    %cst_65 = arith.constant 1.000000e+00 : f32
    %339 = vector.broadcast %cst_65 : f32 to vector<2x256xf32>
    %340 = arith.addf %339, %338 : vector<2x256xf32>
    %341 = arith.divf %339, %340 : vector<2x256xf32>
    %342 = arith.select %23, %336, %341 : vector<2x256xi1>, vector<2x256xf32>
    %343 = vector.extract_strided_slice %342 {offsets = [0, 0], sizes = [2, 128], strides = [1, 1]} : vector<2x256xf32> to vector<2x128xf32>
    %344 = vector.extract_strided_slice %342 {offsets = [0, 128], sizes = [2, 128], strides = [1, 1]} : vector<2x256xf32> to vector<2x128xf32>
    %345 = arith.select %26, %344, %330 : vector<2x128xi1>, vector<2x128xf32>
    %346 = arith.mulf %343, %345 : vector<2x128xf32>
    %c64_i32_66 = arith.constant 64 : i32
    %347 = tpu.dynamic_rotate %346 by %c64_i32_66 dim 1 : vector<2x128xf32>, i32 -> vector<2x128xf32>
    %348 = arith.addf %346, %347 : vector<2x128xf32>
    %349 = math.tanh %348 : vector<2x128xf32>
    %350 = arith.mulf %344, %349 : vector<2x128xf32>
    %351 = arith.truncf %350 : vector<2x128xf32> to vector<2x128xbf16>
    %cst_67 = arith.constant dense<0.000000e+00> : vector<2x256xf32>
    %352 = tpu.matmul %351, %240, %cst_67 {dimension_numbers = #tpu.dot_dimension_numbers<[1], [0], [0], [1], [0, 0, 1, 1], [], []>} : vector<2x128xbf16>, vector<128x256xbf16>, vector<2x256xf32> -> vector<2x256xf32>
    %353 = arith.addf %236, %352 : vector<2x256xf32>
    %354 = math.tanh %353 : vector<2x256xf32>
    %355 = arith.negf %353 : vector<2x256xf32>
    %356 = math.exp %355 : vector<2x256xf32>
    %cst_68 = arith.constant 1.000000e+00 : f32
    %357 = vector.broadcast %cst_68 : f32 to vector<2x256xf32>
    %358 = arith.addf %357, %356 : vector<2x256xf32>
    %359 = arith.divf %357, %358 : vector<2x256xf32>
    %360 = arith.select %23, %354, %359 : vector<2x256xi1>, vector<2x256xf32>
    %361 = vector.extract_strided_slice %360 {offsets = [0, 0], sizes = [2, 128], strides = [1, 1]} : vector<2x256xf32> to vector<2x128xf32>
    %362 = vector.extract_strided_slice %360 {offsets = [0, 128], sizes = [2, 128], strides = [1, 1]} : vector<2x256xf32> to vector<2x128xf32>
    %363 = arith.select %26, %362, %348 : vector<2x128xi1>, vector<2x128xf32>
    %364 = arith.mulf %361, %363 : vector<2x128xf32>
    %c64_i32_69 = arith.constant 64 : i32
    %365 = tpu.dynamic_rotate %364 by %c64_i32_69 dim 1 : vector<2x128xf32>, i32 -> vector<2x128xf32>
    %366 = arith.addf %364, %365 : vector<2x128xf32>
    %367 = math.tanh %366 : vector<2x128xf32>
    %368 = arith.mulf %362, %367 : vector<2x128xf32>
    %369 = arith.truncf %368 : vector<2x128xf32> to vector<2x128xbf16>
    %cst_70 = arith.constant dense<0.000000e+00> : vector<2x256xf32>
    %370 = tpu.matmul %369, %240, %cst_70 {dimension_numbers = #tpu.dot_dimension_numbers<[1], [0], [0], [1], [0, 0, 1, 1], [], []>} : vector<2x128xbf16>, vector<128x256xbf16>, vector<2x256xf32> -> vector<2x256xf32>
    %371 = arith.addf %239, %370 : vector<2x256xf32>
    %372 = math.tanh %371 : vector<2x256xf32>
    %373 = arith.negf %371 : vector<2x256xf32>
    %374 = math.exp %373 : vector<2x256xf32>
    %cst_71 = arith.constant 1.000000e+00 : f32
    %375 = vector.broadcast %cst_71 : f32 to vector<2x256xf32>
    %376 = arith.addf %375, %374 : vector<2x256xf32>
    %377 = arith.divf %375, %376 : vector<2x256xf32>
    %378 = arith.select %23, %372, %377 : vector<2x256xi1>, vector<2x256xf32>
    %379 = vector.extract_strided_slice %378 {offsets = [0, 0], sizes = [2, 128], strides = [1, 1]} : vector<2x256xf32> to vector<2x128xf32>
    %380 = vector.extract_strided_slice %378 {offsets = [0, 128], sizes = [2, 128], strides = [1, 1]} : vector<2x256xf32> to vector<2x128xf32>
    %381 = arith.select %26, %380, %366 : vector<2x128xi1>, vector<2x128xf32>
    %382 = arith.mulf %379, %381 : vector<2x128xf32>
    %c64_i32_72 = arith.constant 64 : i32
    %383 = tpu.dynamic_rotate %382 by %c64_i32_72 dim 1 : vector<2x128xf32>, i32 -> vector<2x128xf32>
    %384 = arith.addf %382, %383 : vector<2x128xf32>
    %385 = math.tanh %384 : vector<2x128xf32>
    %386 = arith.mulf %380, %385 : vector<2x128xf32>
    %c0_73 = arith.constant 0 : index
    %c0_74 = arith.constant 0 : index
    %387 = vector.load %arg8[%c0_73, %c0_74] : memref<128x4xf32, #tpu.memory_space<vmem>>, vector<128x4xf32>
    %cst_75 = arith.constant dense<0.000000e+00> : vector<2x4xf32>
    %388 = tpu.matmul %386, %387, %cst_75 {dimension_numbers = #tpu.dot_dimension_numbers<[1], [0], [0], [1], [0, 0, 1, 1], [], []>} : vector<2x128xf32>, vector<128x4xf32>, vector<2x4xf32> -> vector<2x4xf32>
    %c0_76 = arith.constant 0 : index
    %c0_77 = arith.constant 0 : index
    %389 = vector.load %arg9[%c0_76, %c0_77] : memref<1x4xf32, #tpu.memory_space<vmem>>, vector<1x4xf32>
    %390 = vector.broadcast %389 : vector<1x4xf32> to vector<2x4xf32>
    %391 = arith.addf %388, %390 : vector<2x4xf32>
    %c0_78 = arith.constant 0 : index
    %c0_79 = arith.constant 0 : index
    %392 = vector.load %arg10[%c0_78, %c0_79] : memref<2x4xf32, #tpu.memory_space<vmem>>, vector<2x4xf32>
    tpu.vector_store %arg10[%c0_78, %c0_79], %391 {strides = array<i32>} : memref<2x4xf32, #tpu.memory_space<vmem>>, vector<2x4xf32>,
    return
  }
}

</mosaic_0001>

<llo_original>
// kernel: tpu_custom_call.1
$region0: #{tpu_custom_call.1}
  #allocation0 [shape = 'u32[]', space=smem, size = 0x4, offset = 0x4, fixed_abs, tag = 'smem constant byte address 0x4 - core index']
  #allocation1 [shape = 'u32[72,128]{1,0:T(1,128)}', space=vmem, size = 0x9000, scoped, tag = 'internal scratch']
  %s0 = inlined_call_operand.hbm [shape: bf16[16,768], index: 0, kind: input, shape index: {}]
  %s1 = inlined_call_operand.hbm [shape: bf16[768,256], index: 1, kind: input, shape index: {}]
  %s2 = inlined_call_operand.vmem [shape: f32[1,256], index: 2, kind: input, shape index: {}]
  %s3 = inlined_call_operand.vmem [shape: bf16[128,256], index: 3, kind: input, shape index: {}]
  %s4 = inlined_call_operand.hbm [shape: bf16[128,256], index: 4, kind: input, shape index: {}]
  %s5 = inlined_call_operand.hbm [shape: bf16[128,256], index: 5, kind: input, shape index: {}]
  %s6 = inlined_call_operand.vmem [shape: f32[1,256], index: 6, kind: input, shape index: {}]
  %s7 = inlined_call_operand.hbm [shape: bf16[128,256], index: 7, kind: input, shape index: {}]
  %s8 = inlined_call_operand.vmem [shape: f32[128,4], index: 8, kind: input, shape index: {}]
  %s9 = inlined_call_operand.vmem [shape: f32[1,4], index: 9, kind: input, shape index: {}]
  %s10 = inlined_call_operand.hbm [shape: f32[2,4], index: 10, kind: output, shape index: {}]
  %s11 = sld [smem:[#allocation0]]
  $region70: #{tpu_custom_call.1} parent=0
    _
  %s13 = ssub.s32 1, %s11
  %s14 = scalar_select 0, %s13, %s11
  $region1: #{tpu_custom_call.1} parent=0
    #allocation2 [shape = 'u8[24576]{0}', space=vmem, size = 0x6000, scoped, tag = 'input window, operand 0, single buffered']
    #allocation3 [shape = 's32[1]{0}', space=sflag, size = 0x4, scoped, tag = 'scoped memory for tpu_custom_call.1']
    #allocation4 [shape = 's32[1]{0}', space=sflag, size = 0x4, scoped, tag = 'scoped memory for tpu_custom_call.1']
    #allocation5 [shape = 'u8[393216]{0}', space=vmem, size = 0x60000, scoped, tag = 'input window, operand 1, single buffered']
    #allocation6 [shape = 's32[1]{0}', space=sflag, size = 0x4, scoped, tag = 'scoped memory for tpu_custom_call.1']
    #allocation7 [shape = 'u8[65536]{0}', space=vmem, size = 0x10000, scoped, tag = 'input window, operand 4, single buffered']
    #allocation8 [shape = 'u8[65536]{0}', space=vmem, size = 0x10000, scoped, tag = 'input window, operand 5, single buffered']
    #allocation9 [shape = 's32[1]{0}', space=sflag, size = 0x4, scoped, tag = 'scoped memory for tpu_custom_call.1']
    #allocation10 [shape = 'u8[65536]{0}', space=vmem, size = 0x10000, scoped, tag = 'input window, operand 7, single buffered']
    #allocation11 [shape = 'u8[1024]{0}', space=vmem, size = 0x400, scoped, tag = 'output window, operand 0, single buffered']
    %15 = vsyncpa [#allocation3], 0
    %16 = vsyncpa [#allocation6], 0
    %17 = vsyncpa [#allocation9], 0
    %18 = vsyncpa [#allocation4], 0
    // Predicated region
    $region2: #{tpu_custom_call.1} parent=1 // pred_check
      _
    $region3: #{tpu_custom_call.1} parent=1 // pred_check_branch
      %20 = sbr.rel (0) target = $region5
    $region4: #{tpu_custom_call.1} parent=1 // pred_region
      %22 = vsyncadd [#allocation3], 0
      %s23 = sshll.u32 %s0, 4
      %s24 = int_to_ptr.hbm [resolvable:$true] %s23
      %s25 = sshll.u32 [#allocation2], 4
      %s26 = int_to_ptr.vmem [resolvable:$true] %s25
      %31 = dma.hbm_to_vmem [thread:$0]  %s24, 768, %s26, [#allocation3], 384, 384, 24
    $region5: #{tpu_custom_call.1} parent=1 // pred_fallthru
      _
    // Predicated region
    $region6: #{tpu_custom_call.1} parent=1 // pred_check
      _
    $region7: #{tpu_custom_call.1} parent=1 // pred_check_branch
      %33 = sbr.rel (0) target = $region9
    $region8: #{tpu_custom_call.1} parent=1 // pred_region
      %35 = vsyncadd [#allocation6], 0
      %s36 = sshll.u32 %s1, 4
      %s37 = int_to_ptr.hbm [resolvable:$true] %s36
      %s38 = sshll.u32 [#allocation5], 4
      %s39 = int_to_ptr.vmem [resolvable:$true] %s38
      %44 = dma.hbm_to_vmem [thread:$0]  %s37, 12288, %s39, [#allocation6], 128, 128, 8
    $region9: #{tpu_custom_call.1} parent=1 // pred_fallthru
      _
    // Predicated region
    $region10: #{tpu_custom_call.1} parent=1 // pred_check
      _
    $region11: #{tpu_custom_call.1} parent=1 // pred_check_branch
      %46 = sbr.rel (0) target = $region13
    $region12: #{tpu_custom_call.1} parent=1 // pred_region
      _
    $region13: #{tpu_custom_call.1} parent=1 // pred_fallthru
      _
    // Predicated region
    $region14: #{tpu_custom_call.1} parent=1 // pred_check
      _
    $region15: #{tpu_custom_call.1} parent=1 // pred_check_branch
      %48 = sbr.rel (0) target = $region17
    $region16: #{tpu_custom_call.1} parent=1 // pred_region
      _
    $region17: #{tpu_custom_call.1} parent=1 // pred_fallthru
      _
    // Predicated region
    $region18: #{tpu_custom_call.1} parent=1 // pred_check
      _
    $region19: #{tpu_custom_call.1} parent=1 // pred_check_branch
      %50 = sbr.rel (0) target = $region21
    $region20: #{tpu_custom_call.1} parent=1 // pred_region
      %52 = vsyncadd [#allocation6], 0
      %s53 = sshll.u32 %s4, 4
      %s54 = int_to_ptr.hbm [resolvable:$true] %s53
      %s55 = sshll.u32 [#allocation7], 4
      %s56 = int_to_ptr.vmem [resolvable:$true] %s55
      %61 = dma.hbm_to_vmem [thread:$0]  %s54, 2048, %s56, [#allocation6], 128, 128, 8
    $region21: #{tpu_custom_call.1} parent=1 // pred_fallthru
      _
    // Predicated region
    $region22: #{tpu_custom_call.1} parent=1 // pred_check
      _
    $region23: #{tpu_custom_call.1} parent=1 // pred_check_branch
      %63 = sbr.rel (0) target = $region25
    $region24: #{tpu_custom_call.1} parent=1 // pred_region
      %65 = vsyncadd [#allocation9], 0
      %s66 = sshll.u32 %s5, 4
      %s67 = int_to_ptr.hbm [resolvable:$true] %s66
      %s68 = sshll.u32 [#allocation8], 4
      %s69 = int_to_ptr.vmem [resolvable:$true] %s68
      %74 = dma.hbm_to_vmem [thread:$0]  %s67, 2048, %s69, [#allocation9], 128, 128, 8
    $region25: #{tpu_custom_call.1} parent=1 // pred_fallthru
      _
    // Predicated region
    $region26: #{tpu_custom_call.1} parent=1 // pred_check
      _
    $region27: #{tpu_custom_call.1} parent=1 // pred_check_branch
      %76 = sbr.rel (0) target = $region29
    $region28: #{tpu_custom_call.1} parent=1 // pred_region
      _
    $region29: #{tpu_custom_call.1} parent=1 // pred_fallthru
      _
    // Predicated region
    $region30: #{tpu_custom_call.1} parent=1 // pred_check
      _
    $region31: #{tpu_custom_call.1} parent=1 // pred_check_branch
      %78 = sbr.rel (0) target = $region33
    $region32: #{tpu_custom_call.1} parent=1 // pred_region
      %80 = vsyncadd [#allocation9], 0
      %s81 = sshll.u32 %s7, 4
      %s82 = int_to_ptr.hbm [resolvable:$true] %s81
      %s83 = sshll.u32 [#allocation10], 4
      %s84 = int_to_ptr.vmem [resolvable:$true] %s83
      %89 = dma.hbm_to_vmem [thread:$0]  %s82, 2048, %s84, [#allocation9], 128, 128, 8
    $region33: #{tpu_custom_call.1} parent=1 // pred_fallthru
      _
    // Predicated region
    $region34: #{tpu_custom_call.1} parent=1 // pred_check
      _
    $region35: #{tpu_custom_call.1} parent=1 // pred_check_branch
      %91 = sbr.rel (0) target = $region37
    $region36: #{tpu_custom_call.1} parent=1 // pred_region
      _
    $region37: #{tpu_custom_call.1} parent=1 // pred_fallthru
      _
    // Predicated region
    $region38: #{tpu_custom_call.1} parent=1 // pred_check
      _
    $region39: #{tpu_custom_call.1} parent=1 // pred_check_branch
      %93 = sbr.rel (0) target = $region41
    $region40: #{tpu_custom_call.1} parent=1 // pred_region
      _
    $region41: #{tpu_custom_call.1} parent=1 // pred_fallthru
      _
    // Predicated region
    $region42: #{tpu_custom_call.1} parent=1 // pred_check
      _
    $region43: #{tpu_custom_call.1} parent=1 // pred_check_branch
      %95 = sbr.rel (0) target = $region45
    $region44: #{tpu_custom_call.1} parent=1 // pred_region
      %97 = dma.done [#allocation3], 768
    $region45: #{tpu_custom_call.1} parent=1 // pred_fallthru
      _
    // Predicated region
    $region46: #{tpu_custom_call.1} parent=1 // pred_check
      _
    $region47: #{tpu_custom_call.1} parent=1 // pred_check_branch
      %99 = sbr.rel (0) target = $region49
    $region48: #{tpu_custom_call.1} parent=1 // pred_region
      %101 = dma.done [#allocation6], 12288
    $region49: #{tpu_custom_call.1} parent=1 // pred_fallthru
      _
    // Predicated region
    $region50: #{tpu_custom_call.1} parent=1 // pred_check
      _
    $region51: #{tpu_custom_call.1} parent=1 // pred_check_branch
      %103 = sbr.rel (0) target = $region53
    $region52: #{tpu_custom_call.1} parent=1 // pred_region
      %105 = dma.done [#allocation6], 2048
    $region53: #{tpu_custom_call.1} parent=1 // pred_fallthru
      _
    // Predicated region
    $region54: #{tpu_custom_call.1} parent=1 // pred_check
      _
    $region55: #{tpu_custom_call.1} parent=1 // pred_check_branch
      %107 = sbr.rel (0) target = $region57
    $region56: #{tpu_custom_call.1} parent=1 // pred_region
      %109 = dma.done [#allocation9], 2048
    $region57: #{tpu_custom_call.1} parent=1 // pred_fallthru
      _
    // Predicated region
    $region58: #{tpu_custom_call.1} parent=1 // pred_check
      _
    $region59: #{tpu_custom_call.1} parent=1 // pred_check_branch
      %111 = sbr.rel (0) target = $region61
    $region60: #{tpu_custom_call.1} parent=1 // pred_region
      %113 = dma.done [#allocation9], 2048
    $region61: #{tpu_custom_call.1} parent=1 // pred_fallthru
      _
    %v115 = vlaneseq
    %v116 = vand.u32 %v115, 127
    %v117 = vadd.s32 %v116, 128
    %vm118 = vcmp.lt.s32.totalorder %v116, 0
    %v119 = vsub.s32 0, %v116
    %v120 = vsel %vm118, %v119, %v116
    %v121 = vshrl.u32 %v120, 6
    %v122 = vand.u32 %v120, 63
    %v123 = vsub.s32 0, %v122
    %v124 = vsel %vm118, %v123, %v122
    %vm125 = vcmp.lt.s32.totalorder %v117, 0
    %v126 = vsub.s32 0, %v117
    %v127 = vsel %vm125, %v126, %v117
    %v128 = vshrl.u32 %v127, 6
    %v129 = vand.u32 %v127, 63
    %v130 = vsub.s32 0, %v129
    %v131 = vsel %vm125, %v130, %v129
    %vm132 = vcmp.ne.s32.totalorder %v124, 0
    %vm133 = vcmp.ne.s32.totalorder %v131, 0
    %vm134 = vcmp.lt.s32.totalorder %v124, 0
    %vm135 = vcmp.lt.s32.totalorder %v131, 0
    %vm136 = vmand %vm134, %vm132
    %vm137 = vmand %vm135, %vm133
    %v138 = vadd.s32 %v124, 64
    %v139 = vadd.s32 %v131, 64
    %v140 = vsel %vm136, %v138, %v124
    %v141 = vsel %vm137, %v139, %v131
    %vm142 = vcmp.lt.s32.totalorder %v140, 32
    %vm143 = vcmp.lt.s32.totalorder %v141, 32
    %vm144 = vcmp.ge.s32.totalorder %v116, 128
    %vm145 = vcmp.ge.s32.totalorder %v117, 128
    %vm146 = vcmp.lt.s32.totalorder %v116, 192
    %vm147 = vcmp.lt.s32.totalorder %v117, 192
    %vm148 = vmand %vm144, %vm146
    %vm149 = vmand %vm145, %vm147
    %vm150 = vcmp.lt.s32.totalorder %v116, 64
    %v151 = vld [vmem:[#allocation2] sm:$0xff]
    %v152 = vld [vmem:[#allocation2 + $0x8] sm:$0xff]
    %v153 = vld [vmem:[#allocation2 + $0x10] sm:$0xff]
    %v154 = vld [vmem:[#allocation2 + $0x18] sm:$0xff]
    %v155 = vld [vmem:[#allocation2 + $0x20] sm:$0xff]
    %v156 = vld [vmem:[#allocation2 + $0x28] sm:$0xff]
    %v157 = vld [vmem:[#allocation5] sm:$0xff]
    %v158 = vld [vmem:[#allocation5 + $0x8] sm:$0xff]
    %v159 = vld [vmem:[#allocation5 + $0x10] sm:$0xff]
    %v160 = vld [vmem:[#allocation5 + $0x18] sm:$0xff]
    %v161 = vld [vmem:[#allocation5 + $0x20] sm:$0xff]
    %v162 = vld [vmem:[#allocation5 + $0x28] sm:$0xff]
    %v163 = vld [vmem:[#allocation5 + $0x30] sm:$0xff]
    %v164 = vld [vmem:[#allocation5 + $0x38] sm:$0xff]
    %v165 = vld [vmem:[#allocation5 + $0x40] sm:$0xff]
    %v166 = vld [vmem:[#allocation5 + $0x48] sm:$0xff]
    %v167 = vld [vmem:[#allocation5 + $0x50] sm:$0xff]
    %v168 = vld [vmem:[#allocation5 + $0x58] sm:$0xff]
    %v169 = vld [vmem:[#allocation5 + $0x60] sm:$0xff]
    %v170 = vld [vmem:[#allocation5 + $0x68] sm:$0xff]
    %v171 = vld [vmem:[#allocation5 + $0x70] sm:$0xff]
    %v172 = vld [vmem:[#allocation5 + $0x78] sm:$0xff]
    %v173 = vld [vmem:[#allocation5 + $0x80] sm:$0xff]
    %v174 = vld [vmem:[#allocation5 + $0x88] sm:$0xff]
    %v175 = vld [vmem:[#allocation5 + $0x90] sm:$0xff]
    %v176 = vld [vmem:[#allocation5 + $0x98] sm:$0xff]
    %v177 = vld [vmem:[#allocation5 + $0xa0] sm:$0xff]
    %v178 = vld [vmem:[#allocation5 + $0xa8] sm:$0xff]
    %v179 = vld [vmem:[#allocation5 + $0xb0] sm:$0xff]
    %v180 = vld [vmem:[#allocation5 + $0xb8] sm:$0xff]
    %v181 = vld [vmem:[#allocation5 + $0xc0] sm:$0xff]
    %v182 = vld [vmem:[#allocation5 + $0xc8] sm:$0xff]
    %v183 = vld [vmem:[#allocation5 + $0xd0] sm:$0xff]
    %v184 = vld [vmem:[#allocation5 + $0xd8] sm:$0xff]
    %v185 = vld [vmem:[#allocation5 + $0xe0] sm:$0xff]
    %v186 = vld [vmem:[#allocation5 + $0xe8] sm:$0xff]
    %v187 = vld [vmem:[#allocation5 + $0xf0] sm:$0xff]
    %v188 = vld [vmem:[#allocation5 + $0xf8] sm:$0xff]
    %v189 = vld [vmem:[#allocation5 + $0x100] sm:$0xff]
    %v190 = vld [vmem:[#allocation5 + $0x108] sm:$0xff]
    %v191 = vld [vmem:[#allocation5 + $0x110] sm:$0xff]
    %v192 = vld [vmem:[#allocation5 + $0x118] sm:$0xff]
    %v193 = vld [vmem:[#allocation5 + $0x120] sm:$0xff]
    %v194 = vld [vmem:[#allocation5 + $0x128] sm:$0xff]
    %v195 = vld [vmem:[#allocation5 + $0x130] sm:$0xff]
    %v196 = vld [vmem:[#allocation5 + $0x138] sm:$0xff]
    %v197 = vld [vmem:[#allocation5 + $0x140] sm:$0xff]
    %v198 = vld [vmem:[#allocation5 + $0x148] sm:$0xff]
    %v199 = vld [vmem:[#allocation5 + $0x150] sm:$0xff]
    %v200 = vld [vmem:[#allocation5 + $0x158] sm:$0xff]
    %v201 = vld [vmem:[#allocation5 + $0x160] sm:$0xff]
    %v202 = vld [vmem:[#allocation5 + $0x168] sm:$0xff]
    %v203 = vld [vmem:[#allocation5 + $0x170] sm:$0xff]
    %v204 = vld [vmem:[#allocation5 + $0x178] sm:$0xff]
    %v205 = vld [vmem:[#allocation5 + $0x180] sm:$0xff]
    %v206 = vld [vmem:[#allocation5 + $0x188] sm:$0xff]
    %v207 = vld [vmem:[#allocation5 + $0x190] sm:$0xff]
    %v208 = vld [vmem:[#allocation5 + $0x198] sm:$0xff]
    %v209 = vld [vmem:[#allocation5 + $0x1a0] sm:$0xff]
    %v210 = vld [vmem:[#allocation5 + $0x1a8] sm:$0xff]
    %v211 = vld [vmem:[#allocation5 + $0x1b0] sm:$0xff]
    %v212 = vld [vmem:[#allocation5 + $0x1b8] sm:$0xff]
    %v213 = vld [vmem:[#allocation5 + $0x1c0] sm:$0xff]
    %v214 = vld [vmem:[#allocation5 + $0x1c8] sm:$0xff]
    %v215 = vld [vmem:[#allocation5 + $0x1d0] sm:$0xff]
    %v216 = vld [vmem:[#allocation5 + $0x1d8] sm:$0xff]
    %v217 = vld [vmem:[#allocation5 + $0x1e0] sm:$0xff]
    %v218 = vld [vmem:[#allocation5 + $0x1e8] sm:$0xff]
    %v219 = vld [vmem:[#allocation5 + $0x1f0] sm:$0xff]
    %v220 = vld [vmem:[#allocation5 + $0x1f8] sm:$0xff]
    %v221 = vld [vmem:[#allocation5 + $0x200] sm:$0xff]
    %v222 = vld [vmem:[#allocation5 + $0x208] sm:$0xff]
    %v223 = vld [vmem:[#allocation5 + $0x210] sm:$0xff]
    %v224 = vld [vmem:[#allocation5 + $0x218] sm:$0xff]
    %v225 = vld [vmem:[#allocation5 + $0x220] sm:$0xff]
    %v226 = vld [vmem:[#allocation5 + $0x228] sm:$0xff]
    %v227 = vld [vmem:[#allocation5 + $0x230] sm:$0xff]
    %v228 = vld [vmem:[#allocation5 + $0x238] sm:$0xff]
    %v229 = vld [vmem:[#allocation5 + $0x240] sm:$0xff]
    %v230 = vld [vmem:[#allocation5 + $0x248] sm:$0xff]
    %v231 = vld [vmem:[#allocation5 + $0x250] sm:$0xff]
    %v232 = vld [vmem:[#allocation5 + $0x258] sm:$0xff]
    %v233 = vld [vmem:[#allocation5 + $0x260] sm:$0xff]
    %v234 = vld [vmem:[#allocation5 + $0x268] sm:$0xff]
    %v235 = vld [vmem:[#allocation5 + $0x270] sm:$0xff]
    %v236 = vld [vmem:[#allocation5 + $0x278] sm:$0xff]
    %v237 = vld [vmem:[#allocation5 + $0x280] sm:$0xff]
    %v238 = vld [vmem:[#allocation5 + $0x288] sm:$0xff]
    %v239 = vld [vmem:[#allocation5 + $0x290] sm:$0xff]
    %v240 = vld [vmem:[#allocation5 + $0x298] sm:$0xff]
    %v241 = vld [vmem:[#allocation5 + $0x2a0] sm:$0xff]
    %v242 = vld [vmem:[#allocation5 + $0x2a8] sm:$0xff]
    %v243 = vld [vmem:[#allocation5 + $0x2b0] sm:$0xff]
    %v244 = vld [vmem:[#allocation5 + $0x2b8] sm:$0xff]
    %v245 = vld [vmem:[#allocation5 + $0x2c0] sm:$0xff]
    %v246 = vld [vmem:[#allocation5 + $0x2c8] sm:$0xff]
    %v247 = vld [vmem:[#allocation5 + $0x2d0] sm:$0xff]
    %v248 = vld [vmem:[#allocation5 + $0x2d8] sm:$0xff]
    %v249 = vld [vmem:[#allocation5 + $0x2e0] sm:$0xff]
    %v250 = vld [vmem:[#allocation5 + $0x2e8] sm:$0xff]
    %v251 = vld [vmem:[#allocation5 + $0x2f0] sm:$0xff]
    %v252 = vld [vmem:[#allocation5 + $0x2f8] sm:$0xff]
    %v253 = vld [vmem:[%s2] sm:$0x3]
    %v255 = vperm.slane %v253, 0
    %v256 = vperm.slane %v253, 1
    %v265 = vunpack.c.l.b16 %v151
    %v266 = vunpack.c.h.b16 %v151
    %v267 = vunpack.c.l.b16 %v152
    %v268 = vunpack.c.h.b16 %v152
    %v269 = vunpack.c.l.b16 %v153
    %v270 = vunpack.c.h.b16 %v153
    %v271 = vunpack.c.l.b16 %v154
    %v272 = vunpack.c.h.b16 %v154
    %v273 = vunpack.c.l.b16 %v155
    %v274 = vunpack.c.h.b16 %v155
    %v275 = vunpack.c.l.b16 %v156
    %v276 = vunpack.c.h.b16 %v156
    %v277 = vpack.c.b16 %v271, %v265
    %v278 = vpack.c.b16 %v272, %v266
    %v279 = vpack.c.b16 %v273, %v267
    %v280 = vpack.c.b16 %v274, %v268
    %v281 = vpack.c.b16 %v275, %v269
    %v282 = vpack.c.b16 %v276, %v270
    %v385 = vunpack.c.l.b16 %v157
    %v386 = vunpack.c.h.b16 %v157
    %v387 = vunpack.c.l.b16 %v158
    %v388 = vunpack.c.h.b16 %v158
    %v389 = vunpack.c.l.b16 %v159
    %v390 = vunpack.c.h.b16 %v159
    %v391 = vunpack.c.l.b16 %v160
    %v392 = vunpack.c.h.b16 %v160
    %v393 = vunpack.c.l.b16 %v161
    %v394 = vunpack.c.h.b16 %v161
    %v395 = vunpack.c.l.b16 %v162
    %v396 = vunpack.c.h.b16 %v162
    %v397 = vunpack.c.l.b16 %v163
    %v398 = vunpack.c.h.b16 %v163
    %v399 = vunpack.c.l.b16 %v164
    %v400 = vunpack.c.h.b16 %v164
    %v401 = vunpack.c.l.b16 %v165
    %v402 = vunpack.c.h.b16 %v165
    %v403 = vunpack.c.l.b16 %v166
    %v404 = vunpack.c.h.b16 %v166
    %v405 = vunpack.c.l.b16 %v167
    %v406 = vunpack.c.h.b16 %v167
    %v407 = vunpack.c.l.b16 %v168
    %v408 = vunpack.c.h.b16 %v168
    %v409 = vunpack.c.l.b16 %v169
    %v410 = vunpack.c.h.b16 %v169
    %v411 = vunpack.c.l.b16 %v170
    %v412 = vunpack.c.h.b16 %v170
    %v413 = vunpack.c.l.b16 %v171
    %v414 = vunpack.c.h.b16 %v171
    %v415 = vunpack.c.l.b16 %v172
    %v416 = vunpack.c.h.b16 %v172
    %v417 = vunpack.c.l.b16 %v173
    %v418 = vunpack.c.h.b16 %v173
    %v419 = vunpack.c.l.b16 %v174
    %v420 = vunpack.c.h.b16 %v174
    %v421 = vunpack.c.l.b16 %v175
    %v422 = vunpack.c.h.b16 %v175
    %v423 = vunpack.c.l.b16 %v176
    %v424 = vunpack.c.h.b16 %v176
    %v425 = vunpack.c.l.b16 %v177
    %v426 = vunpack.c.h.b16 %v177
    %v427 = vunpack.c.l.b16 %v178
    %v428 = vunpack.c.h.b16 %v178
    %v429 = vunpack.c.l.b16 %v179
    %v430 = vunpack.c.h.b16 %v179
    %v431 = vunpack.c.l.b16 %v180
    %v432 = vunpack.c.h.b16 %v180
    %v433 = vunpack.c.l.b16 %v181
    %v434 = vunpack.c.h.b16 %v181
    %v435 = vunpack.c.l.b16 %v182
    %v436 = vunpack.c.h.b16 %v182
    %v437 = vunpack.c.l.b16 %v183
    %v438 = vunpack.c.h.b16 %v183
    %v439 = vunpack.c.l.b16 %v184
    %v440 = vunpack.c.h.b16 %v184
    %v441 = vunpack.c.l.b16 %v185
    %v442 = vunpack.c.h.b16 %v185
    %v443 = vunpack.c.l.b16 %v186
    %v444 = vunpack.c.h.b16 %v186
    %v445 = vunpack.c.l.b16 %v187
    %v446 = vunpack.c.h.b16 %v187
    %v447 = vunpack.c.l.b16 %v188
    %v448 = vunpack.c.h.b16 %v188
    %v449 = vunpack.c.l.b16 %v189
    %v450 = vunpack.c.h.b16 %v189
    %v451 = vunpack.c.l.b16 %v190
    %v452 = vunpack.c.h.b16 %v190
    %v453 = vunpack.c.l.b16 %v191
    %v454 = vunpack.c.h.b16 %v191
    %v455 = vunpack.c.l.b16 %v192
    %v456 = vunpack.c.h.b16 %v192
    %v457 = vunpack.c.l.b16 %v193
    %v458 = vunpack.c.h.b16 %v193
    %v459 = vunpack.c.l.b16 %v194
    %v460 = vunpack.c.h.b16 %v194
    %v461 = vunpack.c.l.b16 %v195
    %v462 = vunpack.c.h.b16 %v195
    %v463 = vunpack.c.l.b16 %v196
    %v464 = vunpack.c.h.b16 %v196
    %v465 = vunpack.c.l.b16 %v197
    %v466 = vunpack.c.h.b16 %v197
    %v467 = vunpack.c.l.b16 %v198
    %v468 = vunpack.c.h.b16 %v198
    %v469 = vunpack.c.l.b16 %v199
    %v470 = vunpack.c.h.b16 %v199
    %v471 = vunpack.c.l.b16 %v200
    %v472 = vunpack.c.h.b16 %v200
    %v473 = vunpack.c.l.b16 %v201
    %v474 = vunpack.c.h.b16 %v201
    %v475 = vunpack.c.l.b16 %v202
    %v476 = vunpack.c.h.b16 %v202
    %v477 = vunpack.c.l.b16 %v203
    %v478 = vunpack.c.h.b16 %v203
    %v479 = vunpack.c.l.b16 %v204
    %v480 = vunpack.c.h.b16 %v204
    %v481 = vunpack.c.l.b16 %v205
    %v482 = vunpack.c.h.b16 %v205
    %v483 = vunpack.c.l.b16 %v206
    %v484 = vunpack.c.h.b16 %v206
    %v485 = vunpack.c.l.b16 %v207
    %v486 = vunpack.c.h.b16 %v207
    %v487 = vunpack.c.l.b16 %v208
    %v488 = vunpack.c.h.b16 %v208
    %v489 = vunpack.c.l.b16 %v209
    %v490 = vunpack.c.h.b16 %v209
    %v491 = vunpack.c.l.b16 %v210
    %v492 = vunpack.c.h.b16 %v210
    %v493 = vunpack.c.l.b16 %v211
    %v494 = vunpack.c.h.b16 %v211
    %v495 = vunpack.c.l.b16 %v212
    %v496 = vunpack.c.h.b16 %v212
    %v497 = vunpack.c.l.b16 %v213
    %v498 = vunpack.c.h.b16 %v213
    %v499 = vunpack.c.l.b16 %v214
    %v500 = vunpack.c.h.b16 %v214
    %v501 = vunpack.c.l.b16 %v215
    %v502 = vunpack.c.h.b16 %v215
    %v503 = vunpack.c.l.b16 %v216
    %v504 = vunpack.c.h.b16 %v216
    %v505 = vunpack.c.l.b16 %v217
    %v506 = vunpack.c.h.b16 %v217
    %v507 = vunpack.c.l.b16 %v218
    %v508 = vunpack.c.h.b16 %v218
    %v509 = vunpack.c.l.b16 %v219
    %v510 = vunpack.c.h.b16 %v219
    %v511 = vunpack.c.l.b16 %v220
    %v512 = vunpack.c.h.b16 %v220
    %v513 = vunpack.c.l.b16 %v221
    %v514 = vunpack.c.h.b16 %v221
    %v515 = vunpack.c.l.b16 %v222
    %v516 = vunpack.c.h.b16 %v222
    %v517 = vunpack.c.l.b16 %v223
    %v518 = vunpack.c.h.b16 %v223
    %v519 = vunpack.c.l.b16 %v224
    %v520 = vunpack.c.h.b16 %v224
    %v521 = vunpack.c.l.b16 %v225
    %v522 = vunpack.c.h.b16 %v225
    %v523 = vunpack.c.l.b16 %v226
    %v524 = vunpack.c.h.b16 %v226
    %v525 = vunpack.c.l.b16 %v227
    %v526 = vunpack.c.h.b16 %v227
    %v527 = vunpack.c.l.b16 %v228
    %v528 = vunpack.c.h.b16 %v228
    %v529 = vunpack.c.l.b16 %v229
    %v530 = vunpack.c.h.b16 %v229
    %v531 = vunpack.c.l.b16 %v230
    %v532 = vunpack.c.h.b16 %v230
    %v533 = vunpack.c.l.b16 %v231
    %v534 = vunpack.c.h.b16 %v231
    %v535 = vunpack.c.l.b16 %v232
    %v536 = vunpack.c.h.b16 %v232
    %v537 = vunpack.c.l.b16 %v233
    %v538 = vunpack.c.h.b16 %v233
    %v539 = vunpack.c.l.b16 %v234
    %v540 = vunpack.c.h.b16 %v234
    %v541 = vunpack.c.l.b16 %v235
    %v542 = vunpack.c.h.b16 %v235
    %v543 = vunpack.c.l.b16 %v236
    %v544 = vunpack.c.h.b16 %v236
    %v545 = vunpack.c.l.b16 %v237
    %v546 = vunpack.c.h.b16 %v237
    %v547 = vunpack.c.l.b16 %v238
    %v548 = vunpack.c.h.b16 %v238
    %v549 = vunpack.c.l.b16 %v239
    %v550 = vunpack.c.h.b16 %v239
    %v551 = vunpack.c.l.b16 %v240
    %v552 = vunpack.c.h.b16 %v240
    %v553 = vunpack.c.l.b16 %v241
    %v554 = vunpack.c.h.b16 %v241
    %v555 = vunpack.c.l.b16 %v242
    %v556 = vunpack.c.h.b16 %v242
    %v557 = vunpack.c.l.b16 %v243
    %v558 = vunpack.c.h.b16 %v243
    %v559 = vunpack.c.l.b16 %v244
    %v560 = vunpack.c.h.b16 %v244
    %v561 = vunpack.c.l.b16 %v245
    %v562 = vunpack.c.h.b16 %v245
    %v563 = vunpack.c.l.b16 %v246
    %v564 = vunpack.c.h.b16 %v246
    %v565 = vunpack.c.l.b16 %v247
    %v566 = vunpack.c.h.b16 %v247
    %v567 = vunpack.c.l.b16 %v248
    %v568 = vunpack.c.h.b16 %v248
    %v569 = vunpack.c.l.b16 %v249
    %v570 = vunpack.c.h.b16 %v249
    %v571 = vunpack.c.l.b16 %v250
    %v572 = vunpack.c.h.b16 %v250
    %v573 = vunpack.c.l.b16 %v251
    %v574 = vunpack.c.h.b16 %v251
    %v575 = vunpack.c.l.b16 %v252
    %v576 = vunpack.c.h.b16 %v252
    %v577 = vpack.c.b16 %v387, %v385
    %v578 = vpack.c.b16 %v388, %v386
    %v579 = vpack.c.b16 %v391, %v389
    %v580 = vpack.c.b16 %v392, %v390
    %v581 = vpack.c.b16 %v395, %v393
    %v582 = vpack.c.b16 %v396, %v394
    %v583 = vpack.c.b16 %v399, %v397
    %v584 = vpack.c.b16 %v400, %v398
    %v585 = vpack.c.b16 %v403, %v401
    %v586 = vpack.c.b16 %v404, %v402
    %v587 = vpack.c.b16 %v407, %v405
    %v588 = vpack.c.b16 %v408, %v406
    %v589 = vpack.c.b16 %v411, %v409
    %v590 = vpack.c.b16 %v412, %v410
    %v591 = vpack.c.b16 %v415, %v413
    %v592 = vpack.c.b16 %v416, %v414
    %v593 = vpack.c.b16 %v419, %v417
    %v594 = vpack.c.b16 %v420, %v418
    %v595 = vpack.c.b16 %v423, %v421
    %v596 = vpack.c.b16 %v424, %v422
    %v597 = vpack.c.b16 %v427, %v425
    %v598 = vpack.c.b16 %v428, %v426
    %v599 = vpack.c.b16 %v431, %v429
    %v600 = vpack.c.b16 %v432, %v430
    %v601 = vpack.c.b16 %v435, %v433
    %v602 = vpack.c.b16 %v436, %v434
    %v603 = vpack.c.b16 %v439, %v437
    %v604 = vpack.c.b16 %v440, %v438
    %v605 = vpack.c.b16 %v443, %v441
    %v606 = vpack.c.b16 %v444, %v442
    %v607 = vpack.c.b16 %v447, %v445
    %v608 = vpack.c.b16 %v448, %v446
    %v609 = vpack.c.b16 %v451, %v449
    %v610 = vpack.c.b16 %v452, %v450
    %v611 = vpack.c.b16 %v455, %v453
    %v612 = vpack.c.b16 %v456, %v454
    %v613 = vpack.c.b16 %v459, %v457
    %v614 = vpack.c.b16 %v460, %v458
    %v615 = vpack.c.b16 %v463, %v461
    %v616 = vpack.c.b16 %v464, %v462
    %v617 = vpack.c.b16 %v467, %v465
    %v618 = vpack.c.b16 %v468, %v466
    %v619 = vpack.c.b16 %v471, %v469
    %v620 = vpack.c.b16 %v472, %v470
    %v621 = vpack.c.b16 %v475, %v473
    %v622 = vpack.c.b16 %v476, %v474
    %v623 = vpack.c.b16 %v479, %v477
    %v624 = vpack.c.b16 %v480, %v478
    %v625 = vpack.c.b16 %v483, %v481
    %v626 = vpack.c.b16 %v484, %v482
    %v627 = vpack.c.b16 %v487, %v485
    %v628 = vpack.c.b16 %v488, %v486
    %v629 = vpack.c.b16 %v491, %v489
    %v630 = vpack.c.b16 %v492, %v490
    %v631 = vpack.c.b16 %v495, %v493
    %v632 = vpack.c.b16 %v496, %v494
    %v633 = vpack.c.b16 %v499, %v497
    %v634 = vpack.c.b16 %v500, %v498
    %v635 = vpack.c.b16 %v503, %v501
    %v636 = vpack.c.b16 %v504, %v502
    %v637 = vpack.c.b16 %v507, %v505
    %v638 = vpack.c.b16 %v508, %v506
    %v639 = vpack.c.b16 %v511, %v509
    %v640 = vpack.c.b16 %v512, %v510
    %v641 = vpack.c.b16 %v515, %v513
    %v642 = vpack.c.b16 %v516, %v514
    %v643 = vpack.c.b16 %v519, %v517
    %v644 = vpack.c.b16 %v520, %v518
    %v645 = vpack.c.b16 %v523, %v521
    %v646 = vpack.c.b16 %v524, %v522
    %v647 = vpack.c.b16 %v527, %v525
    %v648 = vpack.c.b16 %v528, %v526
    %v649 = vpack.c.b16 %v531, %v529
    %v650 = vpack.c.b16 %v532, %v530
    %v651 = vpack.c.b16 %v535, %v533
    %v652 = vpack.c.b16 %v536, %v534
    %v653 = vpack.c.b16 %v539, %v537
    %v654 = vpack.c.b16 %v540, %v538
    %v655 = vpack.c.b16 %v543, %v541
    %v656 = vpack.c.b16 %v544, %v542
    %v657 = vpack.c.b16 %v547, %v545
    %v658 = vpack.c.b16 %v548, %v546
    %v659 = vpack.c.b16 %v551, %v549
    %v660 = vpack.c.b16 %v552, %v550
    %v661 = vpack.c.b16 %v555, %v553
    %v662 = vpack.c.b16 %v556, %v554
    %v663 = vpack.c.b16 %v559, %v557
    %v664 = vpack.c.b16 %v560, %v558
    %v665 = vpack.c.b16 %v563, %v561
    %v666 = vpack.c.b16 %v564, %v562
    %v667 = vpack.c.b16 %v567, %v565
    %v668 = vpack.c.b16 %v568, %v566
    %v669 = vpack.c.b16 %v571, %v569
    %v670 = vpack.c.b16 %v572, %v570
    %v671 = vpack.c.b16 %v575, %v573
    %v672 = vpack.c.b16 %v576, %v574
    %769 = vmatpush.bf16.msra.mxu0 %v591
    %770 = vmatpush.bf16.msra.mxu0 %v589
    %771 = vmatpush.bf16.msra.mxu0 %v587
    %772 = vmatpush.bf16.msra.mxu0 %v585
    %773 = vmatpush.bf16.msra.mxu0 %v583
    %774 = vmatpush.bf16.msra.mxu0 %v581
    %775 = vmatpush.bf16.msra.mxu0 %v579
    %776 = vmatpush.bf16.msra.mxu0 %v577
    %777 = vmatmul.bf16.gmra.mxu0 %v277
    %v778 = vpop.f32.mrf.mxu0
    %v779 = vadd.f32 %v255, %v778
    %v780 = vpop.f32.mrf.mxu0
    %v781 = vadd.f32 %v255, %v780
    %782 = vdwg.mxu0
    %783 = vmatpush.bf16.msra.mxu0 %v607
    %784 = vmatpush.bf16.msra.mxu0 %v605
    %785 = vmatpush.bf16.msra.mxu0 %v603
    %786 = vmatpush.bf16.msra.mxu0 %v601
    %787 = vmatpush.bf16.msra.mxu0 %v599
    %788 = vmatpush.bf16.msra.mxu0 %v597
    %789 = vmatpush.bf16.msra.mxu0 %v595
    %790 = vmatpush.bf16.msra.mxu0 %v593
    %791 = vmatmul.bf16.gmra.mxu0 %v278
    %v792 = vpop.f32.mrf.mxu0
    %v793 = vadd.f32 %v779, %v792
    %v794 = vpop.f32.mrf.mxu0
    %v795 = vadd.f32 %v781, %v794
    %796 = vdwg.mxu0
    %797 = vmatpush.bf16.msra.mxu0 %v623
    %798 = vmatpush.bf16.msra.mxu0 %v621
    %799 = vmatpush.bf16.msra.mxu0 %v619
    %800 = vmatpush.bf16.msra.mxu0 %v617
    %801 = vmatpush.bf16.msra.mxu0 %v615
    %802 = vmatpush.bf16.msra.mxu0 %v613
    %803 = vmatpush.bf16.msra.mxu0 %v611
    %804 = vmatpush.bf16.msra.mxu0 %v609
    %805 = vmatmul.bf16.gmra.mxu0 %v279
    %v806 = vpop.f32.mrf.mxu0
    %v807 = vadd.f32 %v793, %v806
    %v808 = vpop.f32.mrf.mxu0
    %v809 = vadd.f32 %v795, %v808
    %810 = vdwg.mxu0
    %811 = vmatpush.bf16.msra.mxu0 %v639
    %812 = vmatpush.bf16.msra.mxu0 %v637
    %813 = vmatpush.bf16.msra.mxu0 %v635
    %814 = vmatpush.bf16.msra.mxu0 %v633
    %815 = vmatpush.bf16.msra.mxu0 %v631
    %816 = vmatpush.bf16.msra.mxu0 %v629
    %817 = vmatpush.bf16.msra.mxu0 %v627
    %818 = vmatpush.bf16.msra.mxu0 %v625
    %819 = vmatmul.bf16.gmra.mxu0 %v280
    %v820 = vpop.f32.mrf.mxu0
    %v821 = vadd.f32 %v807, %v820
    %v822 = vpop.f32.mrf.mxu0
    %v823 = vadd.f32 %v809, %v822
    %824 = vdwg.mxu0
    %825 = vmatpush.bf16.msra.mxu0 %v655
    %826 = vmatpush.bf16.msra.mxu0 %v653
    %827 = vmatpush.bf16.msra.mxu0 %v651
    %828 = vmatpush.bf16.msra.mxu0 %v649
    %829 = vmatpush.bf16.msra.mxu0 %v647
    %830 = vmatpush.bf16.msra.mxu0 %v645
    %831 = vmatpush.bf16.msra.mxu0 %v643
    %832 = vmatpush.bf16.msra.mxu0 %v641
    %833 = vmatmul.bf16.gmra.mxu0 %v281
    %v834 = vpop.f32.mrf.mxu0
    %v835 = vadd.f32 %v821, %v834
    %v836 = vpop.f32.mrf.mxu0
    %v837 = vadd.f32 %v823, %v836
    %838 = vdwg.mxu0
    %839 = vmatpush.bf16.msra.mxu0 %v671
    %840 = vmatpush.bf16.msra.mxu0 %v669
    %841 = vmatpush.bf16.msra.mxu0 %v667
    %842 = vmatpush.bf16.msra.mxu0 %v665
    %843 = vmatpush.bf16.msra.mxu0 %v663
    %844 = vmatpush.bf16.msra.mxu0 %v661
    %845 = vmatpush.bf16.msra.mxu0 %v659
    %846 = vmatpush.bf16.msra.mxu0 %v657
    %847 = vmatmul.bf16.gmra.mxu0 %v282
    %v848 = vpop.f32.mrf.mxu0
    %v849 = vadd.f32 %v835, %v848
    %v850 = vpop.f32.mrf.mxu0
    %v851 = vadd.f32 %v837, %v850
    %852 = vdwg.mxu0
    %853 = vmatpush.bf16.msra.mxu0 %v592
    %854 = vmatpush.bf16.msra.mxu0 %v590
    %855 = vmatpush.bf16.msra.mxu0 %v588
    %856 = vmatpush.bf16.msra.mxu0 %v586
    %857 = vmatpush.bf16.msra.mxu0 %v584
    %858 = vmatpush.bf16.msra.mxu0 %v582
    %859 = vmatpush.bf16.msra.mxu0 %v580
    %860 = vmatpush.bf16.msra.mxu0 %v578
    %861 = vmatmul.bf16.gmra.mxu0 %v277
    %v862 = vpop.f32.mrf.mxu0
    %v863 = vadd.f32 %v256, %v862
    %v864 = vpop.f32.mrf.mxu0
    %v865 = vadd.f32 %v256, %v864
    %866 = vdwg.mxu0
    %867 = vmatpush.bf16.msra.mxu0 %v608
    %868 = vmatpush.bf16.msra.mxu0 %v606
    %869 = vmatpush.bf16.msra.mxu0 %v604
    %870 = vmatpush.bf16.msra.mxu0 %v602
    %871 = vmatpush.bf16.msra.mxu0 %v600
    %872 = vmatpush.bf16.msra.mxu0 %v598
    %873 = vmatpush.bf16.msra.mxu0 %v596
    %874 = vmatpush.bf16.msra.mxu0 %v594
    %875 = vmatmul.bf16.gmra.mxu0 %v278
    %v876 = vpop.f32.mrf.mxu0
    %v877 = vadd.f32 %v863, %v876
    %v878 = vpop.f32.mrf.mxu0
    %v879 = vadd.f32 %v865, %v878
    %880 = vdwg.mxu0
    %881 = vmatpush.bf16.msra.mxu0 %v624
    %882 = vmatpush.bf16.msra.mxu0 %v622
    %883 = vmatpush.bf16.msra.mxu0 %v620
    %884 = vmatpush.bf16.msra.mxu0 %v618
    %885 = vmatpush.bf16.msra.mxu0 %v616
    %886 = vmatpush.bf16.msra.mxu0 %v614
    %887 = vmatpush.bf16.msra.mxu0 %v612
    %888 = vmatpush.bf16.msra.mxu0 %v610
    %889 = vmatmul.bf16.gmra.mxu0 %v279
    %v890 = vpop.f32.mrf.mxu0
    %v891 = vadd.f32 %v877, %v890
    %v892 = vpop.f32.mrf.mxu0
    %v893 = vadd.f32 %v879, %v892
    %894 = vdwg.mxu0
    %895 = vmatpush.bf16.msra.mxu0 %v640
    %896 = vmatpush.bf16.msra.mxu0 %v638
    %897 = vmatpush.bf16.msra.mxu0 %v636
    %898 = vmatpush.bf16.msra.mxu0 %v634
    %899 = vmatpush.bf16.msra.mxu0 %v632
    %900 = vmatpush.bf16.msra.mxu0 %v630
    %901 = vmatpush.bf16.msra.mxu0 %v628
    %902 = vmatpush.bf16.msra.mxu0 %v626
    %903 = vmatmul.bf16.gmra.mxu0 %v280
    %v904 = vpop.f32.mrf.mxu0
    %v905 = vadd.f32 %v891, %v904
    %v906 = vpop.f32.mrf.mxu0
    %v907 = vadd.f32 %v893, %v906
    %908 = vdwg.mxu0
    %909 = vmatpush.bf16.msra.mxu0 %v656
    %910 = vmatpush.bf16.msra.mxu0 %v654
    %911 = vmatpush.bf16.msra.mxu0 %v652
    %912 = vmatpush.bf16.msra.mxu0 %v650
    %913 = vmatpush.bf16.msra.mxu0 %v648
    %914 = vmatpush.bf16.msra.mxu0 %v646
    %915 = vmatpush.bf16.msra.mxu0 %v644
    %916 = vmatpush.bf16.msra.mxu0 %v642
    %917 = vmatmul.bf16.gmra.mxu0 %v281
    %v918 = vpop.f32.mrf.mxu0
    %v919 = vadd.f32 %v905, %v918
    %v920 = vpop.f32.mrf.mxu0
    %v921 = vadd.f32 %v907, %v920
    %922 = vdwg.mxu0
    %923 = vmatpush.bf16.msra.mxu0 %v672
    %924 = vmatpush.bf16.msra.mxu0 %v670
    %925 = vmatpush.bf16.msra.mxu0 %v668
    %926 = vmatpush.bf16.msra.mxu0 %v666
    %927 = vmatpush.bf16.msra.mxu0 %v664
    %928 = vmatpush.bf16.msra.mxu0 %v662
    %929 = vmatpush.bf16.msra.mxu0 %v660
    %930 = vmatpush.bf16.msra.mxu0 %v658
    %931 = vmatmul.bf16.gmra.mxu0 %v282
    %v932 = vpop.f32.mrf.mxu0
    %v933 = vadd.f32 %v919, %v932
    %v934 = vpop.f32.mrf.mxu0
    %v935 = vadd.f32 %v921, %v934
    %936 = vdwg.mxu0
    %v939 = vrot.slane %v851, 6
    %v940 = vrot.slane %v935, 6
    %v943 = vsel %vm142, %v849, %v939
    %v944 = vsel %vm143, %v933, %v940
    %v945 = vrot.slane %v851, 2
    %v946 = vrot.slane %v935, 2
    %v949 = vsel %vm142, %v849, %v945
    %v950 = vsel %vm143, %v933, %v946
    %v953 = vrot.slane %v849, 6
    %v954 = vrot.slane %v933, 6
    %v957 = vsel %vm142, %v851, %v953
    %v958 = vsel %vm143, %v935, %v954
    %v959 = vrot.slane %v849, 2
    %v960 = vrot.slane %v933, 2
    %v963 = vsel %vm142, %v851, %v959
    %v964 = vsel %vm143, %v935, %v960
    %v965 = vld [vmem:[%s3] sm:$0xff]
    %v966 = vld [vmem:[%s3 + $0x8] sm:$0xff]
    %v967 = vld [vmem:[%s3 + $0x10] sm:$0xff]
    %v968 = vld [vmem:[%s3 + $0x18] sm:$0xff]
    %v969 = vld [vmem:[%s3 + $0x20] sm:$0xff]
    %v970 = vld [vmem:[%s3 + $0x28] sm:$0xff]
    %v971 = vld [vmem:[%s3 + $0x30] sm:$0xff]
    %v972 = vld [vmem:[%s3 + $0x38] sm:$0xff]
    %v973 = vld [vmem:[%s3 + $0x40] sm:$0xff]
    %v974 = vld [vmem:[%s3 + $0x48] sm:$0xff]
    %v975 = vld [vmem:[%s3 + $0x50] sm:$0xff]
    %v976 = vld [vmem:[%s3 + $0x58] sm:$0xff]
    %v977 = vld [vmem:[%s3 + $0x60] sm:$0xff]
    %v978 = vld [vmem:[%s3 + $0x68] sm:$0xff]
    %v979 = vld [vmem:[%s3 + $0x70] sm:$0xff]
    %v980 = vld [vmem:[%s3 + $0x78] sm:$0xff]
    %v997 = vunpack.c.l.b16 %v965
    %v998 = vunpack.c.h.b16 %v965
    %v999 = vunpack.c.l.b16 %v966
    %v1000 = vunpack.c.h.b16 %v966
    %v1001 = vunpack.c.l.b16 %v967
    %v1002 = vunpack.c.h.b16 %v967
    %v1003 = vunpack.c.l.b16 %v968
    %v1004 = vunpack.c.h.b16 %v968
    %v1005 = vunpack.c.l.b16 %v969
    %v1006 = vunpack.c.h.b16 %v969
    %v1007 = vunpack.c.l.b16 %v970
    %v1008 = vunpack.c.h.b16 %v970
    %v1009 = vunpack.c.l.b16 %v971
    %v1010 = vunpack.c.h.b16 %v971
    %v1011 = vunpack.c.l.b16 %v972
    %v1012 = vunpack.c.h.b16 %v972
    %v1013 = vunpack.c.l.b16 %v973
    %v1014 = vunpack.c.h.b16 %v973
    %v1015 = vunpack.c.l.b16 %v974
    %v1016 = vunpack.c.h.b16 %v974
    %v1017 = vunpack.c.l.b16 %v975
    %v1018 = vunpack.c.h.b16 %v975
    %v1019 = vunpack.c.l.b16 %v976
    %v1020 = vunpack.c.h.b16 %v976
    %v1021 = vunpack.c.l.b16 %v977
    %v1022 = vunpack.c.h.b16 %v977
    %v1023 = vunpack.c.l.b16 %v978
    %v1024 = vunpack.c.h.b16 %v978
    %v1025 = vunpack.c.l.b16 %v979
    %v1026 = vunpack.c.h.b16 %v979
    %v1027 = vunpack.c.l.b16 %v980
    %v1028 = vunpack.c.h.b16 %v980
    %v1029 = vpack.c.b16 %v999, %v997
    %v1030 = vpack.c.b16 %v1000, %v998
    %v1031 = vpack.c.b16 %v1003, %v1001
    %v1032 = vpack.c.b16 %v1004, %v1002
    %v1033 = vpack.c.b16 %v1007, %v1005
    %v1034 = vpack.c.b16 %v1008, %v1006
    %v1035 = vpack.c.b16 %v1011, %v1009
    %v1036 = vpack.c.b16 %v1012, %v1010
    %v1037 = vpack.c.b16 %v1015, %v1013
    %v1038 = vpack.c.b16 %v1016, %v1014
    %v1039 = vpack.c.b16 %v1019, %v1017
    %v1040 = vpack.c.b16 %v1020, %v1018
    %v1041 = vpack.c.b16 %v1023, %v1021
    %v1042 = vpack.c.b16 %v1024, %v1022
    %v1043 = vpack.c.b16 %v1027, %v1025
    %v1044 = vpack.c.b16 %v1028, %v1026
    %1061 = vmatpush.bf16.msra.mxu0 %v1043
    %1062 = vmatpush.bf16.msra.mxu0 %v1041
    %1063 = vmatpush.bf16.msra.mxu0 %v1039
    %1064 = vmatpush.bf16.msra.mxu0 %v1037
    %1065 = vmatpush.bf16.msra.mxu0 %v1035
    %1066 = vmatpush.bf16.msra.mxu0 %v1033
    %1067 = vmatpush.bf16.msra.mxu0 %v1031
    %1068 = vmatpush.bf16.msra.mxu0 %v1029
    %1069 = vmatmul.bf16.gmra.mxu0 0
    %v1070 = vpop.f32.mrf.mxu0
    %v1071 = vadd.f32 0.0, %v1070
    %v1072 = vpop.f32.mrf.mxu0
    %1073 = vdwg.mxu0
    %1074 = vmatpush.bf16.msra.mxu0 %v1044
    %1075 = vmatpush.bf16.msra.mxu0 %v1042
    %1076 = vmatpush.bf16.msra.mxu0 %v1040
    %1077 = vmatpush.bf16.msra.mxu0 %v1038
    %1078 = vmatpush.bf16.msra.mxu0 %v1036
    %1079 = vmatpush.bf16.msra.mxu0 %v1034
    %1080 = vmatpush.bf16.msra.mxu0 %v1032
    %1081 = vmatpush.bf16.msra.mxu0 %v1030
    %1082 = vmatmul.bf16.gmra.mxu0 0
    %v1083 = vpop.f32.mrf.mxu0
    %v1084 = vadd.f32 0.0, %v1083
    %v1085 = vpop.f32.mrf.mxu0
    %1086 = vdwg.mxu0
    %v1087 = vadd.f32 %v943, %v1071
    %v1088 = vadd.f32 %v944, %v1084
    %v1089 = vtanh.pop %v1087
    %v1090 = vtanh.pop %v1088
    %v1091 = vxor.u32 %v1087, 2147483648
    %v1092 = vxor.u32 %v1088, 2147483648
    %v1093 = vmul.f32 %v1091, 1.442695
    %v1094 = vpow.pop %v1093
    %v1095 = vmul.f32 %v1092, 1.442695
    %v1096 = vpow.pop %v1095
    %v1097 = vadd.f32 %v1094, 1.0
    %v1098 = vadd.f32 %v1096, 1.0
    %v1099 = vrcp.pop %v1097
    %v1100 = vmul.f32 %v1097, %v1099
    %v1101 = vsub.f32 1.0, %v1100
    %v1102 = vmul.f32 %v1099, %v1101
    %v1103 = vadd.f32 %v1099, %v1102
    %vm1104 = vweird.f32 %v1097
    %vm1105 = vweird.f32 %v1099
    %vm1106 = vmor %vm1104, %vm1105
    %v1107 = vsel %vm1106, %v1099, %v1103
    %v1108 = vand.u32 2147483647, %v1097
    %vm1109 = vcmp.eq.f32.partialorder %v1108, 8.507059e+37
    %v1110 = vand.u32 %v1097, 2147483648
    %v1111 = vor.u32 1.1754944e-38, %v1110
    %v1112 = vsel %vm1109, %v1111, %v1107
    %v1113 = vmul.f32 1.0, %v1112
    %v1114 = vrcp.pop %v1098
    %v1115 = vmul.f32 %v1098, %v1114
    %v1116 = vsub.f32 1.0, %v1115
    %v1117 = vmul.f32 %v1114, %v1116
    %v1118 = vadd.f32 %v1114, %v1117
    %vm1119 = vweird.f32 %v1098
    %vm1120 = vweird.f32 %v1114
    %vm1121 = vmor %vm1119, %vm1120
    %v1122 = vsel %vm1121, %v1114, %v1118
    %v1123 = vand.u32 2147483647, %v1098
    %vm1124 = vcmp.eq.f32.partialorder %v1123, 8.507059e+37
    %v1125 = vand.u32 %v1098, 2147483648
    %v1126 = vor.u32 1.1754944e-38, %v1125
    %v1127 = vsel %vm1124, %v1126, %v1122
    %v1128 = vmul.f32 1.0, %v1127
    %v1129 = vsel %vm148, %v1089, %v1113
    %v1130 = vsel %vm149, %v1090, %v1128
    %v1131 = vsel %vm150, %v1130, 0.0
    %v1132 = vmul.f32 %v1129, %v1131
    %1133 = vrot.lane.b32.xlu0 %v1132, 64
    %v1134 = vpop.permute.xlu0 %1133
    %v1135 = vadd.f32 %v1132, %v1134
    %v1136 = vtanh.pop %v1135
    %v1137 = vmul.f32 %v1130, %v1136
    %v1138 = vpack.c.bf16 %v1137, %v1137
    %1139 = vmatpush.bf16.msra.mxu0 %v1043
    %1140 = vmatpush.bf16.msra.mxu0 %v1041
    %1141 = vmatpush.bf16.msra.mxu0 %v1039
    %1142 = vmatpush.bf16.msra.mxu0 %v1037
    %1143 = vmatpush.bf16.msra.mxu0 %v1035
    %1144 = vmatpush.bf16.msra.mxu0 %v1033
    %1145 = vmatpush.bf16.msra.mxu0 %v1031
    %1146 = vmatpush.bf16.msra.mxu0 %v1029
    %1147 = vmatmul.bf16.gmra.mxu0 %v1138
    %v1148 = vpop.f32.mrf.mxu0
    %v1149 = vadd.f32 0.0, %v1148
    %v1150 = vpop.f32.mrf.mxu0
    %1151 = vdwg.mxu0
    %1152 = vmatpush.bf16.msra.mxu0 %v1044
    %1153 = vmatpush.bf16.msra.mxu0 %v1042
    %1154 = vmatpush.bf16.msra.mxu0 %v1040
    %1155 = vmatpush.bf16.msra.mxu0 %v1038
    %1156 = vmatpush.bf16.msra.mxu0 %v1036
    %1157 = vmatpush.bf16.msra.mxu0 %v1034
    %1158 = vmatpush.bf16.msra.mxu0 %v1032
    %1159 = vmatpush.bf16.msra.mxu0 %v1030
    %1160 = vmatmul.bf16.gmra.mxu0 %v1138
    %v1161 = vpop.f32.mrf.mxu0
    %v1162 = vadd.f32 0.0, %v1161
    %v1163 = vpop.f32.mrf.mxu0
    %1164 = vdwg.mxu0
    %v1167 = vrot.slane %v1149, 6
    %v1168 = vrot.slane %v1162, 6
    %v1171 = vadd.f32 %v949, %v1167
    %v1172 = vadd.f32 %v950, %v1168
    %v1173 = vtanh.pop %v1171
    %v1174 = vtanh.pop %v1172
    %v1175 = vxor.u32 %v1171, 2147483648
    %v1176 = vxor.u32 %v1172, 2147483648
    %v1177 = vmul.f32 %v1175, 1.442695
    %v1178 = vpow.pop %v1177
    %v1179 = vmul.f32 %v1176, 1.442695
    %v1180 = vpow.pop %v1179
    %v1181 = vadd.f32 %v1178, 1.0
    %v1182 = vadd.f32 %v1180, 1.0
    %v1183 = vrcp.pop %v1181
    %v1184 = vmul.f32 %v1181, %v1183
    %v1185 = vsub.f32 1.0, %v1184
    %v1186 = vmul.f32 %v1183, %v1185
    %v1187 = vadd.f32 %v1183, %v1186
    %vm1188 = vweird.f32 %v1181
    %vm1189 = vweird.f32 %v1183
    %vm1190 = vmor %vm1188, %vm1189
    %v1191 = vsel %vm1190, %v1183, %v1187
    %v1192 = vand.u32 2147483647, %v1181
    %vm1193 = vcmp.eq.f32.partialorder %v1192, 8.507059e+37
    %v1194 = vand.u32 %v1181, 2147483648
    %v1195 = vor.u32 1.1754944e-38, %v1194
    %v1196 = vsel %vm1193, %v1195, %v1191
    %v1197 = vmul.f32 1.0, %v1196
    %v1198 = vrcp.pop %v1182
    %v1199 = vmul.f32 %v1182, %v1198
    %v1200 = vsub.f32 1.0, %v1199
    %v1201 = vmul.f32 %v1198, %v1200
    %v1202 = vadd.f32 %v1198, %v1201
    %vm1203 = vweird.f32 %v1182
    %vm1204 = vweird.f32 %v1198
    %vm1205 = vmor %vm1203, %vm1204
    %v1206 = vsel %vm1205, %v1198, %v1202
    %v1207 = vand.u32 2147483647, %v1182
    %vm1208 = vcmp.eq.f32.partialorder %v1207, 8.507059e+37
    %v1209 = vand.u32 %v1182, 2147483648
    %v1210 = vor.u32 1.1754944e-38, %v1209
    %v1211 = vsel %vm1208, %v1210, %v1206
    %v1212 = vmul.f32 1.0, %v1211
    %v1213 = vsel %vm148, %v1173, %v1197
    %v1214 = vsel %vm149, %v1174, %v1212
    %v1216 = vrot.slane %v1135, 6
    %v1218 = vsel %vm150, %v1214, %v1216
    %v1219 = vmul.f32 %v1213, %v1218
    %v1221 = vrot.slane %v1219, 2
    %1223 = vrot.lane.b32.xlu0 %v1221, 64
    %v1224 = vpop.permute.xlu0 %1223
    %v1226 = vrot.slane %v1224, 6
    %v1228 = vadd.f32 %v1219, %v1226
    %v1229 = vtanh.pop %v1228
    %v1230 = vmul.f32 %v1214, %v1229
    %v1231 = vpack.c.bf16 %v1230, %v1230
    %v1233 = vrot.slane %v1231, 1
    %1235 = vmatpush.bf16.msra.mxu0 %v1043
    %1236 = vmatpush.bf16.msra.mxu0 %v1041
    %1237 = vmatpush.bf16.msra.mxu0 %v1039
    %1238 = vmatpush.bf16.msra.mxu0 %v1037
    %1239 = vmatpush.bf16.msra.mxu0 %v1035
    %1240 = vmatpush.bf16.msra.mxu0 %v1033
    %1241 = vmatpush.bf16.msra.mxu0 %v1031
    %1242 = vmatpush.bf16.msra.mxu0 %v1029
    %1243 = vmatmul.bf16.gmra.mxu0 %v1233
    %v1244 = vpop.f32.mrf.mxu0
    %v1245 = vadd.f32 0.0, %v1244
    %v1246 = vpop.f32.mrf.mxu0
    %1247 = vdwg.mxu0
    %1248 = vmatpush.bf16.msra.mxu0 %v1044
    %1249 = vmatpush.bf16.msra.mxu0 %v1042
    %1250 = vmatpush.bf16.msra.mxu0 %v1040
    %1251 = vmatpush.bf16.msra.mxu0 %v1038
    %1252 = vmatpush.bf16.msra.mxu0 %v1036
    %1253 = vmatpush.bf16.msra.mxu0 %v1034
    %1254 = vmatpush.bf16.msra.mxu0 %v1032
    %1255 = vmatpush.bf16.msra.mxu0 %v1030
    %1256 = vmatmul.bf16.gmra.mxu0 %v1233
    %v1257 = vpop.f32.mrf.mxu0
    %v1258 = vadd.f32 0.0, %v1257
    %v1259 = vpop.f32.mrf.mxu0
    %1260 = vdwg.mxu0
    %v1263 = vrot.slane %v1245, 4
    %v1264 = vrot.slane %v1258, 4
    %v1267 = vadd.f32 %v943, %v1263
    %v1268 = vadd.f32 %v944, %v1264
    %v1269 = vtanh.pop %v1267
    %v1270 = vtanh.pop %v1268
    %v1271 = vxor.u32 %v1267, 2147483648
    %v1272 = vxor.u32 %v1268, 2147483648
    %v1273 = vmul.f32 %v1271, 1.442695
    %v1274 = vpow.pop %v1273
    %v1275 = vmul.f32 %v1272, 1.442695
    %v1276 = vpow.pop %v1275
    %v1277 = vadd.f32 %v1274, 1.0
    %v1278 = vadd.f32 %v1276, 1.0
    %v1279 = vrcp.pop %v1277
    %v1280 = vmul.f32 %v1277, %v1279
    %v1281 = vsub.f32 1.0, %v1280
    %v1282 = vmul.f32 %v1279, %v1281
    %v1283 = vadd.f32 %v1279, %v1282
    %vm1284 = vweird.f32 %v1277
    %vm1285 = vweird.f32 %v1279
    %vm1286 = vmor %vm1284, %vm1285
    %v1287 = vsel %vm1286, %v1279, %v1283
    %v1288 = vand.u32 2147483647, %v1277
    %vm1289 = vcmp.eq.f32.partialorder %v1288, 8.507059e+37
    %v1290 = vand.u32 %v1277, 2147483648
    %v1291 = vor.u32 1.1754944e-38, %v1290
    %v1292 = vsel %vm1289, %v1291, %v1287
    %v1293 = vmul.f32 1.0, %v1292
    %v1294 = vrcp.pop %v1278
    %v1295 = vmul.f32 %v1278, %v1294
    %v1296 = vsub.f32 1.0, %v1295
    %v1297 = vmul.f32 %v1294, %v1296
    %v1298 = vadd.f32 %v1294, %v1297
    %vm1299 = vweird.f32 %v1278
    %vm1300 = vweird.f32 %v1294
    %vm1301 = vmor %vm1299, %vm1300
    %v1302 = vsel %vm1301, %v1294, %v1298
    %v1303 = vand.u32 2147483647, %v1278
    %vm1304 = vcmp.eq.f32.partialorder %v1303, 8.507059e+37
    %v1305 = vand.u32 %v1278, 2147483648
    %v1306 = vor.u32 1.1754944e-38, %v1305
    %v1307 = vsel %vm1304, %v1306, %v1302
    %v1308 = vmul.f32 1.0, %v1307
    %v1309 = vsel %vm148, %v1269, %v1293
    %v1310 = vsel %vm149, %v1270, %v1308
    %v1312 = vrot.slane %v1228, 6
    %v1314 = vsel %vm150, %v1310, %v1312
    %v1315 = vmul.f32 %v1309, %v1314
    %v1317 = vrot.slane %v1315, 4
    %1319 = vrot.lane.b32.xlu0 %v1317, 64
    %v1320 = vpop.permute.xlu0 %1319
    %v1322 = vrot.slane %v1320, 4
    %v1324 = vadd.f32 %v1315, %v1322
    %v1325 = vtanh.pop %v1324
    %v1326 = vmul.f32 %v1310, %v1325
    %v1327 = vpack.c.bf16 %v1326, %v1326
    %v1329 = vrot.slane %v1327, 2
    %1331 = vmatpush.bf16.msra.mxu0 %v1043
    %1332 = vmatpush.bf16.msra.mxu0 %v1041
    %1333 = vmatpush.bf16.msra.mxu0 %v1039
    %1334 = vmatpush.bf16.msra.mxu0 %v1037
    %1335 = vmatpush.bf16.msra.mxu0 %v1035
    %1336 = vmatpush.bf16.msra.mxu0 %v1033
    %1337 = vmatpush.bf16.msra.mxu0 %v1031
    %1338 = vmatpush.bf16.msra.mxu0 %v1029
    %1339 = vmatmul.bf16.gmra.mxu0 %v1329
    %v1340 = vpop.f32.mrf.mxu0
    %v1341 = vadd.f32 0.0, %v1340
    %v1342 = vpop.f32.mrf.mxu0
    %1343 = vdwg.mxu0
    %1344 = vmatpush.bf16.msra.mxu0 %v1044
    %1345 = vmatpush.bf16.msra.mxu0 %v1042
    %1346 = vmatpush.bf16.msra.mxu0 %v1040
    %1347 = vmatpush.bf16.msra.mxu0 %v1038
    %1348 = vmatpush.bf16.msra.mxu0 %v1036
    %1349 = vmatpush.bf16.msra.mxu0 %v1034
    %1350 = vmatpush.bf16.msra.mxu0 %v1032
    %1351 = vmatpush.bf16.msra.mxu0 %v1030
    %1352 = vmatmul.bf16.gmra.mxu0 %v1329
    %v1353 = vpop.f32.mrf.mxu0
    %v1354 = vadd.f32 0.0, %v1353
    %v1355 = vpop.f32.mrf.mxu0
    %1356 = vdwg.mxu0
    %v1359 = vrot.slane %v1341, 2
    %v1360 = vrot.slane %v1354, 2
    %v1363 = vadd.f32 %v949, %v1359
    %v1364 = vadd.f32 %v950, %v1360
    %v1365 = vtanh.pop %v1363
    %v1366 = vtanh.pop %v1364
    %v1367 = vxor.u32 %v1363, 2147483648
    %v1368 = vxor.u32 %v1364, 2147483648
    %v1369 = vmul.f32 %v1367, 1.442695
    %v1370 = vpow.pop %v1369
    %v1371 = vmul.f32 %v1368, 1.442695
    %v1372 = vpow.pop %v1371
    %v1373 = vadd.f32 %v1370, 1.0
    %v1374 = vadd.f32 %v1372, 1.0
    %v1375 = vrcp.pop %v1373
    %v1376 = vmul.f32 %v1373, %v1375
    %v1377 = vsub.f32 1.0, %v1376
    %v1378 = vmul.f32 %v1375, %v1377
    %v1379 = vadd.f32 %v1375, %v1378
    %vm1380 = vweird.f32 %v1373
    %vm1381 = vweird.f32 %v1375
    %vm1382 = vmor %vm1380, %vm1381
    %v1383 = vsel %vm1382, %v1375, %v1379
    %v1384 = vand.u32 2147483647, %v1373
    %vm1385 = vcmp.eq.f32.partialorder %v1384, 8.507059e+37
    %v1386 = vand.u32 %v1373, 2147483648
    %v1387 = vor.u32 1.1754944e-38, %v1386
    %v1388 = vsel %vm1385, %v1387, %v1383
    %v1389 = vmul.f32 1.0, %v1388
    %v1390 = vrcp.pop %v1374
    %v1391 = vmul.f32 %v1374, %v1390
    %v1392 = vsub.f32 1.0, %v1391
    %v1393 = vmul.f32 %v1390, %v1392
    %v1394 = vadd.f32 %v1390, %v1393
    %vm1395 = vweird.f32 %v1374
    %vm1396 = vweird.f32 %v1390
    %vm1397 = vmor %vm1395, %vm1396
    %v1398 = vsel %vm1397, %v1390, %v1394
    %v1399 = vand.u32 2147483647, %v1374
    %vm1400 = vcmp.eq.f32.partialorder %v1399, 8.507059e+37
    %v1401 = vand.u32 %v1374, 2147483648
    %v1402 = vor.u32 1.1754944e-38, %v1401
    %v1403 = vsel %vm1400, %v1402, %v1398
    %v1404 = vmul.f32 1.0, %v1403
    %v1405 = vsel %vm148, %v1365, %v1389
    %v1406 = vsel %vm149, %v1366, %v1404
    %v1408 = vrot.slane %v1324, 6
    %v1410 = vsel %vm150, %v1406, %v1408
    %v1411 = vmul.f32 %v1405, %v1410
    %v1413 = vrot.slane %v1411, 6
    %1415 = vrot.lane.b32.xlu0 %v1413, 64
    %v1416 = vpop.permute.xlu0 %1415
    %v1418 = vrot.slane %v1416, 2
    %v1420 = vadd.f32 %v1411, %v1418
    %v1421 = vtanh.pop %v1420
    %v1422 = vmul.f32 %v1406, %v1421
    %v1423 = vpack.c.bf16 %v1422, %v1422
    %v1425 = vrot.slane %v1423, 3
    %1427 = vmatpush.bf16.msra.mxu0 %v1043
    %1428 = vmatpush.bf16.msra.mxu0 %v1041
    %1429 = vmatpush.bf16.msra.mxu0 %v1039
    %1430 = vmatpush.bf16.msra.mxu0 %v1037
    %1431 = vmatpush.bf16.msra.mxu0 %v1035
    %1432 = vmatpush.bf16.msra.mxu0 %v1033
    %1433 = vmatpush.bf16.msra.mxu0 %v1031
    %1434 = vmatpush.bf16.msra.mxu0 %v1029
    %1435 = vmatmul.bf16.gmra.mxu0 %v1425
    %v1436 = vpop.f32.mrf.mxu0
    %v1437 = vadd.f32 0.0, %v1436
    %v1438 = vpop.f32.mrf.mxu0
    %1439 = vdwg.mxu0
    %1440 = vmatpush.bf16.msra.mxu0 %v1044
    %1441 = vmatpush.bf16.msra.mxu0 %v1042
    %1442 = vmatpush.bf16.msra.mxu0 %v1040
    %1443 = vmatpush.bf16.msra.mxu0 %v1038
    %1444 = vmatpush.bf16.msra.mxu0 %v1036
    %1445 = vmatpush.bf16.msra.mxu0 %v1034
    %1446 = vmatpush.bf16.msra.mxu0 %v1032
    %1447 = vmatpush.bf16.msra.mxu0 %v1030
    %1448 = vmatmul.bf16.gmra.mxu0 %v1425
    %v1449 = vpop.f32.mrf.mxu0
    %v1450 = vadd.f32 0.0, %v1449
    %v1451 = vpop.f32.mrf.mxu0
    %1452 = vdwg.mxu0
    %v1453 = vadd.f32 %v957, %v1437
    %v1454 = vadd.f32 %v958, %v1450
    %v1455 = vtanh.pop %v1453
    %v1456 = vtanh.pop %v1454
    %v1457 = vxor.u32 %v1453, 2147483648
    %v1458 = vxor.u32 %v1454, 2147483648
    %v1459 = vmul.f32 %v1457, 1.442695
    %v1460 = vpow.pop %v1459
    %v1461 = vmul.f32 %v1458, 1.442695
    %v1462 = vpow.pop %v1461
    %v1463 = vadd.f32 %v1460, 1.0
    %v1464 = vadd.f32 %v1462, 1.0
    %v1465 = vrcp.pop %v1463
    %v1466 = vmul.f32 %v1463, %v1465
    %v1467 = vsub.f32 1.0, %v1466
    %v1468 = vmul.f32 %v1465, %v1467
    %v1469 = vadd.f32 %v1465, %v1468
    %vm1470 = vweird.f32 %v1463
    %vm1471 = vweird.f32 %v1465
    %vm1472 = vmor %vm1470, %vm1471
    %v1473 = vsel %vm1472, %v1465, %v1469
    %v1474 = vand.u32 2147483647, %v1463
    %vm1475 = vcmp.eq.f32.partialorder %v1474, 8.507059e+37
    %v1476 = vand.u32 %v1463, 2147483648
    %v1477 = vor.u32 1.1754944e-38, %v1476
    %v1478 = vsel %vm1475, %v1477, %v1473
    %v1479 = vmul.f32 1.0, %v1478
    %v1480 = vrcp.pop %v1464
    %v1481 = vmul.f32 %v1464, %v1480
    %v1482 = vsub.f32 1.0, %v1481
    %v1483 = vmul.f32 %v1480, %v1482
    %v1484 = vadd.f32 %v1480, %v1483
    %vm1485 = vweird.f32 %v1464
    %vm1486 = vweird.f32 %v1480
    %vm1487 = vmor %vm1485, %vm1486
    %v1488 = vsel %vm1487, %v1480, %v1484
    %v1489 = vand.u32 2147483647, %v1464
    %vm1490 = vcmp.eq.f32.partialorder %v1489, 8.507059e+37
    %v1491 = vand.u32 %v1464, 2147483648
    %v1492 = vor.u32 1.1754944e-38, %v1491
    %v1493 = vsel %vm1490, %v1492, %v1488
    %v1494 = vmul.f32 1.0, %v1493
    %v1495 = vsel %vm148, %v1455, %v1479
    %v1496 = vsel %vm149, %v1456, %v1494
    %v1498 = vrot.slane %v1420, 6
    %v1500 = vsel %vm150, %v1496, %v1498
    %v1501 = vmul.f32 %v1495, %v1500
    %1502 = vrot.lane.b32.xlu0 %v1501, 64
    %v1503 = vpop.permute.xlu0 %1502
    %v1504 = vadd.f32 %v1501, %v1503
    %v1505 = vtanh.pop %v1504
    %v1506 = vmul.f32 %v1496, %v1505
    %v1507 = vpack.c.bf16 %v1506, %v1506
    %1508 = vmatpush.bf16.msra.mxu0 %v1043
    %1509 = vmatpush.bf16.msra.mxu0 %v1041
    %1510 = vmatpush.bf16.msra.mxu0 %v1039
    %1511 = vmatpush.bf16.msra.mxu0 %v1037
    %1512 = vmatpush.bf16.msra.mxu0 %v1035
    %1513 = vmatpush.bf16.msra.mxu0 %v1033
    %1514 = vmatpush.bf16.msra.mxu0 %v1031
    %1515 = vmatpush.bf16.msra.mxu0 %v1029
    %1516 = vmatmul.bf16.gmra.mxu0 %v1507
    %v1517 = vpop.f32.mrf.mxu0
    %v1518 = vadd.f32 0.0, %v1517
    %v1519 = vpop.f32.mrf.mxu0
    %1520 = vdwg.mxu0
    %1521 = vmatpush.bf16.msra.mxu0 %v1044
    %1522 = vmatpush.bf16.msra.mxu0 %v1042
    %1523 = vmatpush.bf16.msra.mxu0 %v1040
    %1524 = vmatpush.bf16.msra.mxu0 %v1038
    %1525 = vmatpush.bf16.msra.mxu0 %v1036
    %1526 = vmatpush.bf16.msra.mxu0 %v1034
    %1527 = vmatpush.bf16.msra.mxu0 %v1032
    %1528 = vmatpush.bf16.msra.mxu0 %v1030
    %1529 = vmatmul.bf16.gmra.mxu0 %v1507
    %v1530 = vpop.f32.mrf.mxu0
    %v1531 = vadd.f32 0.0, %v1530
    %v1532 = vpop.f32.mrf.mxu0
    %1533 = vdwg.mxu0
    %v1536 = vrot.slane %v1518, 6
    %v1537 = vrot.slane %v1531, 6
    %v1540 = vadd.f32 %v963, %v1536
    %v1541 = vadd.f32 %v964, %v1537
    %v1542 = vtanh.pop %v1540
    %v1543 = vtanh.pop %v1541
    %v1544 = vxor.u32 %v1540, 2147483648
    %v1545 = vxor.u32 %v1541, 2147483648
    %v1546 = vmul.f32 %v1544, 1.442695
    %v1547 = vpow.pop %v1546
    %v1548 = vmul.f32 %v1545, 1.442695
    %v1549 = vpow.pop %v1548
    %v1550 = vadd.f32 %v1547, 1.0
    %v1551 = vadd.f32 %v1549, 1.0
    %v1552 = vrcp.pop %v1550
    %v1553 = vmul.f32 %v1550, %v1552
    %v1554 = vsub.f32 1.0, %v1553
    %v1555 = vmul.f32 %v1552, %v1554
    %v1556 = vadd.f32 %v1552, %v1555
    %vm1557 = vweird.f32 %v1550
    %vm1558 = vweird.f32 %v1552
    %vm1559 = vmor %vm1557, %vm1558
    %v1560 = vsel %vm1559, %v1552, %v1556
    %v1561 = vand.u32 2147483647, %v1550
    %vm1562 = vcmp.eq.f32.partialorder %v1561, 8.507059e+37
    %v1563 = vand.u32 %v1550, 2147483648
    %v1564 = vor.u32 1.1754944e-38, %v1563
    %v1565 = vsel %vm1562, %v1564, %v1560
    %v1566 = vmul.f32 1.0, %v1565
    %v1567 = vrcp.pop %v1551
    %v1568 = vmul.f32 %v1551, %v1567
    %v1569 = vsub.f32 1.0, %v1568
    %v1570 = vmul.f32 %v1567, %v1569
    %v1571 = vadd.f32 %v1567, %v1570
    %vm1572 = vweird.f32 %v1551
    %vm1573 = vweird.f32 %v1567
    %vm1574 = vmor %vm1572, %vm1573
    %v1575 = vsel %vm1574, %v1567, %v1571
    %v1576 = vand.u32 2147483647, %v1551
    %vm1577 = vcmp.eq.f32.partialorder %v1576, 8.507059e+37
    %v1578 = vand.u32 %v1551, 2147483648
    %v1579 = vor.u32 1.1754944e-38, %v1578
    %v1580 = vsel %vm1577, %v1579, %v1575
    %v1581 = vmul.f32 1.0, %v1580
    %v1582 = vsel %vm148, %v1542, %v1566
    %v1583 = vsel %vm149, %v1543, %v1581
    %v1585 = vrot.slane %v1504, 6
    %v1587 = vsel %vm150, %v1583, %v1585
    %v1588 = vmul.f32 %v1582, %v1587
    %v1590 = vrot.slane %v1588, 2
    %1592 = vrot.lane.b32.xlu0 %v1590, 64
    %v1593 = vpop.permute.xlu0 %1592
    %v1595 = vrot.slane %v1593, 6
    %v1597 = vadd.f32 %v1588, %v1595
    %v1598 = vtanh.pop %v1597
    %v1599 = vmul.f32 %v1583, %v1598
    %v1600 = vpack.c.bf16 %v1599, %v1599
    %v1602 = vrot.slane %v1600, 1
    %1604 = vmatpush.bf16.msra.mxu0 %v1043
    %1605 = vmatpush.bf16.msra.mxu0 %v1041
    %1606 = vmatpush.bf16.msra.mxu0 %v1039
    %1607 = vmatpush.bf16.msra.mxu0 %v1037
    %1608 = vmatpush.bf16.msra.mxu0 %v1035
    %1609 = vmatpush.bf16.msra.mxu0 %v1033
    %1610 = vmatpush.bf16.msra.mxu0 %v1031
    %1611 = vmatpush.bf16.msra.mxu0 %v1029
    %1612 = vmatmul.bf16.gmra.mxu0 %v1602
    %v1613 = vpop.f32.mrf.mxu0
    %v1614 = vadd.f32 0.0, %v1613
    %v1615 = vpop.f32.mrf.mxu0
    %1616 = vdwg.mxu0
    %1617 = vmatpush.bf16.msra.mxu0 %v1044
    %1618 = vmatpush.bf16.msra.mxu0 %v1042
    %1619 = vmatpush.bf16.msra.mxu0 %v1040
    %1620 = vmatpush.bf16.msra.mxu0 %v1038
    %1621 = vmatpush.bf16.msra.mxu0 %v1036
    %1622 = vmatpush.bf16.msra.mxu0 %v1034
    %1623 = vmatpush.bf16.msra.mxu0 %v1032
    %1624 = vmatpush.bf16.msra.mxu0 %v1030
    %1625 = vmatmul.bf16.gmra.mxu0 %v1602
    %v1626 = vpop.f32.mrf.mxu0
    %v1627 = vadd.f32 0.0, %v1626
    %v1628 = vpop.f32.mrf.mxu0
    %1629 = vdwg.mxu0
    %v1632 = vrot.slane %v1614, 4
    %v1633 = vrot.slane %v1627, 4
    %v1636 = vadd.f32 %v957, %v1632
    %v1637 = vadd.f32 %v958, %v1633
    %v1638 = vtanh.pop %v1636
    %v1639 = vtanh.pop %v1637
    %v1640 = vxor.u32 %v1636, 2147483648
    %v1641 = vxor.u32 %v1637, 2147483648
    %v1642 = vmul.f32 %v1640, 1.442695
    %v1643 = vpow.pop %v1642
    %v1644 = vmul.f32 %v1641, 1.442695
    %v1645 = vpow.pop %v1644
    %v1646 = vadd.f32 %v1643, 1.0
    %v1647 = vadd.f32 %v1645, 1.0
    %v1648 = vrcp.pop %v1646
    %v1649 = vmul.f32 %v1646, %v1648
    %v1650 = vsub.f32 1.0, %v1649
    %v1651 = vmul.f32 %v1648, %v1650
    %v1652 = vadd.f32 %v1648, %v1651
    %vm1653 = vweird.f32 %v1646
    %vm1654 = vweird.f32 %v1648
    %vm1655 = vmor %vm1653, %vm1654
    %v1656 = vsel %vm1655, %v1648, %v1652
    %v1657 = vand.u32 2147483647, %v1646
    %vm1658 = vcmp.eq.f32.partialorder %v1657, 8.507059e+37
    %v1659 = vand.u32 %v1646, 2147483648
    %v1660 = vor.u32 1.1754944e-38, %v1659
    %v1661 = vsel %vm1658, %v1660, %v1656
    %v1662 = vmul.f32 1.0, %v1661
    %v1663 = vrcp.pop %v1647
    %v1664 = vmul.f32 %v1647, %v1663
    %v1665 = vsub.f32 1.0, %v1664
    %v1666 = vmul.f32 %v1663, %v1665
    %v1667 = vadd.f32 %v1663, %v1666
    %vm1668 = vweird.f32 %v1647
    %vm1669 = vweird.f32 %v1663
    %vm1670 = vmor %vm1668, %vm1669
    %v1671 = vsel %vm1670, %v1663, %v1667
    %v1672 = vand.u32 2147483647, %v1647
    %vm1673 = vcmp.eq.f32.partialorder %v1672, 8.507059e+37
    %v1674 = vand.u32 %v1647, 2147483648
    %v1675 = vor.u32 1.1754944e-38, %v1674
    %v1676 = vsel %vm1673, %v1675, %v1671
    %v1677 = vmul.f32 1.0, %v1676
    %v1678 = vsel %vm148, %v1638, %v1662
    %v1679 = vsel %vm149, %v1639, %v1677
    %v1681 = vrot.slane %v1597, 6
    %v1683 = vsel %vm150, %v1679, %v1681
    %v1684 = vmul.f32 %v1678, %v1683
    %v1686 = vrot.slane %v1684, 4
    %1688 = vrot.lane.b32.xlu0 %v1686, 64
    %v1689 = vpop.permute.xlu0 %1688
    %v1691 = vrot.slane %v1689, 4
    %v1693 = vadd.f32 %v1684, %v1691
    %v1694 = vtanh.pop %v1693
    %v1695 = vmul.f32 %v1679, %v1694
    %v1696 = vpack.c.bf16 %v1695, %v1695
    %v1698 = vrot.slane %v1696, 2
    %1700 = vmatpush.bf16.msra.mxu0 %v1043
    %1701 = vmatpush.bf16.msra.mxu0 %v1041
    %1702 = vmatpush.bf16.msra.mxu0 %v1039
    %1703 = vmatpush.bf16.msra.mxu0 %v1037
    %1704 = vmatpush.bf16.msra.mxu0 %v1035
    %1705 = vmatpush.bf16.msra.mxu0 %v1033
    %1706 = vmatpush.bf16.msra.mxu0 %v1031
    %1707 = vmatpush.bf16.msra.mxu0 %v1029
    %1708 = vmatmul.bf16.gmra.mxu0 %v1698
    %v1709 = vpop.f32.mrf.mxu0
    %v1710 = vadd.f32 0.0, %v1709
    %v1711 = vpop.f32.mrf.mxu0
    %1712 = vdwg.mxu0
    %1713 = vmatpush.bf16.msra.mxu0 %v1044
    %1714 = vmatpush.bf16.msra.mxu0 %v1042
    %1715 = vmatpush.bf16.msra.mxu0 %v1040
    %1716 = vmatpush.bf16.msra.mxu0 %v1038
    %1717 = vmatpush.bf16.msra.mxu0 %v1036
    %1718 = vmatpush.bf16.msra.mxu0 %v1034
    %1719 = vmatpush.bf16.msra.mxu0 %v1032
    %1720 = vmatpush.bf16.msra.mxu0 %v1030
    %1721 = vmatmul.bf16.gmra.mxu0 %v1698
    %v1722 = vpop.f32.mrf.mxu0
    %v1723 = vadd.f32 0.0, %v1722
    %v1724 = vpop.f32.mrf.mxu0
    %1725 = vdwg.mxu0
    %v1728 = vrot.slane %v1710, 2
    %v1729 = vrot.slane %v1723, 2
    %v1732 = vadd.f32 %v963, %v1728
    %v1733 = vadd.f32 %v964, %v1729
    %v1734 = vtanh.pop %v1732
    %v1735 = vtanh.pop %v1733
    %v1736 = vxor.u32 %v1732, 2147483648
    %v1737 = vxor.u32 %v1733, 2147483648
    %v1738 = vmul.f32 %v1736, 1.442695
    %v1739 = vpow.pop %v1738
    %v1740 = vmul.f32 %v1737, 1.442695
    %v1741 = vpow.pop %v1740
    %v1742 = vadd.f32 %v1739, 1.0
    %v1743 = vadd.f32 %v1741, 1.0
    %v1744 = vrcp.pop %v1742
    %v1745 = vmul.f32 %v1742, %v1744
    %v1746 = vsub.f32 1.0, %v1745
    %v1747 = vmul.f32 %v1744, %v1746
    %v1748 = vadd.f32 %v1744, %v1747
    %vm1749 = vweird.f32 %v1742
    %vm1750 = vweird.f32 %v1744
    %vm1751 = vmor %vm1749, %vm1750
    %v1752 = vsel %vm1751, %v1744, %v1748
    %v1753 = vand.u32 2147483647, %v1742
    %vm1754 = vcmp.eq.f32.partialorder %v1753, 8.507059e+37
    %v1755 = vand.u32 %v1742, 2147483648
    %v1756 = vor.u32 1.1754944e-38, %v1755
    %v1757 = vsel %vm1754, %v1756, %v1752
    %v1758 = vmul.f32 1.0, %v1757
    %v1759 = vrcp.pop %v1743
    %v1760 = vmul.f32 %v1743, %v1759
    %v1761 = vsub.f32 1.0, %v1760
    %v1762 = vmul.f32 %v1759, %v1761
    %v1763 = vadd.f32 %v1759, %v1762
    %vm1764 = vweird.f32 %v1743
    %vm1765 = vweird.f32 %v1759
    %vm1766 = vmor %vm1764, %vm1765
    %v1767 = vsel %vm1766, %v1759, %v1763
    %v1768 = vand.u32 2147483647, %v1743
    %vm1769 = vcmp.eq.f32.partialorder %v1768, 8.507059e+37
    %v1770 = vand.u32 %v1743, 2147483648
    %v1771 = vor.u32 1.1754944e-38, %v1770
    %v1772 = vsel %vm1769, %v1771, %v1767
    %v1773 = vmul.f32 1.0, %v1772
    %v1774 = vsel %vm148, %v1734, %v1758
    %v1775 = vsel %vm149, %v1735, %v1773
    %v1777 = vrot.slane %v1693, 6
    %v1779 = vsel %vm150, %v1775, %v1777
    %v1780 = vmul.f32 %v1774, %v1779
    %v1782 = vrot.slane %v1780, 6
    %1784 = vrot.lane.b32.xlu0 %v1782, 64
    %v1785 = vpop.permute.xlu0 %1784
    %v1787 = vrot.slane %v1785, 2
    %v1789 = vadd.f32 %v1780, %v1787
    %v1790 = vtanh.pop %v1789
    %v1791 = vmul.f32 %v1775, %v1790
    %vm1792 = vcmask 1041408
    %v1793 = vsel %vm1792, %v1137, %v1230
    %vm1794 = vcmask 1043456
    %v1795 = vsel %vm1794, %v1793, %v1326
    %vm1796 = vcmask 1045504
    %v1797 = vsel %vm1796, %v1795, %v1422
    %v1798 = vsel %vm1792, %v1506, %v1599
    %v1799 = vsel %vm1794, %v1798, %v1695
    %v1800 = vsel %vm1796, %v1799, %v1791
    %v1801 = vpack.c.bf16 %v1800, %v1797
    %v1803 = vrot.slane %v1791, 6
    %v1806 = vrot.slane %v1695, 2
    %v1809 = vrot.slane %v1599, 6
    %v1812 = vrot.slane %v1506, 2
    %v1815 = vrot.slane %v1422, 6
    %v1818 = vrot.slane %v1326, 2
    %v1821 = vrot.slane %v1230, 6
    %v1824 = vrot.slane %v1137, 2
    %v1826 = vsel %vm1792, %v1803, %v1806
    %v1827 = vsel %vm1794, %v1826, %v1809
    %v1828 = vsel %vm1796, %v1827, %v1812
    %v1829 = vsel %vm1792, %v1815, %v1818
    %v1830 = vsel %vm1794, %v1829, %v1821
    %v1831 = vsel %vm1796, %v1830, %v1824
    %v1832 = vpack.c.bf16 %v1831, %v1828
    %v1833 = vld [vmem:[#allocation7] sm:$0xff]
    %v1834 = vld [vmem:[#allocation7 + $0x8] sm:$0xff]
    %v1835 = vld [vmem:[#allocation7 + $0x10] sm:$0xff]
    %v1836 = vld [vmem:[#allocation7 + $0x18] sm:$0xff]
    %v1837 = vld [vmem:[#allocation7 + $0x20] sm:$0xff]
    %v1838 = vld [vmem:[#allocation7 + $0x28] sm:$0xff]
    %v1839 = vld [vmem:[#allocation7 + $0x30] sm:$0xff]
    %v1840 = vld [vmem:[#allocation7 + $0x38] sm:$0xff]
    %v1841 = vld [vmem:[#allocation7 + $0x40] sm:$0xff]
    %v1842 = vld [vmem:[#allocation7 + $0x48] sm:$0xff]
    %v1843 = vld [vmem:[#allocation7 + $0x50] sm:$0xff]
    %v1844 = vld [vmem:[#allocation7 + $0x58] sm:$0xff]
    %v1845 = vld [vmem:[#allocation7 + $0x60] sm:$0xff]
    %v1846 = vld [vmem:[#allocation7 + $0x68] sm:$0xff]
    %v1847 = vld [vmem:[#allocation7 + $0x70] sm:$0xff]
    %v1848 = vld [vmem:[#allocation7 + $0x78] sm:$0xff]
    %v1849 = vld [vmem:[#allocation8] sm:$0xff]
    %v1850 = vld [vmem:[#allocation8 + $0x8] sm:$0xff]
    %v1851 = vld [vmem:[#allocation8 + $0x10] sm:$0xff]
    %v1852 = vld [vmem:[#allocation8 + $0x18] sm:$0xff]
    %v1853 = vld [vmem:[#allocation8 + $0x20] sm:$0xff]
    %v1854 = vld [vmem:[#allocation8 + $0x28] sm:$0xff]
    %v1855 = vld [vmem:[#allocation8 + $0x30] sm:$0xff]
    %v1856 = vld [vmem:[#allocation8 + $0x38] sm:$0xff]
    %v1857 = vld [vmem:[#allocation8 + $0x40] sm:$0xff]
    %v1858 = vld [vmem:[#allocation8 + $0x48] sm:$0xff]
    %v1859 = vld [vmem:[#allocation8 + $0x50] sm:$0xff]
    %v1860 = vld [vmem:[#allocation8 + $0x58] sm:$0xff]
    %v1861 = vld [vmem:[#allocation8 + $0x60] sm:$0xff]
    %v1862 = vld [vmem:[#allocation8 + $0x68] sm:$0xff]
    %v1863 = vld [vmem:[#allocation8 + $0x70] sm:$0xff]
    %v1864 = vld [vmem:[#allocation8 + $0x78] sm:$0xff]
    %v1881 = vunpack.c.l.b16 %v1849
    %v1882 = vunpack.c.h.b16 %v1849
    %v1883 = vunpack.c.l.b16 %v1850
    %v1884 = vunpack.c.h.b16 %v1850
    %v1885 = vunpack.c.l.b16 %v1851
    %v1886 = vunpack.c.h.b16 %v1851
    %v1887 = vunpack.c.l.b16 %v1852
    %v1888 = vunpack.c.h.b16 %v1852
    %v1889 = vunpack.c.l.b16 %v1853
    %v1890 = vunpack.c.h.b16 %v1853
    %v1891 = vunpack.c.l.b16 %v1854
    %v1892 = vunpack.c.h.b16 %v1854
    %v1893 = vunpack.c.l.b16 %v1855
    %v1894 = vunpack.c.h.b16 %v1855
    %v1895 = vunpack.c.l.b16 %v1856
    %v1896 = vunpack.c.h.b16 %v1856
    %v1897 = vunpack.c.l.b16 %v1857
    %v1898 = vunpack.c.h.b16 %v1857
    %v1899 = vunpack.c.l.b16 %v1858
    %v1900 = vunpack.c.h.b16 %v1858
    %v1901 = vunpack.c.l.b16 %v1859
    %v1902 = vunpack.c.h.b16 %v1859
    %v1903 = vunpack.c.l.b16 %v1860
    %v1904 = vunpack.c.h.b16 %v1860
    %v1905 = vunpack.c.l.b16 %v1861
    %v1906 = vunpack.c.h.b16 %v1861
    %v1907 = vunpack.c.l.b16 %v1862
    %v1908 = vunpack.c.h.b16 %v1862
    %v1909 = vunpack.c.l.b16 %v1863
    %v1910 = vunpack.c.h.b16 %v1863
    %v1911 = vunpack.c.l.b16 %v1864
    %v1912 = vunpack.c.h.b16 %v1864
    %v1913 = vpack.c.b16 %v1883, %v1881
    %v1914 = vpack.c.b16 %v1884, %v1882
    %v1915 = vpack.c.b16 %v1887, %v1885
    %v1916 = vpack.c.b16 %v1888, %v1886
    %v1917 = vpack.c.b16 %v1891, %v1889
    %v1918 = vpack.c.b16 %v1892, %v1890
    %v1919 = vpack.c.b16 %v1895, %v1893
    %v1920 = vpack.c.b16 %v1896, %v1894
    %v1921 = vpack.c.b16 %v1899, %v1897
    %v1922 = vpack.c.b16 %v1900, %v1898
    %v1923 = vpack.c.b16 %v1903, %v1901
    %v1924 = vpack.c.b16 %v1904, %v1902
    %v1925 = vpack.c.b16 %v1907, %v1905
    %v1926 = vpack.c.b16 %v1908, %v1906
    %v1927 = vpack.c.b16 %v1911, %v1909
    %v1928 = vpack.c.b16 %v1912, %v1910
    %1945 = vmatpush.bf16.msra.mxu0 %v1927
    %1946 = vmatpush.bf16.msra.mxu0 %v1925
    %1947 = vmatpush.bf16.msra.mxu0 %v1923
    %1948 = vmatpush.bf16.msra.mxu0 %v1921
    %1949 = vmatpush.bf16.msra.mxu0 %v1919
    %1950 = vmatpush.bf16.msra.mxu0 %v1917
    %1951 = vmatpush.bf16.msra.mxu0 %v1915
    %1952 = vmatpush.bf16.msra.mxu0 %v1913
    %1953 = vmatmul.bf16.gmra.mxu0 %v1832
    %v1954 = vpop.f32.mrf.mxu0
    %v1955 = vadd.f32 0.0, %v1954
    %v1956 = vpop.f32.mrf.mxu0
    %v1957 = vadd.f32 0.0, %v1956
    %1958 = vdwg.mxu0
    %1959 = vmatpush.bf16.msra.mxu0 %v1928
    %1960 = vmatpush.bf16.msra.mxu0 %v1926
    %1961 = vmatpush.bf16.msra.mxu0 %v1924
    %1962 = vmatpush.bf16.msra.mxu0 %v1922
    %1963 = vmatpush.bf16.msra.mxu0 %v1920
    %1964 = vmatpush.bf16.msra.mxu0 %v1918
    %1965 = vmatpush.bf16.msra.mxu0 %v1916
    %1966 = vmatpush.bf16.msra.mxu0 %v1914
    %1967 = vmatmul.bf16.gmra.mxu0 %v1832
    %v1968 = vpop.f32.mrf.mxu0
    %v1969 = vadd.f32 0.0, %v1968
    %v1970 = vpop.f32.mrf.mxu0
    %v1971 = vadd.f32 0.0, %v1970
    %1972 = vdwg.mxu0
    %v1989 = vunpack.c.l.b16 %v1833
    %v1990 = vunpack.c.h.b16 %v1833
    %v1991 = vunpack.c.l.b16 %v1834
    %v1992 = vunpack.c.h.b16 %v1834
    %v1993 = vunpack.c.l.b16 %v1835
    %v1994 = vunpack.c.h.b16 %v1835
    %v1995 = vunpack.c.l.b16 %v1836
    %v1996 = vunpack.c.h.b16 %v1836
    %v1997 = vunpack.c.l.b16 %v1837
    %v1998 = vunpack.c.h.b16 %v1837
    %v1999 = vunpack.c.l.b16 %v1838
    %v2000 = vunpack.c.h.b16 %v1838
    %v2001 = vunpack.c.l.b16 %v1839
    %v2002 = vunpack.c.h.b16 %v1839
    %v2003 = vunpack.c.l.b16 %v1840
    %v2004 = vunpack.c.h.b16 %v1840
    %v2005 = vunpack.c.l.b16 %v1841
    %v2006 = vunpack.c.h.b16 %v1841
    %v2007 = vunpack.c.l.b16 %v1842
    %v2008 = vunpack.c.h.b16 %v1842
    %v2009 = vunpack.c.l.b16 %v1843
    %v2010 = vunpack.c.h.b16 %v1843
    %v2011 = vunpack.c.l.b16 %v1844
    %v2012 = vunpack.c.h.b16 %v1844
    %v2013 = vunpack.c.l.b16 %v1845
    %v2014 = vunpack.c.h.b16 %v1845
    %v2015 = vunpack.c.l.b16 %v1846
    %v2016 = vunpack.c.h.b16 %v1846
    %v2017 = vunpack.c.l.b16 %v1847
    %v2018 = vunpack.c.h.b16 %v1847
    %v2019 = vunpack.c.l.b16 %v1848
    %v2020 = vunpack.c.h.b16 %v1848
    %v2021 = vpack.c.b16 %v1991, %v1989
    %v2022 = vpack.c.b16 %v1992, %v1990
    %v2023 = vpack.c.b16 %v1995, %v1993
    %v2024 = vpack.c.b16 %v1996, %v1994
    %v2025 = vpack.c.b16 %v1999, %v1997
    %v2026 = vpack.c.b16 %v2000, %v1998
    %v2027 = vpack.c.b16 %v2003, %v2001
    %v2028 = vpack.c.b16 %v2004, %v2002
    %v2029 = vpack.c.b16 %v2007, %v2005
    %v2030 = vpack.c.b16 %v2008, %v2006
    %v2031 = vpack.c.b16 %v2011, %v2009
    %v2032 = vpack.c.b16 %v2012, %v2010
    %v2033 = vpack.c.b16 %v2015, %v2013
    %v2034 = vpack.c.b16 %v2016, %v2014
    %v2035 = vpack.c.b16 %v2019, %v2017
    %v2036 = vpack.c.b16 %v2020, %v2018
    %2053 = vmatpush.bf16.msra.mxu0 %v2035
    %2054 = vmatpush.bf16.msra.mxu0 %v2033
    %2055 = vmatpush.bf16.msra.mxu0 %v2031
    %2056 = vmatpush.bf16.msra.mxu0 %v2029
    %2057 = vmatpush.bf16.msra.mxu0 %v2027
    %2058 = vmatpush.bf16.msra.mxu0 %v2025
    %2059 = vmatpush.bf16.msra.mxu0 %v2023
    %2060 = vmatpush.bf16.msra.mxu0 %v2021
    %2061 = vmatmul.bf16.gmra.mxu0 %v1801
    %v2062 = vpop.f32.mrf.mxu0
    %v2063 = vadd.f32 %v1955, %v2062
    %v2064 = vpop.f32.mrf.mxu0
    %v2065 = vadd.f32 %v1957, %v2064
    %2066 = vdwg.mxu0
    %2067 = vmatpush.bf16.msra.mxu0 %v2036
    %2068 = vmatpush.bf16.msra.mxu0 %v2034
    %2069 = vmatpush.bf16.msra.mxu0 %v2032
    %2070 = vmatpush.bf16.msra.mxu0 %v2030
    %2071 = vmatpush.bf16.msra.mxu0 %v2028
    %2072 = vmatpush.bf16.msra.mxu0 %v2026
    %2073 = vmatpush.bf16.msra.mxu0 %v2024
    %2074 = vmatpush.bf16.msra.mxu0 %v2022
    %2075 = vmatmul.bf16.gmra.mxu0 %v1801
    %v2076 = vpop.f32.mrf.mxu0
    %v2077 = vadd.f32 %v1969, %v2076
    %v2078 = vpop.f32.mrf.mxu0
    %v2079 = vadd.f32 %v1971, %v2078
    %2080 = vdwg.mxu0
    %v2081 = vld [vmem:[%s6] sm:$0x3]
    %v2083 = vperm.slane %v2081, 0
    %v2084 = vperm.slane %v2081, 1
    %v2087 = vadd.f32 %v2063, %v2083
    %v2088 = vadd.f32 %v2077, %v2084
    %v2089 = vadd.f32 %v2065, %v2083
    %v2090 = vadd.f32 %v2079, %v2084
    %v2093 = vrot.slane %v2089, 6
    %v2094 = vrot.slane %v2090, 6
    %v2097 = vsel %vm142, %v2087, %v2093
    %v2098 = vsel %vm143, %v2088, %v2094
    %v2099 = vrot.slane %v2089, 2
    %v2100 = vrot.slane %v2090, 2
    %v2103 = vsel %vm142, %v2087, %v2099
    %v2104 = vsel %vm143, %v2088, %v2100
    %v2107 = vrot.slane %v2087, 6
    %v2108 = vrot.slane %v2088, 6
    %v2111 = vsel %vm142, %v2089, %v2107
    %v2112 = vsel %vm143, %v2090, %v2108
    %v2113 = vrot.slane %v2087, 2
    %v2114 = vrot.slane %v2088, 2
    %v2117 = vsel %vm142, %v2089, %v2113
    %v2118 = vsel %vm143, %v2090, %v2114
    %v2119 = vld [vmem:[#allocation10] sm:$0xff]
    %v2120 = vld [vmem:[#allocation10 + $0x8] sm:$0xff]
    %v2121 = vld [vmem:[#allocation10 + $0x10] sm:$0xff]
    %v2122 = vld [vmem:[#allocation10 + $0x18] sm:$0xff]
    %v2123 = vld [vmem:[#allocation10 + $0x20] sm:$0xff]
    %v2124 = vld [vmem:[#allocation10 + $0x28] sm:$0xff]
    %v2125 = vld [vmem:[#allocation10 + $0x30] sm:$0xff]
    %v2126 = vld [vmem:[#allocation10 + $0x38] sm:$0xff]
    %v2127 = vld [vmem:[#allocation10 + $0x40] sm:$0xff]
    %v2128 = vld [vmem:[#allocation10 + $0x48] sm:$0xff]
    %v2129 = vld [vmem:[#allocation10 + $0x50] sm:$0xff]
    %v2130 = vld [vmem:[#allocation10 + $0x58] sm:$0xff]
    %v2131 = vld [vmem:[#allocation10 + $0x60] sm:$0xff]
    %v2132 = vld [vmem:[#allocation10 + $0x68] sm:$0xff]
    %v2133 = vld [vmem:[#allocation10 + $0x70] sm:$0xff]
    %v2134 = vld [vmem:[#allocation10 + $0x78] sm:$0xff]
    %v2151 = vunpack.c.l.b16 %v2119
    %v2152 = vunpack.c.h.b16 %v2119
    %v2153 = vunpack.c.l.b16 %v2120
    %v2154 = vunpack.c.h.b16 %v2120
    %v2155 = vunpack.c.l.b16 %v2121
    %v2156 = vunpack.c.h.b16 %v2121
    %v2157 = vunpack.c.l.b16 %v2122
    %v2158 = vunpack.c.h.b16 %v2122
    %v2159 = vunpack.c.l.b16 %v2123
    %v2160 = vunpack.c.h.b16 %v2123
    %v2161 = vunpack.c.l.b16 %v2124
    %v2162 = vunpack.c.h.b16 %v2124
    %v2163 = vunpack.c.l.b16 %v2125
    %v2164 = vunpack.c.h.b16 %v2125
    %v2165 = vunpack.c.l.b16 %v2126
    %v2166 = vunpack.c.h.b16 %v2126
    %v2167 = vunpack.c.l.b16 %v2127
    %v2168 = vunpack.c.h.b16 %v2127
    %v2169 = vunpack.c.l.b16 %v2128
    %v2170 = vunpack.c.h.b16 %v2128
    %v2171 = vunpack.c.l.b16 %v2129
    %v2172 = vunpack.c.h.b16 %v2129
    %v2173 = vunpack.c.l.b16 %v2130
    %v2174 = vunpack.c.h.b16 %v2130
    %v2175 = vunpack.c.l.b16 %v2131
    %v2176 = vunpack.c.h.b16 %v2131
    %v2177 = vunpack.c.l.b16 %v2132
    %v2178 = vunpack.c.h.b16 %v2132
    %v2179 = vunpack.c.l.b16 %v2133
    %v2180 = vunpack.c.h.b16 %v2133
    %v2181 = vunpack.c.l.b16 %v2134
    %v2182 = vunpack.c.h.b16 %v2134
    %v2183 = vpack.c.b16 %v2153, %v2151
    %v2184 = vpack.c.b16 %v2154, %v2152
    %v2185 = vpack.c.b16 %v2157, %v2155
    %v2186 = vpack.c.b16 %v2158, %v2156
    %v2187 = vpack.c.b16 %v2161, %v2159
    %v2188 = vpack.c.b16 %v2162, %v2160
    %v2189 = vpack.c.b16 %v2165, %v2163
    %v2190 = vpack.c.b16 %v2166, %v2164
    %v2191 = vpack.c.b16 %v2169, %v2167
    %v2192 = vpack.c.b16 %v2170, %v2168
    %v2193 = vpack.c.b16 %v2173, %v2171
    %v2194 = vpack.c.b16 %v2174, %v2172
    %v2195 = vpack.c.b16 %v2177, %v2175
    %v2196 = vpack.c.b16 %v2178, %v2176
    %v2197 = vpack.c.b16 %v2181, %v2179
    %v2198 = vpack.c.b16 %v2182, %v2180
    %2215 = vmatpush.bf16.msra.mxu0 %v2197
    %2216 = vmatpush.bf16.msra.mxu0 %v2195
    %2217 = vmatpush.bf16.msra.mxu0 %v2193
    %2218 = vmatpush.bf16.msra.mxu0 %v2191
    %2219 = vmatpush.bf16.msra.mxu0 %v2189
    %2220 = vmatpush.bf16.msra.mxu0 %v2187
    %2221 = vmatpush.bf16.msra.mxu0 %v2185
    %2222 = vmatpush.bf16.msra.mxu0 %v2183
    %2223 = vmatmul.bf16.gmra.mxu0 0
    %v2224 = vpop.f32.mrf.mxu0
    %v2225 = vadd.f32 0.0, %v2224
    %v2226 = vpop.f32.mrf.mxu0
    %2227 = vdwg.mxu0
    %2228 = vmatpush.bf16.msra.mxu0 %v2198
    %2229 = vmatpush.bf16.msra.mxu0 %v2196
    %2230 = vmatpush.bf16.msra.mxu0 %v2194
    %2231 = vmatpush.bf16.msra.mxu0 %v2192
    %2232 = vmatpush.bf16.msra.mxu0 %v2190
    %2233 = vmatpush.bf16.msra.mxu0 %v2188
    %2234 = vmatpush.bf16.msra.mxu0 %v2186
    %2235 = vmatpush.bf16.msra.mxu0 %v2184
    %2236 = vmatmul.bf16.gmra.mxu0 0
    %v2237 = vpop.f32.mrf.mxu0
    %v2238 = vadd.f32 0.0, %v2237
    %v2239 = vpop.f32.mrf.mxu0
    %2240 = vdwg.mxu0
    %v2241 = vadd.f32 %v2097, %v2225
    %v2242 = vadd.f32 %v2098, %v2238
    %v2243 = vtanh.pop %v2241
    %v2244 = vtanh.pop %v2242
    %v2245 = vxor.u32 %v2241, 2147483648
    %v2246 = vxor.u32 %v2242, 2147483648
    %v2247 = vmul.f32 %v2245, 1.442695
    %v2248 = vpow.pop %v2247
    %v2249 = vmul.f32 %v2246, 1.442695
    %v2250 = vpow.pop %v2249
    %v2251 = vadd.f32 %v2248, 1.0
    %v2252 = vadd.f32 %v2250, 1.0
    %v2253 = vrcp.pop %v2251
    %v2254 = vmul.f32 %v2251, %v2253
    %v2255 = vsub.f32 1.0, %v2254
    %v2256 = vmul.f32 %v2253, %v2255
    %v2257 = vadd.f32 %v2253, %v2256
    %vm2258 = vweird.f32 %v2251
    %vm2259 = vweird.f32 %v2253
    %vm2260 = vmor %vm2258, %vm2259
    %v2261 = vsel %vm2260, %v2253, %v2257
    %v2262 = vand.u32 2147483647, %v2251
    %vm2263 = vcmp.eq.f32.partialorder %v2262, 8.507059e+37
    %v2264 = vand.u32 %v2251, 2147483648
    %v2265 = vor.u32 1.1754944e-38, %v2264
    %v2266 = vsel %vm2263, %v2265, %v2261
    %v2267 = vmul.f32 1.0, %v2266
    %v2268 = vrcp.pop %v2252
    %v2269 = vmul.f32 %v2252, %v2268
    %v2270 = vsub.f32 1.0, %v2269
    %v2271 = vmul.f32 %v2268, %v2270
    %v2272 = vadd.f32 %v2268, %v2271
    %vm2273 = vweird.f32 %v2252
    %vm2274 = vweird.f32 %v2268
    %vm2275 = vmor %vm2273, %vm2274
    %v2276 = vsel %vm2275, %v2268, %v2272
    %v2277 = vand.u32 2147483647, %v2252
    %vm2278 = vcmp.eq.f32.partialorder %v2277, 8.507059e+37
    %v2279 = vand.u32 %v2252, 2147483648
    %v2280 = vor.u32 1.1754944e-38, %v2279
    %v2281 = vsel %vm2278, %v2280, %v2276
    %v2282 = vmul.f32 1.0, %v2281
    %v2283 = vsel %vm148, %v2243, %v2267
    %v2284 = vsel %vm149, %v2244, %v2282
    %v2285 = vsel %vm150, %v2284, 0.0
    %v2286 = vmul.f32 %v2283, %v2285
    %2287 = vrot.lane.b32.xlu0 %v2286, 64
    %v2288 = vpop.permute.xlu0 %2287
    %v2289 = vadd.f32 %v2286, %v2288
    %v2290 = vtanh.pop %v2289
    %v2291 = vmul.f32 %v2284, %v2290
    %v2292 = vpack.c.bf16 %v2291, %v2291
    %2293 = vmatpush.bf16.msra.mxu0 %v2197
    %2294 = vmatpush.bf16.msra.mxu0 %v2195
    %2295 = vmatpush.bf16.msra.mxu0 %v2193
    %2296 = vmatpush.bf16.msra.mxu0 %v2191
    %2297 = vmatpush.bf16.msra.mxu0 %v2189
    %2298 = vmatpush.bf16.msra.mxu0 %v2187
    %2299 = vmatpush.bf16.msra.mxu0 %v2185
    %2300 = vmatpush.bf16.msra.mxu0 %v2183
    %2301 = vmatmul.bf16.gmra.mxu0 %v2292
    %v2302 = vpop.f32.mrf.mxu0
    %v2303 = vadd.f32 0.0, %v2302
    %v2304 = vpop.f32.mrf.mxu0
    %2305 = vdwg.mxu0
    %2306 = vmatpush.bf16.msra.mxu0 %v2198
    %2307 = vmatpush.bf16.msra.mxu0 %v2196
    %2308 = vmatpush.bf16.msra.mxu0 %v2194
    %2309 = vmatpush.bf16.msra.mxu0 %v2192
    %2310 = vmatpush.bf16.msra.mxu0 %v2190
    %2311 = vmatpush.bf16.msra.mxu0 %v2188
    %2312 = vmatpush.bf16.msra.mxu0 %v2186
    %2313 = vmatpush.bf16.msra.mxu0 %v2184
    %2314 = vmatmul.bf16.gmra.mxu0 %v2292
    %v2315 = vpop.f32.mrf.mxu0
    %v2316 = vadd.f32 0.0, %v2315
    %v2317 = vpop.f32.mrf.mxu0
    %2318 = vdwg.mxu0
    %v2321 = vrot.slane %v2303, 6
    %v2322 = vrot.slane %v2316, 6
    %v2325 = vadd.f32 %v2103, %v2321
    %v2326 = vadd.f32 %v2104, %v2322
    %v2327 = vtanh.pop %v2325
    %v2328 = vtanh.pop %v2326
    %v2329 = vxor.u32 %v2325, 2147483648
    %v2330 = vxor.u32 %v2326, 2147483648
    %v2331 = vmul.f32 %v2329, 1.442695
    %v2332 = vpow.pop %v2331
    %v2333 = vmul.f32 %v2330, 1.442695
    %v2334 = vpow.pop %v2333
    %v2335 = vadd.f32 %v2332, 1.0
    %v2336 = vadd.f32 %v2334, 1.0
    %v2337 = vrcp.pop %v2335
    %v2338 = vmul.f32 %v2335, %v2337
    %v2339 = vsub.f32 1.0, %v2338
    %v2340 = vmul.f32 %v2337, %v2339
    %v2341 = vadd.f32 %v2337, %v2340
    %vm2342 = vweird.f32 %v2335
    %vm2343 = vweird.f32 %v2337
    %vm2344 = vmor %vm2342, %vm2343
    %v2345 = vsel %vm2344, %v2337, %v2341
    %v2346 = vand.u32 2147483647, %v2335
    %vm2347 = vcmp.eq.f32.partialorder %v2346, 8.507059e+37
    %v2348 = vand.u32 %v2335, 2147483648
    %v2349 = vor.u32 1.1754944e-38, %v2348
    %v2350 = vsel %vm2347, %v2349, %v2345
    %v2351 = vmul.f32 1.0, %v2350
    %v2352 = vrcp.pop %v2336
    %v2353 = vmul.f32 %v2336, %v2352
    %v2354 = vsub.f32 1.0, %v2353
    %v2355 = vmul.f32 %v2352, %v2354
    %v2356 = vadd.f32 %v2352, %v2355
    %vm2357 = vweird.f32 %v2336
    %vm2358 = vweird.f32 %v2352
    %vm2359 = vmor %vm2357, %vm2358
    %v2360 = vsel %vm2359, %v2352, %v2356
    %v2361 = vand.u32 2147483647, %v2336
    %vm2362 = vcmp.eq.f32.partialorder %v2361, 8.507059e+37
    %v2363 = vand.u32 %v2336, 2147483648
    %v2364 = vor.u32 1.1754944e-38, %v2363
    %v2365 = vsel %vm2362, %v2364, %v2360
    %v2366 = vmul.f32 1.0, %v2365
    %v2367 = vsel %vm148, %v2327, %v2351
    %v2368 = vsel %vm149, %v2328, %v2366
    %v2370 = vrot.slane %v2289, 6
    %v2372 = vsel %vm150, %v2368, %v2370
    %v2373 = vmul.f32 %v2367, %v2372
    %v2375 = vrot.slane %v2373, 2
    %2377 = vrot.lane.b32.xlu0 %v2375, 64
    %v2378 = vpop.permute.xlu0 %2377
    %v2380 = vrot.slane %v2378, 6
    %v2382 = vadd.f32 %v2373, %v2380
    %v2383 = vtanh.pop %v2382
    %v2384 = vmul.f32 %v2368, %v2383
    %v2385 = vpack.c.bf16 %v2384, %v2384
    %v2387 = vrot.slane %v2385, 1
    %2389 = vmatpush.bf16.msra.mxu0 %v2197
    %2390 = vmatpush.bf16.msra.mxu0 %v2195
    %2391 = vmatpush.bf16.msra.mxu0 %v2193
    %2392 = vmatpush.bf16.msra.mxu0 %v2191
    %2393 = vmatpush.bf16.msra.mxu0 %v2189
    %2394 = vmatpush.bf16.msra.mxu0 %v2187
    %2395 = vmatpush.bf16.msra.mxu0 %v2185
    %2396 = vmatpush.bf16.msra.mxu0 %v2183
    %2397 = vmatmul.bf16.gmra.mxu0 %v2387
    %v2398 = vpop.f32.mrf.mxu0
    %v2399 = vadd.f32 0.0, %v2398
    %v2400 = vpop.f32.mrf.mxu0
    %2401 = vdwg.mxu0
    %2402 = vmatpush.bf16.msra.mxu0 %v2198
    %2403 = vmatpush.bf16.msra.mxu0 %v2196
    %2404 = vmatpush.bf16.msra.mxu0 %v2194
    %2405 = vmatpush.bf16.msra.mxu0 %v2192
    %2406 = vmatpush.bf16.msra.mxu0 %v2190
    %2407 = vmatpush.bf16.msra.mxu0 %v2188
    %2408 = vmatpush.bf16.msra.mxu0 %v2186
    %2409 = vmatpush.bf16.msra.mxu0 %v2184
    %2410 = vmatmul.bf16.gmra.mxu0 %v2387
    %v2411 = vpop.f32.mrf.mxu0
    %v2412 = vadd.f32 0.0, %v2411
    %v2413 = vpop.f32.mrf.mxu0
    %2414 = vdwg.mxu0
    %v2417 = vrot.slane %v2399, 4
    %v2418 = vrot.slane %v2412, 4
    %v2421 = vadd.f32 %v2097, %v2417
    %v2422 = vadd.f32 %v2098, %v2418
    %v2423 = vtanh.pop %v2421
    %v2424 = vtanh.pop %v2422
    %v2425 = vxor.u32 %v2421, 2147483648
    %v2426 = vxor.u32 %v2422, 2147483648
    %v2427 = vmul.f32 %v2425, 1.442695
    %v2428 = vpow.pop %v2427
    %v2429 = vmul.f32 %v2426, 1.442695
    %v2430 = vpow.pop %v2429
    %v2431 = vadd.f32 %v2428, 1.0
    %v2432 = vadd.f32 %v2430, 1.0
    %v2433 = vrcp.pop %v2431
    %v2434 = vmul.f32 %v2431, %v2433
    %v2435 = vsub.f32 1.0, %v2434
    %v2436 = vmul.f32 %v2433, %v2435
    %v2437 = vadd.f32 %v2433, %v2436
    %vm2438 = vweird.f32 %v2431
    %vm2439 = vweird.f32 %v2433
    %vm2440 = vmor %vm2438, %vm2439
    %v2441 = vsel %vm2440, %v2433, %v2437
    %v2442 = vand.u32 2147483647, %v2431
    %vm2443 = vcmp.eq.f32.partialorder %v2442, 8.507059e+37
    %v2444 = vand.u32 %v2431, 2147483648
    %v2445 = vor.u32 1.1754944e-38, %v2444
    %v2446 = vsel %vm2443, %v2445, %v2441
    %v2447 = vmul.f32 1.0, %v2446
    %v2448 = vrcp.pop %v2432
    %v2449 = vmul.f32 %v2432, %v2448
    %v2450 = vsub.f32 1.0, %v2449
    %v2451 = vmul.f32 %v2448, %v2450
    %v2452 = vadd.f32 %v2448, %v2451
    %vm2453 = vweird.f32 %v2432
    %vm2454 = vweird.f32 %v2448
    %vm2455 = vmor %vm2453, %vm2454
    %v2456 = vsel %vm2455, %v2448, %v2452
    %v2457 = vand.u32 2147483647, %v2432
    %vm2458 = vcmp.eq.f32.partialorder %v2457, 8.507059e+37
    %v2459 = vand.u32 %v2432, 2147483648
    %v2460 = vor.u32 1.1754944e-38, %v2459
    %v2461 = vsel %vm2458, %v2460, %v2456
    %v2462 = vmul.f32 1.0, %v2461
    %v2463 = vsel %vm148, %v2423, %v2447
    %v2464 = vsel %vm149, %v2424, %v2462
    %v2466 = vrot.slane %v2382, 6
    %v2468 = vsel %vm150, %v2464, %v2466
    %v2469 = vmul.f32 %v2463, %v2468
    %v2471 = vrot.slane %v2469, 4
    %2473 = vrot.lane.b32.xlu0 %v2471, 64
    %v2474 = vpop.permute.xlu0 %2473
    %v2476 = vrot.slane %v2474, 4
    %v2478 = vadd.f32 %v2469, %v2476
    %v2479 = vtanh.pop %v2478
    %v2480 = vmul.f32 %v2464, %v2479
    %v2481 = vpack.c.bf16 %v2480, %v2480
    %v2483 = vrot.slane %v2481, 2
    %2485 = vmatpush.bf16.msra.mxu0 %v2197
    %2486 = vmatpush.bf16.msra.mxu0 %v2195
    %2487 = vmatpush.bf16.msra.mxu0 %v2193
    %2488 = vmatpush.bf16.msra.mxu0 %v2191
    %2489 = vmatpush.bf16.msra.mxu0 %v2189
    %2490 = vmatpush.bf16.msra.mxu0 %v2187
    %2491 = vmatpush.bf16.msra.mxu0 %v2185
    %2492 = vmatpush.bf16.msra.mxu0 %v2183
    %2493 = vmatmul.bf16.gmra.mxu0 %v2483
    %v2494 = vpop.f32.mrf.mxu0
    %v2495 = vadd.f32 0.0, %v2494
    %v2496 = vpop.f32.mrf.mxu0
    %2497 = vdwg.mxu0
    %2498 = vmatpush.bf16.msra.mxu0 %v2198
    %2499 = vmatpush.bf16.msra.mxu0 %v2196
    %2500 = vmatpush.bf16.msra.mxu0 %v2194
    %2501 = vmatpush.bf16.msra.mxu0 %v2192
    %2502 = vmatpush.bf16.msra.mxu0 %v2190
    %2503 = vmatpush.bf16.msra.mxu0 %v2188
    %2504 = vmatpush.bf16.msra.mxu0 %v2186
    %2505 = vmatpush.bf16.msra.mxu0 %v2184
    %2506 = vmatmul.bf16.gmra.mxu0 %v2483
    %v2507 = vpop.f32.mrf.mxu0
    %v2508 = vadd.f32 0.0, %v2507
    %v2509 = vpop.f32.mrf.mxu0
    %2510 = vdwg.mxu0
    %v2513 = vrot.slane %v2495, 2
    %v2514 = vrot.slane %v2508, 2
    %v2517 = vadd.f32 %v2103, %v2513
    %v2518 = vadd.f32 %v2104, %v2514
    %v2519 = vtanh.pop %v2517
    %v2520 = vtanh.pop %v2518
    %v2521 = vxor.u32 %v2517, 2147483648
    %v2522 = vxor.u32 %v2518, 2147483648
    %v2523 = vmul.f32 %v2521, 1.442695
    %v2524 = vpow.pop %v2523
    %v2525 = vmul.f32 %v2522, 1.442695
    %v2526 = vpow.pop %v2525
    %v2527 = vadd.f32 %v2524, 1.0
    %v2528 = vadd.f32 %v2526, 1.0
    %v2529 = vrcp.pop %v2527
    %v2530 = vmul.f32 %v2527, %v2529
    %v2531 = vsub.f32 1.0, %v2530
    %v2532 = vmul.f32 %v2529, %v2531
    %v2533 = vadd.f32 %v2529, %v2532
    %vm2534 = vweird.f32 %v2527
    %vm2535 = vweird.f32 %v2529
    %vm2536 = vmor %vm2534, %vm2535
    %v2537 = vsel %vm2536, %v2529, %v2533
    %v2538 = vand.u32 2147483647, %v2527
    %vm2539 = vcmp.eq.f32.partialorder %v2538, 8.507059e+37
    %v2540 = vand.u32 %v2527, 2147483648
    %v2541 = vor.u32 1.1754944e-38, %v2540
    %v2542 = vsel %vm2539, %v2541, %v2537
    %v2543 = vmul.f32 1.0, %v2542
    %v2544 = vrcp.pop %v2528
    %v2545 = vmul.f32 %v2528, %v2544
    %v2546 = vsub.f32 1.0, %v2545
    %v2547 = vmul.f32 %v2544, %v2546
    %v2548 = vadd.f32 %v2544, %v2547
    %vm2549 = vweird.f32 %v2528
    %vm2550 = vweird.f32 %v2544
    %vm2551 = vmor %vm2549, %vm2550
    %v2552 = vsel %vm2551, %v2544, %v2548
    %v2553 = vand.u32 2147483647, %v2528
    %vm2554 = vcmp.eq.f32.partialorder %v2553, 8.507059e+37
    %v2555 = vand.u32 %v2528, 2147483648
    %v2556 = vor.u32 1.1754944e-38, %v2555
    %v2557 = vsel %vm2554, %v2556, %v2552
    %v2558 = vmul.f32 1.0, %v2557
    %v2559 = vsel %vm148, %v2519, %v2543
    %v2560 = vsel %vm149, %v2520, %v2558
    %v2562 = vrot.slane %v2478, 6
    %v2564 = vsel %vm150, %v2560, %v2562
    %v2565 = vmul.f32 %v2559, %v2564
    %v2567 = vrot.slane %v2565, 6
    %2569 = vrot.lane.b32.xlu0 %v2567, 64
    %v2570 = vpop.permute.xlu0 %2569
    %v2572 = vrot.slane %v2570, 2
    %v2574 = vadd.f32 %v2565, %v2572
    %v2575 = vtanh.pop %v2574
    %v2576 = vmul.f32 %v2560, %v2575
    %v2577 = vpack.c.bf16 %v2576, %v2576
    %v2579 = vrot.slane %v2577, 3
    %2581 = vmatpush.bf16.msra.mxu0 %v2197
    %2582 = vmatpush.bf16.msra.mxu0 %v2195
    %2583 = vmatpush.bf16.msra.mxu0 %v2193
    %2584 = vmatpush.bf16.msra.mxu0 %v2191
    %2585 = vmatpush.bf16.msra.mxu0 %v2189
    %2586 = vmatpush.bf16.msra.mxu0 %v2187
    %2587 = vmatpush.bf16.msra.mxu0 %v2185
    %2588 = vmatpush.bf16.msra.mxu0 %v2183
    %2589 = vmatmul.bf16.gmra.mxu0 %v2579
    %v2590 = vpop.f32.mrf.mxu0
    %v2591 = vadd.f32 0.0, %v2590
    %v2592 = vpop.f32.mrf.mxu0
    %2593 = vdwg.mxu0
    %2594 = vmatpush.bf16.msra.mxu0 %v2198
    %2595 = vmatpush.bf16.msra.mxu0 %v2196
    %2596 = vmatpush.bf16.msra.mxu0 %v2194
    %2597 = vmatpush.bf16.msra.mxu0 %v2192
    %2598 = vmatpush.bf16.msra.mxu0 %v2190
    %2599 = vmatpush.bf16.msra.mxu0 %v2188
    %2600 = vmatpush.bf16.msra.mxu0 %v2186
    %2601 = vmatpush.bf16.msra.mxu0 %v2184
    %2602 = vmatmul.bf16.gmra.mxu0 %v2579
    %v2603 = vpop.f32.mrf.mxu0
    %v2604 = vadd.f32 0.0, %v2603
    %v2605 = vpop.f32.mrf.mxu0
    %2606 = vdwg.mxu0
    %v2607 = vadd.f32 %v2111, %v2591
    %v2608 = vadd.f32 %v2112, %v2604
    %v2609 = vtanh.pop %v2607
    %v2610 = vtanh.pop %v2608
    %v2611 = vxor.u32 %v2607, 2147483648
    %v2612 = vxor.u32 %v2608, 2147483648
    %v2613 = vmul.f32 %v2611, 1.442695
    %v2614 = vpow.pop %v2613
    %v2615 = vmul.f32 %v2612, 1.442695
    %v2616 = vpow.pop %v2615
    %v2617 = vadd.f32 %v2614, 1.0
    %v2618 = vadd.f32 %v2616, 1.0
    %v2619 = vrcp.pop %v2617
    %v2620 = vmul.f32 %v2617, %v2619
    %v2621 = vsub.f32 1.0, %v2620
    %v2622 = vmul.f32 %v2619, %v2621
    %v2623 = vadd.f32 %v2619, %v2622
    %vm2624 = vweird.f32 %v2617
    %vm2625 = vweird.f32 %v2619
    %vm2626 = vmor %vm2624, %vm2625
    %v2627 = vsel %vm2626, %v2619, %v2623
    %v2628 = vand.u32 2147483647, %v2617
    %vm2629 = vcmp.eq.f32.partialorder %v2628, 8.507059e+37
    %v2630 = vand.u32 %v2617, 2147483648
    %v2631 = vor.u32 1.1754944e-38, %v2630
    %v2632 = vsel %vm2629, %v2631, %v2627
    %v2633 = vmul.f32 1.0, %v2632
    %v2634 = vrcp.pop %v2618
    %v2635 = vmul.f32 %v2618, %v2634
    %v2636 = vsub.f32 1.0, %v2635
    %v2637 = vmul.f32 %v2634, %v2636
    %v2638 = vadd.f32 %v2634, %v2637
    %vm2639 = vweird.f32 %v2618
    %vm2640 = vweird.f32 %v2634
    %vm2641 = vmor %vm2639, %vm2640
    %v2642 = vsel %vm2641, %v2634, %v2638
    %v2643 = vand.u32 2147483647, %v2618
    %vm2644 = vcmp.eq.f32.partialorder %v2643, 8.507059e+37
    %v2645 = vand.u32 %v2618, 2147483648
    %v2646 = vor.u32 1.1754944e-38, %v2645
    %v2647 = vsel %vm2644, %v2646, %v2642
    %v2648 = vmul.f32 1.0, %v2647
    %v2649 = vsel %vm148, %v2609, %v2633
    %v2650 = vsel %vm149, %v2610, %v2648
    %v2652 = vrot.slane %v2574, 6
    %v2654 = vsel %vm150, %v2650, %v2652
    %v2655 = vmul.f32 %v2649, %v2654
    %2656 = vrot.lane.b32.xlu0 %v2655, 64
    %v2657 = vpop.permute.xlu0 %2656
    %v2658 = vadd.f32 %v2655, %v2657
    %v2659 = vtanh.pop %v2658
    %v2660 = vmul.f32 %v2650, %v2659
    %v2661 = vpack.c.bf16 %v2660, %v2660
    %2662 = vmatpush.bf16.msra.mxu0 %v2197
    %2663 = vmatpush.bf16.msra.mxu0 %v2195
    %2664 = vmatpush.bf16.msra.mxu0 %v2193
    %2665 = vmatpush.bf16.msra.mxu0 %v2191
    %2666 = vmatpush.bf16.msra.mxu0 %v2189
    %2667 = vmatpush.bf16.msra.mxu0 %v2187
    %2668 = vmatpush.bf16.msra.mxu0 %v2185
    %2669 = vmatpush.bf16.msra.mxu0 %v2183
    %2670 = vmatmul.bf16.gmra.mxu0 %v2661
    %v2671 = vpop.f32.mrf.mxu0
    %v2672 = vadd.f32 0.0, %v2671
    %v2673 = vpop.f32.mrf.mxu0
    %2674 = vdwg.mxu0
    %2675 = vmatpush.bf16.msra.mxu0 %v2198
    %2676 = vmatpush.bf16.msra.mxu0 %v2196
    %2677 = vmatpush.bf16.msra.mxu0 %v2194
    %2678 = vmatpush.bf16.msra.mxu0 %v2192
    %2679 = vmatpush.bf16.msra.mxu0 %v2190
    %2680 = vmatpush.bf16.msra.mxu0 %v2188
    %2681 = vmatpush.bf16.msra.mxu0 %v2186
    %2682 = vmatpush.bf16.msra.mxu0 %v2184
    %2683 = vmatmul.bf16.gmra.mxu0 %v2661
    %v2684 = vpop.f32.mrf.mxu0
    %v2685 = vadd.f32 0.0, %v2684
    %v2686 = vpop.f32.mrf.mxu0
    %2687 = vdwg.mxu0
    %v2690 = vrot.slane %v2672, 6
    %v2691 = vrot.slane %v2685, 6
    %v2694 = vadd.f32 %v2117, %v2690
    %v2695 = vadd.f32 %v2118, %v2691
    %v2696 = vtanh.pop %v2694
    %v2697 = vtanh.pop %v2695
    %v2698 = vxor.u32 %v2694, 2147483648
    %v2699 = vxor.u32 %v2695, 2147483648
    %v2700 = vmul.f32 %v2698, 1.442695
    %v2701 = vpow.pop %v2700
    %v2702 = vmul.f32 %v2699, 1.442695
    %v2703 = vpow.pop %v2702
    %v2704 = vadd.f32 %v2701, 1.0
    %v2705 = vadd.f32 %v2703, 1.0
    %v2706 = vrcp.pop %v2704
    %v2707 = vmul.f32 %v2704, %v2706
    %v2708 = vsub.f32 1.0, %v2707
    %v2709 = vmul.f32 %v2706, %v2708
    %v2710 = vadd.f32 %v2706, %v2709
    %vm2711 = vweird.f32 %v2704
    %vm2712 = vweird.f32 %v2706
    %vm2713 = vmor %vm2711, %vm2712
    %v2714 = vsel %vm2713, %v2706, %v2710
    %v2715 = vand.u32 2147483647, %v2704
    %vm2716 = vcmp.eq.f32.partialorder %v2715, 8.507059e+37
    %v2717 = vand.u32 %v2704, 2147483648
    %v2718 = vor.u32 1.1754944e-38, %v2717
    %v2719 = vsel %vm2716, %v2718, %v2714
    %v2720 = vmul.f32 1.0, %v2719
    %v2721 = vrcp.pop %v2705
    %v2722 = vmul.f32 %v2705, %v2721
    %v2723 = vsub.f32 1.0, %v2722
    %v2724 = vmul.f32 %v2721, %v2723
    %v2725 = vadd.f32 %v2721, %v2724
    %vm2726 = vweird.f32 %v2705
    %vm2727 = vweird.f32 %v2721
    %vm2728 = vmor %vm2726, %vm2727
    %v2729 = vsel %vm2728, %v2721, %v2725
    %v2730 = vand.u32 2147483647, %v2705
    %vm2731 = vcmp.eq.f32.partialorder %v2730, 8.507059e+37
    %v2732 = vand.u32 %v2705, 2147483648
    %v2733 = vor.u32 1.1754944e-38, %v2732
    %v2734 = vsel %vm2731, %v2733, %v2729
    %v2735 = vmul.f32 1.0, %v2734
    %v2736 = vsel %vm148, %v2696, %v2720
    %v2737 = vsel %vm149, %v2697, %v2735
    %v2739 = vrot.slane %v2658, 6
    %v2741 = vsel %vm150, %v2737, %v2739
    %v2742 = vmul.f32 %v2736, %v2741
    %v2744 = vrot.slane %v2742, 2
    %2746 = vrot.lane.b32.xlu0 %v2744, 64
    %v2747 = vpop.permute.xlu0 %2746
    %v2749 = vrot.slane %v2747, 6
    %v2751 = vadd.f32 %v2742, %v2749
    %v2752 = vtanh.pop %v2751
    %v2753 = vmul.f32 %v2737, %v2752
    %v2754 = vpack.c.bf16 %v2753, %v2753
    %v2756 = vrot.slane %v2754, 1
    %2758 = vmatpush.bf16.msra.mxu0 %v2197
    %2759 = vmatpush.bf16.msra.mxu0 %v2195
    %2760 = vmatpush.bf16.msra.mxu0 %v2193
    %2761 = vmatpush.bf16.msra.mxu0 %v2191
    %2762 = vmatpush.bf16.msra.mxu0 %v2189
    %2763 = vmatpush.bf16.msra.mxu0 %v2187
    %2764 = vmatpush.bf16.msra.mxu0 %v2185
    %2765 = vmatpush.bf16.msra.mxu0 %v2183
    %2766 = vmatmul.bf16.gmra.mxu0 %v2756
    %v2767 = vpop.f32.mrf.mxu0
    %v2768 = vadd.f32 0.0, %v2767
    %v2769 = vpop.f32.mrf.mxu0
    %2770 = vdwg.mxu0
    %2771 = vmatpush.bf16.msra.mxu0 %v2198
    %2772 = vmatpush.bf16.msra.mxu0 %v2196
    %2773 = vmatpush.bf16.msra.mxu0 %v2194
    %2774 = vmatpush.bf16.msra.mxu0 %v2192
    %2775 = vmatpush.bf16.msra.mxu0 %v2190
    %2776 = vmatpush.bf16.msra.mxu0 %v2188
    %2777 = vmatpush.bf16.msra.mxu0 %v2186
    %2778 = vmatpush.bf16.msra.mxu0 %v2184
    %2779 = vmatmul.bf16.gmra.mxu0 %v2756
    %v2780 = vpop.f32.mrf.mxu0
    %v2781 = vadd.f32 0.0, %v2780
    %v2782 = vpop.f32.mrf.mxu0
    %2783 = vdwg.mxu0
    %v2786 = vrot.slane %v2768, 4
    %v2787 = vrot.slane %v2781, 4
    %v2790 = vadd.f32 %v2111, %v2786
    %v2791 = vadd.f32 %v2112, %v2787
    %v2792 = vtanh.pop %v2790
    %v2793 = vtanh.pop %v2791
    %v2794 = vxor.u32 %v2790, 2147483648
    %v2795 = vxor.u32 %v2791, 2147483648
    %v2796 = vmul.f32 %v2794, 1.442695
    %v2797 = vpow.pop %v2796
    %v2798 = vmul.f32 %v2795, 1.442695
    %v2799 = vpow.pop %v2798
    %v2800 = vadd.f32 %v2797, 1.0
    %v2801 = vadd.f32 %v2799, 1.0
    %v2802 = vrcp.pop %v2800
    %v2803 = vmul.f32 %v2800, %v2802
    %v2804 = vsub.f32 1.0, %v2803
    %v2805 = vmul.f32 %v2802, %v2804
    %v2806 = vadd.f32 %v2802, %v2805
    %vm2807 = vweird.f32 %v2800
    %vm2808 = vweird.f32 %v2802
    %vm2809 = vmor %vm2807, %vm2808
    %v2810 = vsel %vm2809, %v2802, %v2806
    %v2811 = vand.u32 2147483647, %v2800
    %vm2812 = vcmp.eq.f32.partialorder %v2811, 8.507059e+37
    %v2813 = vand.u32 %v2800, 2147483648
    %v2814 = vor.u32 1.1754944e-38, %v2813
    %v2815 = vsel %vm2812, %v2814, %v2810
    %v2816 = vmul.f32 1.0, %v2815
    %v2817 = vrcp.pop %v2801
    %v2818 = vmul.f32 %v2801, %v2817
    %v2819 = vsub.f32 1.0, %v2818
    %v2820 = vmul.f32 %v2817, %v2819
    %v2821 = vadd.f32 %v2817, %v2820
    %vm2822 = vweird.f32 %v2801
    %vm2823 = vweird.f32 %v2817
    %vm2824 = vmor %vm2822, %vm2823
    %v2825 = vsel %vm2824, %v2817, %v2821
    %v2826 = vand.u32 2147483647, %v2801
    %vm2827 = vcmp.eq.f32.partialorder %v2826, 8.507059e+37
    %v2828 = vand.u32 %v2801, 2147483648
    %v2829 = vor.u32 1.1754944e-38, %v2828
    %v2830 = vsel %vm2827, %v2829, %v2825
    %v2831 = vmul.f32 1.0, %v2830
    %v2832 = vsel %vm148, %v2792, %v2816
    %v2833 = vsel %vm149, %v2793, %v2831
    %v2835 = vrot.slane %v2751, 6
    %v2837 = vsel %vm150, %v2833, %v2835
    %v2838 = vmul.f32 %v2832, %v2837
    %v2840 = vrot.slane %v2838, 4
    %2842 = vrot.lane.b32.xlu0 %v2840, 64
    %v2843 = vpop.permute.xlu0 %2842
    %v2845 = vrot.slane %v2843, 4
    %v2847 = vadd.f32 %v2838, %v2845
    %v2848 = vtanh.pop %v2847
    %v2849 = vmul.f32 %v2833, %v2848
    %v2850 = vpack.c.bf16 %v2849, %v2849
    %v2852 = vrot.slane %v2850, 2
    %2854 = vmatpush.bf16.msra.mxu0 %v2197
    %2855 = vmatpush.bf16.msra.mxu0 %v2195
    %2856 = vmatpush.bf16.msra.mxu0 %v2193
    %2857 = vmatpush.bf16.msra.mxu0 %v2191
    %2858 = vmatpush.bf16.msra.mxu0 %v2189
    %2859 = vmatpush.bf16.msra.mxu0 %v2187
    %2860 = vmatpush.bf16.msra.mxu0 %v2185
    %2861 = vmatpush.bf16.msra.mxu0 %v2183
    %2862 = vmatmul.bf16.gmra.mxu0 %v2852
    %v2863 = vpop.f32.mrf.mxu0
    %v2864 = vadd.f32 0.0, %v2863
    %v2865 = vpop.f32.mrf.mxu0
    %2866 = vdwg.mxu0
    %2867 = vmatpush.bf16.msra.mxu0 %v2198
    %2868 = vmatpush.bf16.msra.mxu0 %v2196
    %2869 = vmatpush.bf16.msra.mxu0 %v2194
    %2870 = vmatpush.bf16.msra.mxu0 %v2192
    %2871 = vmatpush.bf16.msra.mxu0 %v2190
    %2872 = vmatpush.bf16.msra.mxu0 %v2188
    %2873 = vmatpush.bf16.msra.mxu0 %v2186
    %2874 = vmatpush.bf16.msra.mxu0 %v2184
    %2875 = vmatmul.bf16.gmra.mxu0 %v2852
    %v2876 = vpop.f32.mrf.mxu0
    %v2877 = vadd.f32 0.0, %v2876
    %v2878 = vpop.f32.mrf.mxu0
    %2879 = vdwg.mxu0
    %v2882 = vrot.slane %v2864, 2
    %v2883 = vrot.slane %v2877, 2
    %v2886 = vadd.f32 %v2117, %v2882
    %v2887 = vadd.f32 %v2118, %v2883
    %v2888 = vtanh.pop %v2886
    %v2889 = vtanh.pop %v2887
    %v2890 = vxor.u32 %v2886, 2147483648
    %v2891 = vxor.u32 %v2887, 2147483648
    %v2892 = vmul.f32 %v2890, 1.442695
    %v2893 = vpow.pop %v2892
    %v2894 = vmul.f32 %v2891, 1.442695
    %v2895 = vpow.pop %v2894
    %v2896 = vadd.f32 %v2893, 1.0
    %v2897 = vadd.f32 %v2895, 1.0
    %v2898 = vrcp.pop %v2896
    %v2899 = vmul.f32 %v2896, %v2898
    %v2900 = vsub.f32 1.0, %v2899
    %v2901 = vmul.f32 %v2898, %v2900
    %v2902 = vadd.f32 %v2898, %v2901
    %vm2903 = vweird.f32 %v2896
    %vm2904 = vweird.f32 %v2898
    %vm2905 = vmor %vm2903, %vm2904
    %v2906 = vsel %vm2905, %v2898, %v2902
    %v2907 = vand.u32 2147483647, %v2896
    %vm2908 = vcmp.eq.f32.partialorder %v2907, 8.507059e+37
    %v2909 = vand.u32 %v2896, 2147483648
    %v2910 = vor.u32 1.1754944e-38, %v2909
    %v2911 = vsel %vm2908, %v2910, %v2906
    %v2912 = vmul.f32 1.0, %v2911
    %v2913 = vrcp.pop %v2897
    %v2914 = vmul.f32 %v2897, %v2913
    %v2915 = vsub.f32 1.0, %v2914
    %v2916 = vmul.f32 %v2913, %v2915
    %v2917 = vadd.f32 %v2913, %v2916
    %vm2918 = vweird.f32 %v2897
    %vm2919 = vweird.f32 %v2913
    %vm2920 = vmor %vm2918, %vm2919
    %v2921 = vsel %vm2920, %v2913, %v2917
    %v2922 = vand.u32 2147483647, %v2897
    %vm2923 = vcmp.eq.f32.partialorder %v2922, 8.507059e+37
    %v2924 = vand.u32 %v2897, 2147483648
    %v2925 = vor.u32 1.1754944e-38, %v2924
    %v2926 = vsel %vm2923, %v2925, %v2921
    %v2927 = vmul.f32 1.0, %v2926
    %v2928 = vsel %vm148, %v2888, %v2912
    %v2929 = vsel %vm149, %v2889, %v2927
    %v2931 = vrot.slane %v2847, 6
    %v2933 = vsel %vm150, %v2929, %v2931
    %v2934 = vmul.f32 %v2928, %v2933
    %v2936 = vrot.slane %v2934, 6
    %2938 = vrot.lane.b32.xlu0 %v2936, 64
    %v2939 = vpop.permute.xlu0 %2938
    %v2941 = vrot.slane %v2939, 2
    %v2943 = vadd.f32 %v2934, %v2941
    %v2944 = vtanh.pop %v2943
    %v2945 = vmul.f32 %v2929, %v2944
    %v2946 = vld [vmem:[%s8] sm:$0xff]
    %v2947 = vld [vmem:[%s8 + $0x8] sm:$0xff]
    %v2948 = vld [vmem:[%s8 + $0x10] sm:$0xff]
    %v2949 = vld [vmem:[%s8 + $0x18] sm:$0xff]
    %v2950 = vld [vmem:[%s8 + $0x20] sm:$0xff]
    %v2951 = vld [vmem:[%s8 + $0x28] sm:$0xff]
    %v2952 = vld [vmem:[%s8 + $0x30] sm:$0xff]
    %v2953 = vld [vmem:[%s8 + $0x38] sm:$0xff]
    %v2954 = vld [vmem:[%s8 + $0x40] sm:$0xff]
    %v2955 = vld [vmem:[%s8 + $0x48] sm:$0xff]
    %v2956 = vld [vmem:[%s8 + $0x50] sm:$0xff]
    %v2957 = vld [vmem:[%s8 + $0x58] sm:$0xff]
    %v2958 = vld [vmem:[%s8 + $0x60] sm:$0xff]
    %v2959 = vld [vmem:[%s8 + $0x68] sm:$0xff]
    %v2960 = vld [vmem:[%s8 + $0x70] sm:$0xff]
    %v2961 = vld [vmem:[%s8 + $0x78] sm:$0xff]
    %v2962 = vld [vmem:[%s9] sm:$0x1]
    %v2964 = vperm.slane %v2962, 0
    %v2967 = vrot.slane %v2945, 6
    %2969 = vmatpush.msra.mxu0 %v2961
    %2970 = vmatpush.msra.mxu0 %v2960
    %2971 = vmatpush.msra.mxu0 %v2959
    %2972 = vmatpush.msra.mxu0 %v2958
    %2973 = vmatpush.msra.mxu0 %v2957
    %2974 = vmatpush.msra.mxu0 %v2956
    %2975 = vmatpush.msra.mxu0 %v2955
    %2976 = vmatpush.msra.mxu0 %v2954
    %2977 = vmatpush.msra.mxu0 %v2953
    %2978 = vmatpush.msra.mxu0 %v2952
    %2979 = vmatpush.msra.mxu0 %v2951
    %2980 = vmatpush.msra.mxu0 %v2950
    %2981 = vmatpush.msra.mxu0 %v2949
    %2982 = vmatpush.msra.mxu0 %v2948
    %2983 = vmatpush.msra.mxu0 %v2947
    %2984 = vmatpush.msra.mxu0 %v2946
    %2985 = vmatmul.f32.gmra.mxu0 %v2967
    %v2986 = vpop.f32.mrf.mxu0
    %v2987 = vadd.f32 %v2964, %v2986
    %2988 = vdwg.mxu0
    %vm2989 = vcmask 25600
    %2990 = vst.msk [vmem:[#allocation11] sm:$0x3] %vm2989, %v2987
    // Predicated region
    $region62: #{tpu_custom_call.1} parent=1 // pred_check
      _
    $region63: #{tpu_custom_call.1} parent=1 // pred_check_branch
      %2992 = sbr.rel (0) target = $region65
    $region64: #{tpu_custom_call.1} parent=1 // pred_region
      %2994 = vsyncadd [#allocation4], 0
      %s2996 = sshll.u32 [#allocation11], 4
      %s2997 = int_to_ptr.vmem [resolvable:$true] %s2996
      %s2998 = sshll.u32 %s10, 4
      %s2999 = int_to_ptr.hbm [resolvable:$true] %s2998
      %3001 = dma.vmem_to_hbm [thread:$0]  %s2997, 32, %s2999, [#allocation4]
    $region65: #{tpu_custom_call.1} parent=1 // pred_fallthru
      _
    // Predicated region
    $region66: #{tpu_custom_call.1} parent=1 // pred_check
      _
    $region67: #{tpu_custom_call.1} parent=1 // pred_check_branch
      %3003 = sbr.rel (0) target = $region69
    $region68: #{tpu_custom_call.1} parent=1 // pred_region
      %3005 = dma.done [#allocation4], 32
    $region69: #{tpu_custom_call.1} parent=1 // pred_fallthru
      _
    %3006 = vsyncpa [#allocation3], 1
    %3007 = vsyncpa [#allocation6], 1
    %3008 = vsyncpa [#allocation9], 1
    %3009 = vsyncpa [#allocation4], 1

</llo_original>
